<compile_context>
chip_gen: v7x
topology: tpu7x:2x2x1
jax: 0.10.0
libtpu: 0.0.40
codegen_flags: <defaults>
</compile_context>

<pallas_src>
import jax
import jax.numpy as jnp
from jax.experimental import pallas as pl
from jax.experimental.pallas import tpu as pltpu

IN_FEATURES = 17 * 3   # 51
IN_PAD = 64            # zero-padded K
H1 = 64
H2 = 32
OUT = 1
NEG_SLOPE = 0.2


def _leaky_relu(x, neg_slope=NEG_SLOPE):
    return jnp.where(x > 0, x, neg_slope * x)


def _round_up(n, m):
    return ((n + m - 1) // m) * m


def discriminator_kernel(x_ref, w1_ref, b1_ref, w2_ref, b2_ref, w3_ref, b3_ref, o_ref):
    # x tile: (TB, IN_PAD) bf16. Weights/biases are VMEM-resident constants.
    x = x_ref[...]

    # Layer 1: Linear(64-padded-51 -> 64) on MXU, f32 accumulate, bias + LeakyReLU in f32.
    h1 = jnp.dot(x, w1_ref[...], preferred_element_type=jnp.float32) + b1_ref[...]
    h1 = _leaky_relu(h1)

    # Layer 2: Linear(64 -> 32) on MXU with bf16 operands, f32 accumulate.
    h2 = jnp.dot(h1.astype(jnp.bfloat16), w2_ref[...],
                 preferred_element_type=jnp.float32) + b2_ref[...]
    h2 = _leaky_relu(h2)

    # Layer 3: Linear(32 -> 1) on VPU (mul) + XLU (lane reduce) — avoids an N=1 MXU pass.
    out = jnp.sum(h2 * w3_ref[...], axis=-1).reshape(1, -1)        # (1, TB), lane-dense
    o_ref[...] = (out + b3_ref[...]).astype(o_ref.dtype)


def discriminator_forward(x, params):
    """x: (B, 51) float32 -> validity: (B, 1) float32."""
    w1, b1, w2, b2, w3, b3 = params
    B = x.shape[0]

    # Batch tile: multiple of 256 (fills MXU rows), capped at 1024. A (1024, 64) bf16
    # tile is 128 KB (256 KB double-buffered) — far under even v7x's 64 MiB VMEM.
    TB = 1024 if B >= 1024 else _round_up(max(B, 1), 256)
    B_pad = _round_up(B, TB)
    num_tiles = B_pad // TB

    # Pad batch -> multiple of TB and features 51 -> 64 with zeros; bf16 for MXU inputs.
    x_p = jnp.pad(x.astype(jnp.bfloat16),
                  ((0, B_pad - B), (0, IN_PAD - IN_FEATURES)))
    w1_p = jnp.pad(w1.astype(jnp.bfloat16), ((0, IN_PAD - IN_FEATURES), (0, 0)))
    w2_b = w2.astype(jnp.bfloat16)
    w3_row = w3.reshape(1, H2).astype(jnp.float32)   # used on VPU, keep f32
    b3_11 = b3.reshape(1, 1).astype(jnp.float32)

    const = lambda shape: pl.BlockSpec(shape, lambda i: (0, 0))

    out = pl.pallas_call(
        discriminator_kernel,
        out_shape=jax.ShapeDtypeStruct((num_tiles, TB), jnp.float32),
        grid_spec=pltpu.PrefetchScalarGridSpec(
            num_scalar_prefetch=0,
            grid=(num_tiles,),
            in_specs=[
                pl.BlockSpec((TB, IN_PAD), lambda i: (i, 0)),  # x: streamed per tile
                const((IN_PAD, H1)),                           # w1 (VMEM resident)
                const((1, H1)),                                # b1
                const((H1, H2)),                               # w2
                const((1, H2)),                                # b2
                const((1, H2)),                                # w3 as row
                const((1, 1)),                                 # b3
            ],
            out_specs=pl.BlockSpec((1, TB), lambda i: (i, 0)),
        ),
        compiler_params=pltpu.CompilerParams(
            dimension_semantics=("parallel",),          # megacore split on v7x
            vmem_limit_bytes=32 * 1024 * 1024,
        ),
    )(x_p, w1_p, b1, w2_b, b2, w3_row, b3_11)

    return out.reshape(-1)[:B].reshape(B, OUT)


def init_params(key):
    """PyTorch nn.Linear default init: U(-1/sqrt(in), 1/sqrt(in)); weights stored (in, out)."""
    ks = jax.random.split(key, 6)

    def linear(kw, kb, fan_in, fan_out):
        bound = 1.0 / jnp.sqrt(fan_in)
        w = jax.random.uniform(kw, (fan_in, fan_out), jnp.float32, -bound, bound)
        b = jax.random.uniform(kb, (1, fan_out), jnp.float32, -bound, bound)
        return w, b

    w1, b1 = linear(ks[0], ks[1], IN_FEATURES, H1)
    w2, b2 = linear(ks[2], ks[3], H1, H2)
    w3, b3 = linear(ks[4], ks[5], H2, OUT)
    return (w1, b1, w2, b2, w3, b3)


def reference_forward(x, params):
    w1, b1, w2, b2, w3, b3 = params
    h1 = _leaky_relu(x @ w1 + b1)
    h2 = _leaky_relu(h1 @ w2 + b2)
    return h2 @ w3 + b3


if __name__ == "__main__":
    key = jax.random.PRNGKey(0)
    k_params, k_x = jax.random.split(key)

    params = init_params(k_params)
    batch = 8
    x = jax.random.normal(k_x, (batch, IN_FEATURES), jnp.float32)

    out = jax.jit(discriminator_forward)(x, params)
    out = jax.block_until_ready(out)

    ref = reference_forward(x, params)   # pure f32 reference
    assert out.shape == (batch, OUT), out.shape
    err = float(jnp.max(jnp.abs(out - ref)))
    # bf16 matmul operands (f32 accumulation) => relaxed tolerance vs. f32 reference.
    assert err < 3e-2, f"max err {err}"

    print("KERNEL_OK")
</pallas_src>

<mosaic_0001>
module attributes {stable_mosaic.version = 11 : i64} {
  func.func @discriminator_kernel(%arg0: i32, %arg1: memref<256x64xbf16, #tpu.memory_space<vmem>>, %arg2: memref<64x64xbf16, #tpu.memory_space<vmem>>, %arg3: memref<1x64xf32, #tpu.memory_space<vmem>>, %arg4: memref<64x32xbf16, #tpu.memory_space<vmem>>, %arg5: memref<1x32xf32, #tpu.memory_space<vmem>>, %arg6: memref<1x32xf32, #tpu.memory_space<vmem>>, %arg7: memref<1x1xf32, #tpu.memory_space<vmem>>, %arg8: memref<1x256xf32, #tpu.memory_space<vmem>>) attributes {dimension_semantics = [#tpu.dimension_semantics<parallel>], iteration_bounds = array<i64: 1>, scalar_prefetch = 0 : i64, scratch_operands = 0 : i64, tpu.core_type = #tpu.core_type<tc>, window_params = [{transform_indices = @transform_0, window_bounds = array<i64: 256, 64>}, {pipeline_mode = #tpu.pipeline_mode<synchronous>, transform_indices = @transform_1, window_bounds = array<i64: 64, 64>}, {pipeline_mode = #tpu.pipeline_mode<synchronous>, transform_indices = @transform_2, window_bounds = array<i64: 1, 64>}, {pipeline_mode = #tpu.pipeline_mode<synchronous>, transform_indices = @transform_3, window_bounds = array<i64: 64, 32>}, {pipeline_mode = #tpu.pipeline_mode<synchronous>, transform_indices = @transform_4, window_bounds = array<i64: 1, 32>}, {pipeline_mode = #tpu.pipeline_mode<synchronous>, transform_indices = @transform_5, window_bounds = array<i64: 1, 32>}, {pipeline_mode = #tpu.pipeline_mode<synchronous>, transform_indices = @transform_6, window_bounds = array<i64: 1, 1>}, {transform_indices = @transform_7, window_bounds = array<i64: 1, 256>}]} {
    %c0 = arith.constant 0 : index
    %c0_0 = arith.constant 0 : index
    %0 = vector.load %arg1[%c0, %c0_0] : memref<256x64xbf16, #tpu.memory_space<vmem>>, vector<256x64xbf16>
    %c0_1 = arith.constant 0 : index
    %c0_2 = arith.constant 0 : index
    %1 = vector.load %arg2[%c0_1, %c0_2] : memref<64x64xbf16, #tpu.memory_space<vmem>>, vector<64x64xbf16>
    %cst = arith.constant dense<0.000000e+00> : vector<256x64xf32>
    %2 = tpu.matmul %0, %1, %cst {dimension_numbers = #tpu.dot_dimension_numbers<[1], [0], [0], [1], [0, 0, 1, 1], [], []>} : vector<256x64xbf16>, vector<64x64xbf16>, vector<256x64xf32> -> vector<256x64xf32>
    %c0_3 = arith.constant 0 : index
    %c0_4 = arith.constant 0 : index
    %3 = vector.load %arg3[%c0_3, %c0_4] : memref<1x64xf32, #tpu.memory_space<vmem>>, vector<1x64xf32>
    %4 = vector.broadcast %3 : vector<1x64xf32> to vector<256x64xf32>
    %5 = arith.addf %2, %4 : vector<256x64xf32>
    %cst_5 = arith.constant 0.000000e+00 : f32
    %6 = vector.broadcast %cst_5 : f32 to vector<256x64xf32>
    %7 = arith.cmpf ogt, %5, %6 : vector<256x64xf32>
    %cst_6 = arith.constant 2.000000e-01 : f32
    %8 = vector.broadcast %cst_6 : f32 to vector<256x64xf32>
    %9 = arith.mulf %8, %5 : vector<256x64xf32>
    %10 = arith.select %7, %5, %9 : vector<256x64xi1>, vector<256x64xf32>
    %11 = arith.truncf %10 : vector<256x64xf32> to vector<256x64xbf16>
    %c0_7 = arith.constant 0 : index
    %c0_8 = arith.constant 0 : index
    %12 = vector.load %arg4[%c0_7, %c0_8] : memref<64x32xbf16, #tpu.memory_space<vmem>>, vector<64x32xbf16>
    %cst_9 = arith.constant dense<0.000000e+00> : vector<256x32xf32>
    %13 = tpu.matmul %11, %12, %cst_9 {dimension_numbers = #tpu.dot_dimension_numbers<[1], [0], [0], [1], [0, 0, 1, 1], [], []>} : vector<256x64xbf16>, vector<64x32xbf16>, vector<256x32xf32> -> vector<256x32xf32>
    %c0_10 = arith.constant 0 : index
    %c0_11 = arith.constant 0 : index
    %14 = vector.load %arg5[%c0_10, %c0_11] : memref<1x32xf32, #tpu.memory_space<vmem>>, vector<1x32xf32>
    %15 = vector.broadcast %14 : vector<1x32xf32> to vector<256x32xf32>
    %16 = arith.addf %13, %15 : vector<256x32xf32>
    %cst_12 = arith.constant 0.000000e+00 : f32
    %17 = vector.broadcast %cst_12 : f32 to vector<256x32xf32>
    %18 = arith.cmpf ogt, %16, %17 : vector<256x32xf32>
    %cst_13 = arith.constant 2.000000e-01 : f32
    %19 = vector.broadcast %cst_13 : f32 to vector<256x32xf32>
    %20 = arith.mulf %19, %16 : vector<256x32xf32>
    %21 = arith.select %18, %16, %20 : vector<256x32xi1>, vector<256x32xf32>
    %c0_14 = arith.constant 0 : index
    %c0_15 = arith.constant 0 : index
    %22 = vector.load %arg6[%c0_14, %c0_15] : memref<1x32xf32, #tpu.memory_space<vmem>>, vector<1x32xf32>
    %23 = vector.broadcast %22 : vector<1x32xf32> to vector<256x32xf32>
    %24 = arith.mulf %21, %23 : vector<256x32xf32>
    %cst_16 = arith.constant dense<0.000000e+00> : vector<256xf32>
    %25 = vector.multi_reduction <add>, %24, %cst_16 [1] : vector<256x32xf32> to vector<256xf32>
    %26 = vector.shape_cast %25 : vector<256xf32> to vector<1x256xf32>
    %c0_17 = arith.constant 0 : index
    %c0_18 = arith.constant 0 : index
    %27 = vector.load %arg7[%c0_17, %c0_18] : memref<1x1xf32, #tpu.memory_space<vmem>>, vector<1x1xf32>
    %28 = vector.broadcast %27 : vector<1x1xf32> to vector<1x256xf32>
    %29 = arith.addf %26, %28 : vector<1x256xf32>
    %c0_19 = arith.constant 0 : index
    %c0_20 = arith.constant 0 : index
    %30 = vector.load %arg8[%c0_19, %c0_20] : memref<1x256xf32, #tpu.memory_space<vmem>>, vector<1x256xf32>
    tpu.vector_store %arg8[%c0_19, %c0_20], %29 {strides = array<i32>} : memref<1x256xf32, #tpu.memory_space<vmem>>, vector<1x256xf32>,
    return
  }
  func.func @transform_0(%arg0: i32) -> (i32, i32) {
    %c0_i32 = arith.constant 0 : i32
    %c0_i32_0 = arith.constant 0 : i32
    return %arg0, %c0_i32 : i32, i32
  }
  func.func @transform_1(%arg0: i32) -> (i32, i32) {
    %c0_i32 = arith.constant 0 : i32
    %c0_i32_0 = arith.constant 0 : i32
    %c0_i32_1 = arith.constant 0 : i32
    return %c0_i32, %c0_i32_0 : i32, i32
  }
  func.func @transform_2(%arg0: i32) -> (i32, i32) {
    %c0_i32 = arith.constant 0 : i32
    %c0_i32_0 = arith.constant 0 : i32
    %c0_i32_1 = arith.constant 0 : i32
    return %c0_i32, %c0_i32_0 : i32, i32
  }
  func.func @transform_3(%arg0: i32) -> (i32, i32) {
    %c0_i32 = arith.constant 0 : i32
    %c0_i32_0 = arith.constant 0 : i32
    %c0_i32_1 = arith.constant 0 : i32
    return %c0_i32, %c0_i32_0 : i32, i32
  }
  func.func @transform_4(%arg0: i32) -> (i32, i32) {
    %c0_i32 = arith.constant 0 : i32
    %c0_i32_0 = arith.constant 0 : i32
    %c0_i32_1 = arith.constant 0 : i32
    return %c0_i32, %c0_i32_0 : i32, i32
  }
  func.func @transform_5(%arg0: i32) -> (i32, i32) {
    %c0_i32 = arith.constant 0 : i32
    %c0_i32_0 = arith.constant 0 : i32
    %c0_i32_1 = arith.constant 0 : i32
    return %c0_i32, %c0_i32_0 : i32, i32
  }
  func.func @transform_6(%arg0: i32) -> (i32, i32) {
    %c0_i32 = arith.constant 0 : i32
    %c0_i32_0 = arith.constant 0 : i32
    %c0_i32_1 = arith.constant 0 : i32
    return %c0_i32, %c0_i32_0 : i32, i32
  }
  func.func @transform_7(%arg0: i32) -> (i32, i32) {
    %c0_i32 = arith.constant 0 : i32
    %c0_i32_0 = arith.constant 0 : i32
    return %arg0, %c0_i32 : i32, i32
  }
}

</mosaic_0001>

<llo_original>
// kernel: discriminator_forward.1
$region0: #{discriminator_forward.1}
  #allocation0 [shape = 'u32[]', space=smem, size = 0x4, offset = 0x4, fixed_abs, tag = 'smem constant byte address 0x4 - core index']
  #allocation1 [shape = 'u32[144,128]{1,0:T(1,128)}', space=vmem, size = 0x12000, scoped, tag = 'internal scratch']
  #allocation2 [shape = 'f32[1,1]{1,0:T(1,128)S(1)}', space=vmem, size = 0x200, scoped, tag = 'scoped memory for discriminator_forward.1']
  %s0 = inlined_call_operand.vmem [shape: bf16[256,64], index: 0, kind: input, shape index: {}]
  %s1 = inlined_call_operand.vmem [shape: bf16[64,64], index: 1, kind: input, shape index: {}]
  %s2 = inlined_call_operand.vmem [shape: f32[1,64], index: 2, kind: input, shape index: {}]
  %s3 = inlined_call_operand.vmem [shape: bf16[64,32], index: 3, kind: input, shape index: {}]
  %s4 = inlined_call_operand.vmem [shape: f32[1,32], index: 4, kind: input, shape index: {}]
  %s5 = inlined_call_operand.vmem [shape: f32[1,32], index: 5, kind: input, shape index: {}]
  %s6 = inlined_call_operand.<no memory space> [shape: f32[1,1], index: 6, kind: input, shape index: {}]
  %s7 = inlined_call_operand.vmem [shape: f32[1,256], index: 7, kind: output, shape index: {}]
  %s8 = sld [smem:[#allocation0]]
  $region38: #{discriminator_forward.1} parent=0
    _
  %s10 = ssub.s32 1, %s8
  %s11 = scalar_select 0, %s10, %s8
  %v12 = vstv %s6
  %13 = vst [vmem:[#allocation2] sm:$0x1] %v12
  // Predicated region
  $region2: #{discriminator_forward.1} parent=0 // pred_check
    _
  $region3: #{discriminator_forward.1} parent=0 // pred_check_branch
    %15 = sbr.rel (0) target = $region5
  $region4: #{discriminator_forward.1} parent=0 // pred_region
    _
  $region5: #{discriminator_forward.1} parent=0 // pred_fallthru
    _
  // Predicated region
  $region6: #{discriminator_forward.1} parent=0 // pred_check
    _
  $region7: #{discriminator_forward.1} parent=0 // pred_check_branch
    %17 = sbr.rel (0) target = $region9
  $region8: #{discriminator_forward.1} parent=0 // pred_region
    _
  $region9: #{discriminator_forward.1} parent=0 // pred_fallthru
    _
  // Predicated region
  $region10: #{discriminator_forward.1} parent=0 // pred_check
    _
  $region11: #{discriminator_forward.1} parent=0 // pred_check_branch
    %19 = sbr.rel (0) target = $region13
  $region12: #{discriminator_forward.1} parent=0 // pred_region
    _
  $region13: #{discriminator_forward.1} parent=0 // pred_fallthru
    _
  // Predicated region
  $region14: #{discriminator_forward.1} parent=0 // pred_check
    _
  $region15: #{discriminator_forward.1} parent=0 // pred_check_branch
    %21 = sbr.rel (0) target = $region17
  $region16: #{discriminator_forward.1} parent=0 // pred_region
    _
  $region17: #{discriminator_forward.1} parent=0 // pred_fallthru
    _
  // Predicated region
  $region18: #{discriminator_forward.1} parent=0 // pred_check
    _
  $region19: #{discriminator_forward.1} parent=0 // pred_check_branch
    %23 = sbr.rel (0) target = $region21
  $region20: #{discriminator_forward.1} parent=0 // pred_region
    _
  $region21: #{discriminator_forward.1} parent=0 // pred_fallthru
    _
  // Predicated region
  $region22: #{discriminator_forward.1} parent=0 // pred_check
    _
  $region23: #{discriminator_forward.1} parent=0 // pred_check_branch
    %25 = sbr.rel (0) target = $region25
  $region24: #{discriminator_forward.1} parent=0 // pred_region
    _
  $region25: #{discriminator_forward.1} parent=0 // pred_fallthru
    _
  // Predicated region
  $region26: #{discriminator_forward.1} parent=0 // pred_check
    _
  $region27: #{discriminator_forward.1} parent=0 // pred_check_branch
    %27 = sbr.rel (0) target = $region29
  $region28: #{discriminator_forward.1} parent=0 // pred_region
    _
  $region29: #{discriminator_forward.1} parent=0 // pred_fallthru
    _
  %v29 = vld [vmem:[%s0] sm:$0xf]
  %v30 = vld [vmem:[%s0 + $0x4] sm:$0xf]
  %v31 = vld [vmem:[%s0 + $0x8] sm:$0xf]
  %v32 = vld [vmem:[%s0 + $0xc] sm:$0xf]
  %v33 = vld [vmem:[%s0 + $0x10] sm:$0xf]
  %v34 = vld [vmem:[%s0 + $0x14] sm:$0xf]
  %v35 = vld [vmem:[%s0 + $0x18] sm:$0xf]
  %v36 = vld [vmem:[%s0 + $0x1c] sm:$0xf]
  %v37 = vld [vmem:[%s0 + $0x20] sm:$0xf]
  %v38 = vld [vmem:[%s0 + $0x24] sm:$0xf]
  %v39 = vld [vmem:[%s0 + $0x28] sm:$0xf]
  %v40 = vld [vmem:[%s0 + $0x2c] sm:$0xf]
  %v41 = vld [vmem:[%s0 + $0x30] sm:$0xf]
  %v42 = vld [vmem:[%s0 + $0x34] sm:$0xf]
  %v43 = vld [vmem:[%s0 + $0x38] sm:$0xf]
  %v44 = vld [vmem:[%s0 + $0x3c] sm:$0xf]
  %v45 = vld [vmem:[%s0 + $0x40] sm:$0xf]
  %v46 = vld [vmem:[%s0 + $0x44] sm:$0xf]
  %v47 = vld [vmem:[%s0 + $0x48] sm:$0xf]
  %v48 = vld [vmem:[%s0 + $0x4c] sm:$0xf]
  %v49 = vld [vmem:[%s0 + $0x50] sm:$0xf]
  %v50 = vld [vmem:[%s0 + $0x54] sm:$0xf]
  %v51 = vld [vmem:[%s0 + $0x58] sm:$0xf]
  %v52 = vld [vmem:[%s0 + $0x5c] sm:$0xf]
  %v53 = vld [vmem:[%s0 + $0x60] sm:$0xf]
  %v54 = vld [vmem:[%s0 + $0x64] sm:$0xf]
  %v55 = vld [vmem:[%s0 + $0x68] sm:$0xf]
  %v56 = vld [vmem:[%s0 + $0x6c] sm:$0xf]
  %v57 = vld [vmem:[%s0 + $0x70] sm:$0xf]
  %v58 = vld [vmem:[%s0 + $0x74] sm:$0xf]
  %v59 = vld [vmem:[%s0 + $0x78] sm:$0xf]
  %v60 = vld [vmem:[%s0 + $0x7c] sm:$0xf]
  %v61 = vld [vmem:[%s1] sm:$0xf]
  %v62 = vld [vmem:[%s1 + $0x4] sm:$0xf]
  %v63 = vld [vmem:[%s1 + $0x8] sm:$0xf]
  %v64 = vld [vmem:[%s1 + $0xc] sm:$0xf]
  %v65 = vld [vmem:[%s1 + $0x10] sm:$0xf]
  %v66 = vld [vmem:[%s1 + $0x14] sm:$0xf]
  %v67 = vld [vmem:[%s1 + $0x18] sm:$0xf]
  %v68 = vld [vmem:[%s1 + $0x1c] sm:$0xf]
  %v69 = vld [vmem:[%s2] sm:$0x1]
  %v71 = vlaneseq
  %v72 = vshrl.u32 %v71, 7
  %v73 = vsub.s32 0, %v72
  %v74 = vrot.slane %v69, %v73
  %v108 = vunpack.c.l.b16 %v29
  %v109 = vunpack.c.l.b16 %v30
  %v110 = vunpack.c.l.b16 %v31
  %v111 = vunpack.c.l.b16 %v32
  %v112 = vunpack.c.l.b16 %v33
  %v113 = vunpack.c.l.b16 %v34
  %v114 = vunpack.c.l.b16 %v35
  %v115 = vunpack.c.l.b16 %v36
  %v116 = vunpack.c.l.b16 %v37
  %v117 = vunpack.c.l.b16 %v38
  %v118 = vunpack.c.l.b16 %v39
  %v119 = vunpack.c.l.b16 %v40
  %v120 = vunpack.c.l.b16 %v41
  %v121 = vunpack.c.l.b16 %v42
  %v122 = vunpack.c.l.b16 %v43
  %v123 = vunpack.c.l.b16 %v44
  %v124 = vunpack.c.l.b16 %v45
  %v125 = vunpack.c.l.b16 %v46
  %v126 = vunpack.c.l.b16 %v47
  %v127 = vunpack.c.l.b16 %v48
  %v128 = vunpack.c.l.b16 %v49
  %v129 = vunpack.c.l.b16 %v50
  %v130 = vunpack.c.l.b16 %v51
  %v131 = vunpack.c.l.b16 %v52
  %v132 = vunpack.c.l.b16 %v53
  %v133 = vunpack.c.l.b16 %v54
  %v134 = vunpack.c.l.b16 %v55
  %v135 = vunpack.c.l.b16 %v56
  %v136 = vunpack.c.l.b16 %v57
  %v137 = vunpack.c.l.b16 %v58
  %v138 = vunpack.c.l.b16 %v59
  %v139 = vunpack.c.l.b16 %v60
  %v140 = vpack.c.b16 %v109, %v108
  %v141 = vpack.c.b16 %v111, %v110
  %v142 = vpack.c.b16 %v113, %v112
  %v143 = vpack.c.b16 %v115, %v114
  %v144 = vpack.c.b16 %v117, %v116
  %v145 = vpack.c.b16 %v119, %v118
  %v146 = vpack.c.b16 %v121, %v120
  %v147 = vpack.c.b16 %v123, %v122
  %v148 = vpack.c.b16 %v125, %v124
  %v149 = vpack.c.b16 %v127, %v126
  %v150 = vpack.c.b16 %v129, %v128
  %v151 = vpack.c.b16 %v131, %v130
  %v152 = vpack.c.b16 %v133, %v132
  %v153 = vpack.c.b16 %v135, %v134
  %v154 = vpack.c.b16 %v137, %v136
  %v155 = vpack.c.b16 %v139, %v138
  %v164 = vunpack.c.l.b16 %v61
  %v165 = vunpack.c.l.b16 %v62
  %v166 = vunpack.c.l.b16 %v63
  %v167 = vunpack.c.l.b16 %v64
  %v168 = vunpack.c.l.b16 %v65
  %v169 = vunpack.c.l.b16 %v66
  %v170 = vunpack.c.l.b16 %v67
  %v171 = vunpack.c.l.b16 %v68
  %v172 = vpack.c.b16 %v165, %v164
  %v173 = vpack.c.b16 %v167, %v166
  %v174 = vpack.c.b16 %v169, %v168
  %v175 = vpack.c.b16 %v171, %v170
  %vm180 = vcmask 523264
  %v182 = vsel %vm180, %v140, 0
  %v185 = vsel %vm180, %v141, 0
  %v188 = vsel %vm180, %v142, 0
  %v191 = vsel %vm180, %v143, 0
  %v194 = vsel %vm180, %v144, 0
  %v197 = vsel %vm180, %v145, 0
  %v200 = vsel %vm180, %v146, 0
  %v203 = vsel %vm180, %v147, 0
  %v206 = vsel %vm180, %v148, 0
  %v209 = vsel %vm180, %v149, 0
  %v212 = vsel %vm180, %v150, 0
  %v215 = vsel %vm180, %v151, 0
  %v218 = vsel %vm180, %v152, 0
  %v221 = vsel %vm180, %v153, 0
  %v224 = vsel %vm180, %v154, 0
  %v227 = vsel %vm180, %v155, 0
  %229 = vmatprep.subr.bf16.mxu0 0
  %230 = vmatpush1.bf16.msra.mxu0 %v172
  %231 = vmatprep.subr.bf16.mxu0 0
  %232 = vmatpush1.bf16.msra.mxu0 %v173
  %233 = vmatprep.subr.bf16.mxu0 0
  %234 = vmatpush1.bf16.msra.mxu0 %v174
  %235 = vmatprep.subr.bf16.mxu0 0
  %236 = vmatpush1.bf16.msra.mxu0 %v175
  %237 = vmatprep.subr.bf16.mxu0 0
  %238 = vmatpush1.bf16.msra.mxu0 0
  %239 = vmatprep.subr.bf16.mxu0 0
  %240 = vmatpush1.bf16.msra.mxu0 0
  %241 = vmatprep.subr.bf16.mxu0 0
  %242 = vmatpush1.bf16.msra.mxu0 0
  %243 = vmatprep.subr.bf16.mxu0 0
  %244 = vmatpush1.bf16.msra.mxu0 0
  %245 = vmatprep.subr.bf16.mxu0 0
  %246 = vmatpush1.bf16.msra.mxu0 0
  %247 = vmatprep.subr.bf16.mxu0 0
  %248 = vmatpush1.bf16.msra.mxu0 0
  %249 = vmatprep.subr.bf16.mxu0 0
  %250 = vmatpush1.bf16.msra.mxu0 0
  %251 = vmatprep.subr.bf16.mxu0 0
  %252 = vmatpush1.bf16.msra.mxu0 0
  %253 = vmatprep.subr.bf16.mxu0 0
  %254 = vmatpush1.bf16.msra.mxu0 0
  %255 = vmatprep.subr.bf16.mxu0 0
  %256 = vmatpush1.bf16.msra.mxu0 0
  %257 = vmatprep.subr.bf16.mxu0 0
  %258 = vmatpush1.bf16.msra.mxu0 0
  %259 = vmatprep.subr.bf16.mxu0 0
  %260 = vmatpush1.bf16.msra.mxu0 0
  %261 = vmatprep.mubr.bf16.mxu0 0
  %262 = vmatmul.mubr.bf16.gmra.mrb[0].mxu0 %v182
  %v263 = vpop.f32.mrb[0].mxu0
  %v264 = vadd.f32 %v74, %v263
  %v265 = vpop.f32.mrb[0].mxu0
  %v266 = vpop.f32.mrb[0].mxu0
  %v267 = vadd.f32 %v74, %v266
  %v268 = vpop.f32.mrb[0].mxu0
  %269 = vmatprep.mubr.bf16.mxu0 0
  %270 = vmatmul.mubr.bf16.gmra.mrb[0].mxu0 %v185
  %v271 = vpop.f32.mrb[0].mxu0
  %v272 = vadd.f32 %v74, %v271
  %v273 = vpop.f32.mrb[0].mxu0
  %v274 = vpop.f32.mrb[0].mxu0
  %v275 = vadd.f32 %v74, %v274
  %v276 = vpop.f32.mrb[0].mxu0
  %277 = vmatprep.mubr.bf16.mxu0 0
  %278 = vmatmul.mubr.bf16.gmra.mrb[0].mxu0 %v188
  %v279 = vpop.f32.mrb[0].mxu0
  %v280 = vadd.f32 %v74, %v279
  %v281 = vpop.f32.mrb[0].mxu0
  %v282 = vpop.f32.mrb[0].mxu0
  %v283 = vadd.f32 %v74, %v282
  %v284 = vpop.f32.mrb[0].mxu0
  %285 = vmatprep.mubr.bf16.mxu0 0
  %286 = vmatmul.mubr.bf16.gmra.mrb[0].mxu0 %v191
  %v287 = vpop.f32.mrb[0].mxu0
  %v288 = vadd.f32 %v74, %v287
  %v289 = vpop.f32.mrb[0].mxu0
  %v290 = vpop.f32.mrb[0].mxu0
  %v291 = vadd.f32 %v74, %v290
  %v292 = vpop.f32.mrb[0].mxu0
  %293 = vmatprep.mubr.bf16.mxu0 0
  %294 = vmatmul.mubr.bf16.gmra.mrb[0].mxu0 %v194
  %v295 = vpop.f32.mrb[0].mxu0
  %v296 = vadd.f32 %v74, %v295
  %v297 = vpop.f32.mrb[0].mxu0
  %v298 = vpop.f32.mrb[0].mxu0
  %v299 = vadd.f32 %v74, %v298
  %v300 = vpop.f32.mrb[0].mxu0
  %301 = vmatprep.mubr.bf16.mxu0 0
  %302 = vmatmul.mubr.bf16.gmra.mrb[0].mxu0 %v197
  %v303 = vpop.f32.mrb[0].mxu0
  %v304 = vadd.f32 %v74, %v303
  %v305 = vpop.f32.mrb[0].mxu0
  %v306 = vpop.f32.mrb[0].mxu0
  %v307 = vadd.f32 %v74, %v306
  %v308 = vpop.f32.mrb[0].mxu0
  %309 = vmatprep.mubr.bf16.mxu0 0
  %310 = vmatmul.mubr.bf16.gmra.mrb[0].mxu0 %v200
  %v311 = vpop.f32.mrb[0].mxu0
  %v312 = vadd.f32 %v74, %v311
  %v313 = vpop.f32.mrb[0].mxu0
  %v314 = vpop.f32.mrb[0].mxu0
  %v315 = vadd.f32 %v74, %v314
  %v316 = vpop.f32.mrb[0].mxu0
  %317 = vmatprep.mubr.bf16.mxu0 0
  %318 = vmatmul.mubr.bf16.gmra.mrb[0].mxu0 %v203
  %v319 = vpop.f32.mrb[0].mxu0
  %v320 = vadd.f32 %v74, %v319
  %v321 = vpop.f32.mrb[0].mxu0
  %v322 = vpop.f32.mrb[0].mxu0
  %v323 = vadd.f32 %v74, %v322
  %v324 = vpop.f32.mrb[0].mxu0
  %325 = vmatprep.mubr.bf16.mxu0 0
  %326 = vmatmul.mubr.bf16.gmra.mrb[0].mxu0 %v206
  %v327 = vpop.f32.mrb[0].mxu0
  %v328 = vadd.f32 %v74, %v327
  %v329 = vpop.f32.mrb[0].mxu0
  %v330 = vpop.f32.mrb[0].mxu0
  %v331 = vadd.f32 %v74, %v330
  %v332 = vpop.f32.mrb[0].mxu0
  %333 = vmatprep.mubr.bf16.mxu0 0
  %334 = vmatmul.mubr.bf16.gmra.mrb[0].mxu0 %v209
  %v335 = vpop.f32.mrb[0].mxu0
  %v336 = vadd.f32 %v74, %v335
  %v337 = vpop.f32.mrb[0].mxu0
  %v338 = vpop.f32.mrb[0].mxu0
  %v339 = vadd.f32 %v74, %v338
  %v340 = vpop.f32.mrb[0].mxu0
  %341 = vmatprep.mubr.bf16.mxu0 0
  %342 = vmatmul.mubr.bf16.gmra.mrb[0].mxu0 %v212
  %v343 = vpop.f32.mrb[0].mxu0
  %v344 = vadd.f32 %v74, %v343
  %v345 = vpop.f32.mrb[0].mxu0
  %v346 = vpop.f32.mrb[0].mxu0
  %v347 = vadd.f32 %v74, %v346
  %v348 = vpop.f32.mrb[0].mxu0
  %349 = vmatprep.mubr.bf16.mxu0 0
  %350 = vmatmul.mubr.bf16.gmra.mrb[0].mxu0 %v215
  %v351 = vpop.f32.mrb[0].mxu0
  %v352 = vadd.f32 %v74, %v351
  %v353 = vpop.f32.mrb[0].mxu0
  %v354 = vpop.f32.mrb[0].mxu0
  %v355 = vadd.f32 %v74, %v354
  %v356 = vpop.f32.mrb[0].mxu0
  %357 = vmatprep.mubr.bf16.mxu0 0
  %358 = vmatmul.mubr.bf16.gmra.mrb[0].mxu0 %v218
  %v359 = vpop.f32.mrb[0].mxu0
  %v360 = vadd.f32 %v74, %v359
  %v361 = vpop.f32.mrb[0].mxu0
  %v362 = vpop.f32.mrb[0].mxu0
  %v363 = vadd.f32 %v74, %v362
  %v364 = vpop.f32.mrb[0].mxu0
  %365 = vmatprep.mubr.bf16.mxu0 0
  %366 = vmatmul.mubr.bf16.gmra.mrb[0].mxu0 %v221
  %v367 = vpop.f32.mrb[0].mxu0
  %v368 = vadd.f32 %v74, %v367
  %v369 = vpop.f32.mrb[0].mxu0
  %v370 = vpop.f32.mrb[0].mxu0
  %v371 = vadd.f32 %v74, %v370
  %v372 = vpop.f32.mrb[0].mxu0
  %373 = vmatprep.mubr.bf16.mxu0 0
  %374 = vmatmul.mubr.bf16.gmra.mrb[0].mxu0 %v224
  %v375 = vpop.f32.mrb[0].mxu0
  %v376 = vadd.f32 %v74, %v375
  %v377 = vpop.f32.mrb[0].mxu0
  %v378 = vpop.f32.mrb[0].mxu0
  %v379 = vadd.f32 %v74, %v378
  %v380 = vpop.f32.mrb[0].mxu0
  %381 = vmatprep.mubr.bf16.mxu0 0
  %382 = vmatmul.mubr.bf16.gmra.mrb[0].mxu0 %v227
  %v383 = vpop.f32.mrb[0].mxu0
  %v384 = vadd.f32 %v74, %v383
  %v385 = vpop.f32.mrb[0].mxu0
  %v386 = vpop.f32.mrb[0].mxu0
  %v387 = vadd.f32 %v74, %v386
  %v388 = vpop.f32.mrb[0].mxu0
  %389 = vdwg.mxu0
  %vm390 = vcmp.gt.f32.partialorder %v264, 0.0
  %vm391 = vcmp.gt.f32.partialorder %v267, 0.0
  %vm392 = vcmp.gt.f32.partialorder %v272, 0.0
  %vm393 = vcmp.gt.f32.partialorder %v275, 0.0
  %vm394 = vcmp.gt.f32.partialorder %v280, 0.0
  %vm395 = vcmp.gt.f32.partialorder %v283, 0.0
  %vm396 = vcmp.gt.f32.partialorder %v288, 0.0
  %vm397 = vcmp.gt.f32.partialorder %v291, 0.0
  %vm398 = vcmp.gt.f32.partialorder %v296, 0.0
  %vm399 = vcmp.gt.f32.partialorder %v299, 0.0
  %vm400 = vcmp.gt.f32.partialorder %v304, 0.0
  %vm401 = vcmp.gt.f32.partialorder %v307, 0.0
  %vm402 = vcmp.gt.f32.partialorder %v312, 0.0
  %vm403 = vcmp.gt.f32.partialorder %v315, 0.0
  %vm404 = vcmp.gt.f32.partialorder %v320, 0.0
  %vm405 = vcmp.gt.f32.partialorder %v323, 0.0
  %vm406 = vcmp.gt.f32.partialorder %v328, 0.0
  %vm407 = vcmp.gt.f32.partialorder %v331, 0.0
  %vm408 = vcmp.gt.f32.partialorder %v336, 0.0
  %vm409 = vcmp.gt.f32.partialorder %v339, 0.0
  %vm410 = vcmp.gt.f32.partialorder %v344, 0.0
  %vm411 = vcmp.gt.f32.partialorder %v347, 0.0
  %vm412 = vcmp.gt.f32.partialorder %v352, 0.0
  %vm413 = vcmp.gt.f32.partialorder %v355, 0.0
  %vm414 = vcmp.gt.f32.partialorder %v360, 0.0
  %vm415 = vcmp.gt.f32.partialorder %v363, 0.0
  %vm416 = vcmp.gt.f32.partialorder %v368, 0.0
  %vm417 = vcmp.gt.f32.partialorder %v371, 0.0
  %vm418 = vcmp.gt.f32.partialorder %v376, 0.0
  %vm419 = vcmp.gt.f32.partialorder %v379, 0.0
  %vm420 = vcmp.gt.f32.partialorder %v384, 0.0
  %vm421 = vcmp.gt.f32.partialorder %v387, 0.0
  %v422 = vmul.f32 %v264, 0.2
  %v423 = vmul.f32 %v267, 0.2
  %v424 = vmul.f32 %v272, 0.2
  %v425 = vmul.f32 %v275, 0.2
  %v426 = vmul.f32 %v280, 0.2
  %v427 = vmul.f32 %v283, 0.2
  %v428 = vmul.f32 %v288, 0.2
  %v429 = vmul.f32 %v291, 0.2
  %v430 = vmul.f32 %v296, 0.2
  %v431 = vmul.f32 %v299, 0.2
  %v432 = vmul.f32 %v304, 0.2
  %v433 = vmul.f32 %v307, 0.2
  %v434 = vmul.f32 %v312, 0.2
  %v435 = vmul.f32 %v315, 0.2
  %v436 = vmul.f32 %v320, 0.2
  %v437 = vmul.f32 %v323, 0.2
  %v438 = vmul.f32 %v328, 0.2
  %v439 = vmul.f32 %v331, 0.2
  %v440 = vmul.f32 %v336, 0.2
  %v441 = vmul.f32 %v339, 0.2
  %v442 = vmul.f32 %v344, 0.2
  %v443 = vmul.f32 %v347, 0.2
  %v444 = vmul.f32 %v352, 0.2
  %v445 = vmul.f32 %v355, 0.2
  %v446 = vmul.f32 %v360, 0.2
  %v447 = vmul.f32 %v363, 0.2
  %v448 = vmul.f32 %v368, 0.2
  %v449 = vmul.f32 %v371, 0.2
  %v450 = vmul.f32 %v376, 0.2
  %v451 = vmul.f32 %v379, 0.2
  %v452 = vmul.f32 %v384, 0.2
  %v453 = vmul.f32 %v387, 0.2
  %v454 = vsel %vm390, %v264, %v422
  %v455 = vsel %vm391, %v267, %v423
  %v456 = vsel %vm392, %v272, %v424
  %v457 = vsel %vm393, %v275, %v425
  %v458 = vsel %vm394, %v280, %v426
  %v459 = vsel %vm395, %v283, %v427
  %v460 = vsel %vm396, %v288, %v428
  %v461 = vsel %vm397, %v291, %v429
  %v462 = vsel %vm398, %v296, %v430
  %v463 = vsel %vm399, %v299, %v431
  %v464 = vsel %vm400, %v304, %v432
  %v465 = vsel %vm401, %v307, %v433
  %v466 = vsel %vm402, %v312, %v434
  %v467 = vsel %vm403, %v315, %v435
  %v468 = vsel %vm404, %v320, %v436
  %v469 = vsel %vm405, %v323, %v437
  %v470 = vsel %vm406, %v328, %v438
  %v471 = vsel %vm407, %v331, %v439
  %v472 = vsel %vm408, %v336, %v440
  %v473 = vsel %vm409, %v339, %v441
  %v474 = vsel %vm410, %v344, %v442
  %v475 = vsel %vm411, %v347, %v443
  %v476 = vsel %vm412, %v352, %v444
  %v477 = vsel %vm413, %v355, %v445
  %v478 = vsel %vm414, %v360, %v446
  %v479 = vsel %vm415, %v363, %v447
  %v480 = vsel %vm416, %v368, %v448
  %v481 = vsel %vm417, %v371, %v449
  %v482 = vsel %vm418, %v376, %v450
  %v483 = vsel %vm419, %v379, %v451
  %v484 = vsel %vm420, %v384, %v452
  %v485 = vsel %vm421, %v387, %v453
  %v486 = vpack.c.bf16 %v455, %v454
  %v487 = vpack.c.bf16 %v457, %v456
  %v488 = vpack.c.bf16 %v459, %v458
  %v489 = vpack.c.bf16 %v461, %v460
  %v490 = vpack.c.bf16 %v463, %v462
  %v491 = vpack.c.bf16 %v465, %v464
  %v492 = vpack.c.bf16 %v467, %v466
  %v493 = vpack.c.bf16 %v469, %v468
  %v494 = vpack.c.bf16 %v471, %v470
  %v495 = vpack.c.bf16 %v473, %v472
  %v496 = vpack.c.bf16 %v475, %v474
  %v497 = vpack.c.bf16 %v477, %v476
  %v498 = vpack.c.bf16 %v479, %v478
  %v499 = vpack.c.bf16 %v481, %v480
  %v500 = vpack.c.bf16 %v483, %v482
  %v501 = vpack.c.bf16 %v485, %v484
  %v502 = vld [vmem:[%s3] sm:$0xf]
  %v503 = vld [vmem:[%s3 + $0x4] sm:$0xf]
  %v504 = vld [vmem:[%s3 + $0x8] sm:$0xf]
  %v505 = vld [vmem:[%s3 + $0xc] sm:$0xf]
  %v506 = vld [vmem:[%s3 + $0x10] sm:$0xf]
  %v507 = vld [vmem:[%s3 + $0x14] sm:$0xf]
  %v508 = vld [vmem:[%s3 + $0x18] sm:$0xf]
  %v509 = vld [vmem:[%s3 + $0x1c] sm:$0xf]
  %v510 = vld [vmem:[%s4] sm:$0x1]
  %v512 = vlaneseq
  %v513 = vshrl.u32 %v512, 7
  %v514 = vsub.s32 0, %v513
  %v515 = vrot.slane %v510, %v514
  %v525 = vunpack.c.l.b16 %v502
  %v526 = vunpack.c.l.b16 %v503
  %v527 = vunpack.c.l.b16 %v504
  %v528 = vunpack.c.l.b16 %v505
  %v529 = vunpack.c.l.b16 %v506
  %v530 = vunpack.c.l.b16 %v507
  %v531 = vunpack.c.l.b16 %v508
  %v532 = vunpack.c.l.b16 %v509
  %v533 = vpack.c.b16 %v526, %v525
  %v534 = vpack.c.b16 %v528, %v527
  %v535 = vpack.c.b16 %v530, %v529
  %v536 = vpack.c.b16 %v532, %v531
  %v542 = vsel %vm180, %v486, 0
  %v545 = vsel %vm180, %v487, 0
  %v548 = vsel %vm180, %v488, 0
  %v551 = vsel %vm180, %v489, 0
  %v554 = vsel %vm180, %v490, 0
  %v557 = vsel %vm180, %v491, 0
  %v560 = vsel %vm180, %v492, 0
  %v563 = vsel %vm180, %v493, 0
  %v566 = vsel %vm180, %v494, 0
  %v569 = vsel %vm180, %v495, 0
  %v572 = vsel %vm180, %v496, 0
  %v575 = vsel %vm180, %v497, 0
  %v578 = vsel %vm180, %v498, 0
  %v581 = vsel %vm180, %v499, 0
  %v584 = vsel %vm180, %v500, 0
  %v587 = vsel %vm180, %v501, 0
  %589 = vmatprep.subr.bf16.mxu0 0
  %590 = vmatpush1.bf16.msra.mxu0 %v533
  %591 = vmatprep.subr.bf16.mxu0 0
  %592 = vmatpush1.bf16.msra.mxu0 %v534
  %593 = vmatprep.subr.bf16.mxu0 0
  %594 = vmatpush1.bf16.msra.mxu0 %v535
  %595 = vmatprep.subr.bf16.mxu0 0
  %596 = vmatpush1.bf16.msra.mxu0 %v536
  %597 = vmatprep.subr.bf16.mxu0 0
  %598 = vmatpush1.bf16.msra.mxu0 0
  %599 = vmatprep.subr.bf16.mxu0 0
  %600 = vmatpush1.bf16.msra.mxu0 0
  %601 = vmatprep.subr.bf16.mxu0 0
  %602 = vmatpush1.bf16.msra.mxu0 0
  %603 = vmatprep.subr.bf16.mxu0 0
  %604 = vmatpush1.bf16.msra.mxu0 0
  %605 = vmatprep.subr.bf16.mxu0 0
  %606 = vmatpush1.bf16.msra.mxu0 0
  %607 = vmatprep.subr.bf16.mxu0 0
  %608 = vmatpush1.bf16.msra.mxu0 0
  %609 = vmatprep.subr.bf16.mxu0 0
  %610 = vmatpush1.bf16.msra.mxu0 0
  %611 = vmatprep.subr.bf16.mxu0 0
  %612 = vmatpush1.bf16.msra.mxu0 0
  %613 = vmatprep.subr.bf16.mxu0 0
  %614 = vmatpush1.bf16.msra.mxu0 0
  %615 = vmatprep.subr.bf16.mxu0 0
  %616 = vmatpush1.bf16.msra.mxu0 0
  %617 = vmatprep.subr.bf16.mxu0 0
  %618 = vmatpush1.bf16.msra.mxu0 0
  %619 = vmatprep.subr.bf16.mxu0 0
  %620 = vmatpush1.bf16.msra.mxu0 0
  %621 = vmatprep.mubr.bf16.mxu0 0
  %622 = vmatmul.mubr.bf16.gmra.mrb[0].mxu0 %v542
  %v623 = vpop.f32.mrb[0].mxu0
  %v624 = vadd.f32 %v515, %v623
  %v625 = vpop.f32.mrb[0].mxu0
  %v626 = vpop.f32.mrb[0].mxu0
  %v627 = vadd.f32 %v515, %v626
  %v628 = vpop.f32.mrb[0].mxu0
  %629 = vmatprep.mubr.bf16.mxu0 0
  %630 = vmatmul.mubr.bf16.gmra.mrb[0].mxu0 %v545
  %v631 = vpop.f32.mrb[0].mxu0
  %v632 = vadd.f32 %v515, %v631
  %v633 = vpop.f32.mrb[0].mxu0
  %v634 = vpop.f32.mrb[0].mxu0
  %v635 = vadd.f32 %v515, %v634
  %v636 = vpop.f32.mrb[0].mxu0
  %637 = vmatprep.mubr.bf16.mxu0 0
  %638 = vmatmul.mubr.bf16.gmra.mrb[0].mxu0 %v548
  %v639 = vpop.f32.mrb[0].mxu0
  %v640 = vadd.f32 %v515, %v639
  %v641 = vpop.f32.mrb[0].mxu0
  %v642 = vpop.f32.mrb[0].mxu0
  %v643 = vadd.f32 %v515, %v642
  %v644 = vpop.f32.mrb[0].mxu0
  %645 = vmatprep.mubr.bf16.mxu0 0
  %646 = vmatmul.mubr.bf16.gmra.mrb[0].mxu0 %v551
  %v647 = vpop.f32.mrb[0].mxu0
  %v648 = vadd.f32 %v515, %v647
  %v649 = vpop.f32.mrb[0].mxu0
  %v650 = vpop.f32.mrb[0].mxu0
  %v651 = vadd.f32 %v515, %v650
  %v652 = vpop.f32.mrb[0].mxu0
  %653 = vmatprep.mubr.bf16.mxu0 0
  %654 = vmatmul.mubr.bf16.gmra.mrb[0].mxu0 %v554
  %v655 = vpop.f32.mrb[0].mxu0
  %v656 = vadd.f32 %v515, %v655
  %v657 = vpop.f32.mrb[0].mxu0
  %v658 = vpop.f32.mrb[0].mxu0
  %v659 = vadd.f32 %v515, %v658
  %v660 = vpop.f32.mrb[0].mxu0
  %661 = vmatprep.mubr.bf16.mxu0 0
  %662 = vmatmul.mubr.bf16.gmra.mrb[0].mxu0 %v557
  %v663 = vpop.f32.mrb[0].mxu0
  %v664 = vadd.f32 %v515, %v663
  %v665 = vpop.f32.mrb[0].mxu0
  %v666 = vpop.f32.mrb[0].mxu0
  %v667 = vadd.f32 %v515, %v666
  %v668 = vpop.f32.mrb[0].mxu0
  %669 = vmatprep.mubr.bf16.mxu0 0
  %670 = vmatmul.mubr.bf16.gmra.mrb[0].mxu0 %v560
  %v671 = vpop.f32.mrb[0].mxu0
  %v672 = vadd.f32 %v515, %v671
  %v673 = vpop.f32.mrb[0].mxu0
  %v674 = vpop.f32.mrb[0].mxu0
  %v675 = vadd.f32 %v515, %v674
  %v676 = vpop.f32.mrb[0].mxu0
  %677 = vmatprep.mubr.bf16.mxu0 0
  %678 = vmatmul.mubr.bf16.gmra.mrb[0].mxu0 %v563
  %v679 = vpop.f32.mrb[0].mxu0
  %v680 = vadd.f32 %v515, %v679
  %v681 = vpop.f32.mrb[0].mxu0
  %v682 = vpop.f32.mrb[0].mxu0
  %v683 = vadd.f32 %v515, %v682
  %v684 = vpop.f32.mrb[0].mxu0
  %685 = vmatprep.mubr.bf16.mxu0 0
  %686 = vmatmul.mubr.bf16.gmra.mrb[0].mxu0 %v566
  %v687 = vpop.f32.mrb[0].mxu0
  %v688 = vadd.f32 %v515, %v687
  %v689 = vpop.f32.mrb[0].mxu0
  %v690 = vpop.f32.mrb[0].mxu0
  %v691 = vadd.f32 %v515, %v690
  %v692 = vpop.f32.mrb[0].mxu0
  %693 = vmatprep.mubr.bf16.mxu0 0
  %694 = vmatmul.mubr.bf16.gmra.mrb[0].mxu0 %v569
  %v695 = vpop.f32.mrb[0].mxu0
  %v696 = vadd.f32 %v515, %v695
  %v697 = vpop.f32.mrb[0].mxu0
  %v698 = vpop.f32.mrb[0].mxu0
  %v699 = vadd.f32 %v515, %v698
  %v700 = vpop.f32.mrb[0].mxu0
  %701 = vmatprep.mubr.bf16.mxu0 0
  %702 = vmatmul.mubr.bf16.gmra.mrb[0].mxu0 %v572
  %v703 = vpop.f32.mrb[0].mxu0
  %v704 = vadd.f32 %v515, %v703
  %v705 = vpop.f32.mrb[0].mxu0
  %v706 = vpop.f32.mrb[0].mxu0
  %v707 = vadd.f32 %v515, %v706
  %v708 = vpop.f32.mrb[0].mxu0
  %709 = vmatprep.mubr.bf16.mxu0 0
  %710 = vmatmul.mubr.bf16.gmra.mrb[0].mxu0 %v575
  %v711 = vpop.f32.mrb[0].mxu0
  %v712 = vadd.f32 %v515, %v711
  %v713 = vpop.f32.mrb[0].mxu0
  %v714 = vpop.f32.mrb[0].mxu0
  %v715 = vadd.f32 %v515, %v714
  %v716 = vpop.f32.mrb[0].mxu0
  %717 = vmatprep.mubr.bf16.mxu0 0
  %718 = vmatmul.mubr.bf16.gmra.mrb[0].mxu0 %v578
  %v719 = vpop.f32.mrb[0].mxu0
  %v720 = vadd.f32 %v515, %v719
  %v721 = vpop.f32.mrb[0].mxu0
  %v722 = vpop.f32.mrb[0].mxu0
  %v723 = vadd.f32 %v515, %v722
  %v724 = vpop.f32.mrb[0].mxu0
  %725 = vmatprep.mubr.bf16.mxu0 0
  %726 = vmatmul.mubr.bf16.gmra.mrb[0].mxu0 %v581
  %v727 = vpop.f32.mrb[0].mxu0
  %v728 = vadd.f32 %v515, %v727
  %v729 = vpop.f32.mrb[0].mxu0
  %v730 = vpop.f32.mrb[0].mxu0
  %v731 = vadd.f32 %v515, %v730
  %v732 = vpop.f32.mrb[0].mxu0
  %733 = vmatprep.mubr.bf16.mxu0 0
  %734 = vmatmul.mubr.bf16.gmra.mrb[0].mxu0 %v584
  %v735 = vpop.f32.mrb[0].mxu0
  %v736 = vadd.f32 %v515, %v735
  %v737 = vpop.f32.mrb[0].mxu0
  %v738 = vpop.f32.mrb[0].mxu0
  %v739 = vadd.f32 %v515, %v738
  %v740 = vpop.f32.mrb[0].mxu0
  %741 = vmatprep.mubr.bf16.mxu0 0
  %742 = vmatmul.mubr.bf16.gmra.mrb[0].mxu0 %v587
  %v743 = vpop.f32.mrb[0].mxu0
  %v744 = vadd.f32 %v515, %v743
  %v745 = vpop.f32.mrb[0].mxu0
  %v746 = vpop.f32.mrb[0].mxu0
  %v747 = vadd.f32 %v515, %v746
  %v748 = vpop.f32.mrb[0].mxu0
  %749 = vdwg.mxu0
  %vm750 = vcmp.gt.f32.partialorder %v624, 0.0
  %vm751 = vcmp.gt.f32.partialorder %v627, 0.0
  %vm752 = vcmp.gt.f32.partialorder %v632, 0.0
  %vm753 = vcmp.gt.f32.partialorder %v635, 0.0
  %vm754 = vcmp.gt.f32.partialorder %v640, 0.0
  %vm755 = vcmp.gt.f32.partialorder %v643, 0.0
  %vm756 = vcmp.gt.f32.partialorder %v648, 0.0
  %vm757 = vcmp.gt.f32.partialorder %v651, 0.0
  %vm758 = vcmp.gt.f32.partialorder %v656, 0.0
  %vm759 = vcmp.gt.f32.partialorder %v659, 0.0
  %vm760 = vcmp.gt.f32.partialorder %v664, 0.0
  %vm761 = vcmp.gt.f32.partialorder %v667, 0.0
  %vm762 = vcmp.gt.f32.partialorder %v672, 0.0
  %vm763 = vcmp.gt.f32.partialorder %v675, 0.0
  %vm764 = vcmp.gt.f32.partialorder %v680, 0.0
  %vm765 = vcmp.gt.f32.partialorder %v683, 0.0
  %vm766 = vcmp.gt.f32.partialorder %v688, 0.0
  %vm767 = vcmp.gt.f32.partialorder %v691, 0.0
  %vm768 = vcmp.gt.f32.partialorder %v696, 0.0
  %vm769 = vcmp.gt.f32.partialorder %v699, 0.0
  %vm770 = vcmp.gt.f32.partialorder %v704, 0.0
  %vm771 = vcmp.gt.f32.partialorder %v707, 0.0
  %vm772 = vcmp.gt.f32.partialorder %v712, 0.0
  %vm773 = vcmp.gt.f32.partialorder %v715, 0.0
  %vm774 = vcmp.gt.f32.partialorder %v720, 0.0
  %vm775 = vcmp.gt.f32.partialorder %v723, 0.0
  %vm776 = vcmp.gt.f32.partialorder %v728, 0.0
  %vm777 = vcmp.gt.f32.partialorder %v731, 0.0
  %vm778 = vcmp.gt.f32.partialorder %v736, 0.0
  %vm779 = vcmp.gt.f32.partialorder %v739, 0.0
  %vm780 = vcmp.gt.f32.partialorder %v744, 0.0
  %vm781 = vcmp.gt.f32.partialorder %v747, 0.0
  %v782 = vmul.f32 %v624, 0.2
  %v783 = vmul.f32 %v627, 0.2
  %v784 = vmul.f32 %v632, 0.2
  %v785 = vmul.f32 %v635, 0.2
  %v786 = vmul.f32 %v640, 0.2
  %v787 = vmul.f32 %v643, 0.2
  %v788 = vmul.f32 %v648, 0.2
  %v789 = vmul.f32 %v651, 0.2
  %v790 = vmul.f32 %v656, 0.2
  %v791 = vmul.f32 %v659, 0.2
  %v792 = vmul.f32 %v664, 0.2
  %v793 = vmul.f32 %v667, 0.2
  %v794 = vmul.f32 %v672, 0.2
  %v795 = vmul.f32 %v675, 0.2
  %v796 = vmul.f32 %v680, 0.2
  %v797 = vmul.f32 %v683, 0.2
  %v798 = vmul.f32 %v688, 0.2
  %v799 = vmul.f32 %v691, 0.2
  %v800 = vmul.f32 %v696, 0.2
  %v801 = vmul.f32 %v699, 0.2
  %v802 = vmul.f32 %v704, 0.2
  %v803 = vmul.f32 %v707, 0.2
  %v804 = vmul.f32 %v712, 0.2
  %v805 = vmul.f32 %v715, 0.2
  %v806 = vmul.f32 %v720, 0.2
  %v807 = vmul.f32 %v723, 0.2
  %v808 = vmul.f32 %v728, 0.2
  %v809 = vmul.f32 %v731, 0.2
  %v810 = vmul.f32 %v736, 0.2
  %v811 = vmul.f32 %v739, 0.2
  %v812 = vmul.f32 %v744, 0.2
  %v813 = vmul.f32 %v747, 0.2
  %v814 = vsel %vm750, %v624, %v782
  %v815 = vsel %vm751, %v627, %v783
  %v816 = vsel %vm752, %v632, %v784
  %v817 = vsel %vm753, %v635, %v785
  %v818 = vsel %vm754, %v640, %v786
  %v819 = vsel %vm755, %v643, %v787
  %v820 = vsel %vm756, %v648, %v788
  %v821 = vsel %vm757, %v651, %v789
  %v822 = vsel %vm758, %v656, %v790
  %v823 = vsel %vm759, %v659, %v791
  %v824 = vsel %vm760, %v664, %v792
  %v825 = vsel %vm761, %v667, %v793
  %v826 = vsel %vm762, %v672, %v794
  %v827 = vsel %vm763, %v675, %v795
  %v828 = vsel %vm764, %v680, %v796
  %v829 = vsel %vm765, %v683, %v797
  %v830 = vsel %vm766, %v688, %v798
  %v831 = vsel %vm767, %v691, %v799
  %v832 = vsel %vm768, %v696, %v800
  %v833 = vsel %vm769, %v699, %v801
  %v834 = vsel %vm770, %v704, %v802
  %v835 = vsel %vm771, %v707, %v803
  %v836 = vsel %vm772, %v712, %v804
  %v837 = vsel %vm773, %v715, %v805
  %v838 = vsel %vm774, %v720, %v806
  %v839 = vsel %vm775, %v723, %v807
  %v840 = vsel %vm776, %v728, %v808
  %v841 = vsel %vm777, %v731, %v809
  %v842 = vsel %vm778, %v736, %v810
  %v843 = vsel %vm779, %v739, %v811
  %v844 = vsel %vm780, %v744, %v812
  %v845 = vsel %vm781, %v747, %v813
  %v846 = vld [vmem:[%s5] sm:$0x1]
  %v848 = vlaneseq
  %v849 = vshrl.u32 %v848, 7
  %v850 = vsub.s32 0, %v849
  %v851 = vrot.slane %v846, %v850
  %v853 = vmul.f32 %v814, %v851
  %v854 = vmul.f32 %v815, %v851
  %v855 = vmul.f32 %v816, %v851
  %v856 = vmul.f32 %v817, %v851
  %v857 = vmul.f32 %v818, %v851
  %v858 = vmul.f32 %v819, %v851
  %v859 = vmul.f32 %v820, %v851
  %v860 = vmul.f32 %v821, %v851
  %v861 = vmul.f32 %v822, %v851
  %v862 = vmul.f32 %v823, %v851
  %v863 = vmul.f32 %v824, %v851
  %v864 = vmul.f32 %v825, %v851
  %v865 = vmul.f32 %v826, %v851
  %v866 = vmul.f32 %v827, %v851
  %v867 = vmul.f32 %v828, %v851
  %v868 = vmul.f32 %v829, %v851
  %v869 = vmul.f32 %v830, %v851
  %v870 = vmul.f32 %v831, %v851
  %v871 = vmul.f32 %v832, %v851
  %v872 = vmul.f32 %v833, %v851
  %v873 = vmul.f32 %v834, %v851
  %v874 = vmul.f32 %v835, %v851
  %v875 = vmul.f32 %v836, %v851
  %v876 = vmul.f32 %v837, %v851
  %v877 = vmul.f32 %v838, %v851
  %v878 = vmul.f32 %v839, %v851
  %v879 = vmul.f32 %v840, %v851
  %v880 = vmul.f32 %v841, %v851
  %v881 = vmul.f32 %v842, %v851
  %v882 = vmul.f32 %v843, %v851
  %v883 = vmul.f32 %v844, %v851
  %v884 = vmul.f32 %v845, %v851
  %vm885 = vcmask 261120
  %v886 = vsel %vm885, %v853, 0.0
  %887 = vadd.xlane.f32.xlu0 %v886
  %v888 = vpop.xlane.xlu0 %887
  %v889 = vsel %vm885, %v854, 0.0
  %890 = vadd.xlane.f32.xlu0 %v889
  %v891 = vpop.xlane.xlu0 %890
  %v892 = vsel %vm885, %v855, 0.0
  %893 = vadd.xlane.f32.xlu0 %v892
  %v894 = vpop.xlane.xlu0 %893
  %v895 = vsel %vm885, %v856, 0.0
  %896 = vadd.xlane.f32.xlu0 %v895
  %v897 = vpop.xlane.xlu0 %896
  %v898 = vsel %vm885, %v857, 0.0
  %899 = vadd.xlane.f32.xlu0 %v898
  %v900 = vpop.xlane.xlu0 %899
  %v901 = vsel %vm885, %v858, 0.0
  %902 = vadd.xlane.f32.xlu0 %v901
  %v903 = vpop.xlane.xlu0 %902
  %v904 = vsel %vm885, %v859, 0.0
  %905 = vadd.xlane.f32.xlu0 %v904
  %v906 = vpop.xlane.xlu0 %905
  %v907 = vsel %vm885, %v860, 0.0
  %908 = vadd.xlane.f32.xlu0 %v907
  %v909 = vpop.xlane.xlu0 %908
  %v910 = vsel %vm885, %v861, 0.0
  %911 = vadd.xlane.f32.xlu0 %v910
  %v912 = vpop.xlane.xlu0 %911
  %v913 = vsel %vm885, %v862, 0.0
  %914 = vadd.xlane.f32.xlu0 %v913
  %v915 = vpop.xlane.xlu0 %914
  %v916 = vsel %vm885, %v863, 0.0
  %917 = vadd.xlane.f32.xlu0 %v916
  %v918 = vpop.xlane.xlu0 %917
  %v919 = vsel %vm885, %v864, 0.0
  %920 = vadd.xlane.f32.xlu0 %v919
  %v921 = vpop.xlane.xlu0 %920
  %v922 = vsel %vm885, %v865, 0.0
  %923 = vadd.xlane.f32.xlu0 %v922
  %v924 = vpop.xlane.xlu0 %923
  %v925 = vsel %vm885, %v866, 0.0
  %926 = vadd.xlane.f32.xlu0 %v925
  %v927 = vpop.xlane.xlu0 %926
  %v928 = vsel %vm885, %v867, 0.0
  %929 = vadd.xlane.f32.xlu0 %v928
  %v930 = vpop.xlane.xlu0 %929
  %v931 = vsel %vm885, %v868, 0.0
  %932 = vadd.xlane.f32.xlu0 %v931
  %v933 = vpop.xlane.xlu0 %932
  %v934 = vsel %vm885, %v869, 0.0
  %935 = vadd.xlane.f32.xlu0 %v934
  %v936 = vpop.xlane.xlu0 %935
  %v937 = vsel %vm885, %v870, 0.0
  %938 = vadd.xlane.f32.xlu0 %v937
  %v939 = vpop.xlane.xlu0 %938
  %v940 = vsel %vm885, %v871, 0.0
  %941 = vadd.xlane.f32.xlu0 %v940
  %v942 = vpop.xlane.xlu0 %941
  %v943 = vsel %vm885, %v872, 0.0
  %944 = vadd.xlane.f32.xlu0 %v943
  %v945 = vpop.xlane.xlu0 %944
  %v946 = vsel %vm885, %v873, 0.0
  %947 = vadd.xlane.f32.xlu0 %v946
  %v948 = vpop.xlane.xlu0 %947
  %v949 = vsel %vm885, %v874, 0.0
  %950 = vadd.xlane.f32.xlu0 %v949
  %v951 = vpop.xlane.xlu0 %950
  %v952 = vsel %vm885, %v875, 0.0
  %953 = vadd.xlane.f32.xlu0 %v952
  %v954 = vpop.xlane.xlu0 %953
  %v955 = vsel %vm885, %v876, 0.0
  %956 = vadd.xlane.f32.xlu0 %v955
  %v957 = vpop.xlane.xlu0 %956
  %v958 = vsel %vm885, %v877, 0.0
  %959 = vadd.xlane.f32.xlu0 %v958
  %v960 = vpop.xlane.xlu0 %959
  %v961 = vsel %vm885, %v878, 0.0
  %962 = vadd.xlane.f32.xlu0 %v961
  %v963 = vpop.xlane.xlu0 %962
  %v964 = vsel %vm885, %v879, 0.0
  %965 = vadd.xlane.f32.xlu0 %v964
  %v966 = vpop.xlane.xlu0 %965
  %v967 = vsel %vm885, %v880, 0.0
  %968 = vadd.xlane.f32.xlu0 %v967
  %v969 = vpop.xlane.xlu0 %968
  %v970 = vsel %vm885, %v881, 0.0
  %971 = vadd.xlane.f32.xlu0 %v970
  %v972 = vpop.xlane.xlu0 %971
  %v973 = vsel %vm885, %v882, 0.0
  %974 = vadd.xlane.f32.xlu0 %v973
  %v975 = vpop.xlane.xlu0 %974
  %v976 = vsel %vm885, %v883, 0.0
  %977 = vadd.xlane.f32.xlu0 %v976
  %v978 = vpop.xlane.xlu0 %977
  %v979 = vsel %vm885, %v884, 0.0
  %980 = vadd.xlane.f32.xlu0 %v979
  %v981 = vpop.xlane.xlu0 %980
  %v982 = vld [vmem:[#allocation2] sm:$0x1]
  %984 = vset.pattern.permute.xlu0 0
  %985 = vperm.xlu0 %984, %v982
  %v986 = vpop.permute.xlu0 %985
  %v988 = vlaneseq
  %v989 = vshrl.u32 %v988, 7
  %v990 = vsub.s32 0, %v989
  %v991 = vrot.slane %v986, %v990
  %v992 = vadd.f32 %v888, %v991
  %v993 = vadd.f32 %v891, %v991
  %v994 = vadd.f32 %v894, %v991
  %v995 = vadd.f32 %v897, %v991
  %v996 = vadd.f32 %v900, %v991
  %v997 = vadd.f32 %v903, %v991
  %v998 = vadd.f32 %v906, %v991
  %v999 = vadd.f32 %v909, %v991
  %v1000 = vadd.f32 %v912, %v991
  %v1001 = vadd.f32 %v915, %v991
  %v1002 = vadd.f32 %v918, %v991
  %v1003 = vadd.f32 %v921, %v991
  %v1004 = vadd.f32 %v924, %v991
  %v1005 = vadd.f32 %v927, %v991
  %v1006 = vadd.f32 %v930, %v991
  %v1007 = vadd.f32 %v933, %v991
  %v1008 = vadd.f32 %v936, %v991
  %v1009 = vadd.f32 %v939, %v991
  %v1010 = vadd.f32 %v942, %v991
  %v1011 = vadd.f32 %v945, %v991
  %v1012 = vadd.f32 %v948, %v991
  %v1013 = vadd.f32 %v951, %v991
  %v1014 = vadd.f32 %v954, %v991
  %v1015 = vadd.f32 %v957, %v991
  %v1016 = vadd.f32 %v960, %v991
  %v1017 = vadd.f32 %v963, %v991
  %v1018 = vadd.f32 %v966, %v991
  %v1019 = vadd.f32 %v969, %v991
  %v1020 = vadd.f32 %v972, %v991
  %v1021 = vadd.f32 %v975, %v991
  %v1022 = vadd.f32 %v978, %v991
  %v1023 = vadd.f32 %v981, %v991
  %v1056 = vlaneseq
  %v1057 = vshrl.u32 %v1056, 7
  %v1058 = vsub.s32 0, %v1057
  %v1059 = vrot.slane %v992, %v1058
  %v1060 = vlaneseq
  %v1061 = vshrl.u32 %v1060, 7
  %v1062 = vsub.s32 1, %v1061
  %v1063 = vrot.slane %v992, %v1062
  %v1064 = vlaneseq
  %v1065 = vshrl.u32 %v1064, 7
  %v1066 = vsub.s32 2, %v1065
  %v1067 = vrot.slane %v992, %v1066
  %v1068 = vlaneseq
  %v1069 = vshrl.u32 %v1068, 7
  %v1070 = vsub.s32 3, %v1069
  %v1071 = vrot.slane %v992, %v1070
  %v1072 = vlaneseq
  %v1073 = vshrl.u32 %v1072, 7
  %v1074 = vsub.s32 4, %v1073
  %v1075 = vrot.slane %v992, %v1074
  %v1076 = vlaneseq
  %v1077 = vshrl.u32 %v1076, 7
  %v1078 = vsub.s32 5, %v1077
  %v1079 = vrot.slane %v992, %v1078
  %v1080 = vlaneseq
  %v1081 = vshrl.u32 %v1080, 7
  %v1082 = vsub.s32 6, %v1081
  %v1083 = vrot.slane %v992, %v1082
  %v1084 = vlaneseq
  %v1085 = vshrl.u32 %v1084, 7
  %v1086 = vsub.s32 7, %v1085
  %v1087 = vrot.slane %v992, %v1086
  %v1088 = vlaneseq
  %v1089 = vshrl.u32 %v1088, 7
  %v1090 = vsub.s32 0, %v1089
  %v1091 = vrot.slane %v993, %v1090
  %v1092 = vlaneseq
  %v1093 = vshrl.u32 %v1092, 7
  %v1094 = vsub.s32 1, %v1093
  %v1095 = vrot.slane %v993, %v1094
  %v1096 = vlaneseq
  %v1097 = vshrl.u32 %v1096, 7
  %v1098 = vsub.s32 2, %v1097
  %v1099 = vrot.slane %v993, %v1098
  %v1100 = vlaneseq
  %v1101 = vshrl.u32 %v1100, 7
  %v1102 = vsub.s32 3, %v1101
  %v1103 = vrot.slane %v993, %v1102
  %v1104 = vlaneseq
  %v1105 = vshrl.u32 %v1104, 7
  %v1106 = vsub.s32 4, %v1105
  %v1107 = vrot.slane %v993, %v1106
  %v1108 = vlaneseq
  %v1109 = vshrl.u32 %v1108, 7
  %v1110 = vsub.s32 5, %v1109
  %v1111 = vrot.slane %v993, %v1110
  %v1112 = vlaneseq
  %v1113 = vshrl.u32 %v1112, 7
  %v1114 = vsub.s32 6, %v1113
  %v1115 = vrot.slane %v993, %v1114
  %v1116 = vlaneseq
  %v1117 = vshrl.u32 %v1116, 7
  %v1118 = vsub.s32 7, %v1117
  %v1119 = vrot.slane %v993, %v1118
  %v1120 = vlaneseq
  %v1121 = vshrl.u32 %v1120, 7
  %v1122 = vsub.s32 0, %v1121
  %v1123 = vrot.slane %v994, %v1122
  %v1124 = vlaneseq
  %v1125 = vshrl.u32 %v1124, 7
  %v1126 = vsub.s32 1, %v1125
  %v1127 = vrot.slane %v994, %v1126
  %v1128 = vlaneseq
  %v1129 = vshrl.u32 %v1128, 7
  %v1130 = vsub.s32 2, %v1129
  %v1131 = vrot.slane %v994, %v1130
  %v1132 = vlaneseq
  %v1133 = vshrl.u32 %v1132, 7
  %v1134 = vsub.s32 3, %v1133
  %v1135 = vrot.slane %v994, %v1134
  %v1136 = vlaneseq
  %v1137 = vshrl.u32 %v1136, 7
  %v1138 = vsub.s32 4, %v1137
  %v1139 = vrot.slane %v994, %v1138
  %v1140 = vlaneseq
  %v1141 = vshrl.u32 %v1140, 7
  %v1142 = vsub.s32 5, %v1141
  %v1143 = vrot.slane %v994, %v1142
  %v1144 = vlaneseq
  %v1145 = vshrl.u32 %v1144, 7
  %v1146 = vsub.s32 6, %v1145
  %v1147 = vrot.slane %v994, %v1146
  %v1148 = vlaneseq
  %v1149 = vshrl.u32 %v1148, 7
  %v1150 = vsub.s32 7, %v1149
  %v1151 = vrot.slane %v994, %v1150
  %v1152 = vlaneseq
  %v1153 = vshrl.u32 %v1152, 7
  %v1154 = vsub.s32 0, %v1153
  %v1155 = vrot.slane %v995, %v1154
  %v1156 = vlaneseq
  %v1157 = vshrl.u32 %v1156, 7
  %v1158 = vsub.s32 1, %v1157
  %v1159 = vrot.slane %v995, %v1158
  %v1160 = vlaneseq
  %v1161 = vshrl.u32 %v1160, 7
  %v1162 = vsub.s32 2, %v1161
  %v1163 = vrot.slane %v995, %v1162
  %v1164 = vlaneseq
  %v1165 = vshrl.u32 %v1164, 7
  %v1166 = vsub.s32 3, %v1165
  %v1167 = vrot.slane %v995, %v1166
  %v1168 = vlaneseq
  %v1169 = vshrl.u32 %v1168, 7
  %v1170 = vsub.s32 4, %v1169
  %v1171 = vrot.slane %v995, %v1170
  %v1172 = vlaneseq
  %v1173 = vshrl.u32 %v1172, 7
  %v1174 = vsub.s32 5, %v1173
  %v1175 = vrot.slane %v995, %v1174
  %v1176 = vlaneseq
  %v1177 = vshrl.u32 %v1176, 7
  %v1178 = vsub.s32 6, %v1177
  %v1179 = vrot.slane %v995, %v1178
  %v1180 = vlaneseq
  %v1181 = vshrl.u32 %v1180, 7
  %v1182 = vsub.s32 7, %v1181
  %v1183 = vrot.slane %v995, %v1182
  %v1184 = vlaneseq
  %v1185 = vshrl.u32 %v1184, 7
  %v1186 = vsub.s32 0, %v1185
  %v1187 = vrot.slane %v996, %v1186
  %v1188 = vlaneseq
  %v1189 = vshrl.u32 %v1188, 7
  %v1190 = vsub.s32 1, %v1189
  %v1191 = vrot.slane %v996, %v1190
  %v1192 = vlaneseq
  %v1193 = vshrl.u32 %v1192, 7
  %v1194 = vsub.s32 2, %v1193
  %v1195 = vrot.slane %v996, %v1194
  %v1196 = vlaneseq
  %v1197 = vshrl.u32 %v1196, 7
  %v1198 = vsub.s32 3, %v1197
  %v1199 = vrot.slane %v996, %v1198
  %v1200 = vlaneseq
  %v1201 = vshrl.u32 %v1200, 7
  %v1202 = vsub.s32 4, %v1201
  %v1203 = vrot.slane %v996, %v1202
  %v1204 = vlaneseq
  %v1205 = vshrl.u32 %v1204, 7
  %v1206 = vsub.s32 5, %v1205
  %v1207 = vrot.slane %v996, %v1206
  %v1208 = vlaneseq
  %v1209 = vshrl.u32 %v1208, 7
  %v1210 = vsub.s32 6, %v1209
  %v1211 = vrot.slane %v996, %v1210
  %v1212 = vlaneseq
  %v1213 = vshrl.u32 %v1212, 7
  %v1214 = vsub.s32 7, %v1213
  %v1215 = vrot.slane %v996, %v1214
  %v1216 = vlaneseq
  %v1217 = vshrl.u32 %v1216, 7
  %v1218 = vsub.s32 0, %v1217
  %v1219 = vrot.slane %v997, %v1218
  %v1220 = vlaneseq
  %v1221 = vshrl.u32 %v1220, 7
  %v1222 = vsub.s32 1, %v1221
  %v1223 = vrot.slane %v997, %v1222
  %v1224 = vlaneseq
  %v1225 = vshrl.u32 %v1224, 7
  %v1226 = vsub.s32 2, %v1225
  %v1227 = vrot.slane %v997, %v1226
  %v1228 = vlaneseq
  %v1229 = vshrl.u32 %v1228, 7
  %v1230 = vsub.s32 3, %v1229
  %v1231 = vrot.slane %v997, %v1230
  %v1232 = vlaneseq
  %v1233 = vshrl.u32 %v1232, 7
  %v1234 = vsub.s32 4, %v1233
  %v1235 = vrot.slane %v997, %v1234
  %v1236 = vlaneseq
  %v1237 = vshrl.u32 %v1236, 7
  %v1238 = vsub.s32 5, %v1237
  %v1239 = vrot.slane %v997, %v1238
  %v1240 = vlaneseq
  %v1241 = vshrl.u32 %v1240, 7
  %v1242 = vsub.s32 6, %v1241
  %v1243 = vrot.slane %v997, %v1242
  %v1244 = vlaneseq
  %v1245 = vshrl.u32 %v1244, 7
  %v1246 = vsub.s32 7, %v1245
  %v1247 = vrot.slane %v997, %v1246
  %v1248 = vlaneseq
  %v1249 = vshrl.u32 %v1248, 7
  %v1250 = vsub.s32 0, %v1249
  %v1251 = vrot.slane %v998, %v1250
  %v1252 = vlaneseq
  %v1253 = vshrl.u32 %v1252, 7
  %v1254 = vsub.s32 1, %v1253
  %v1255 = vrot.slane %v998, %v1254
  %v1256 = vlaneseq
  %v1257 = vshrl.u32 %v1256, 7
  %v1258 = vsub.s32 2, %v1257
  %v1259 = vrot.slane %v998, %v1258
  %v1260 = vlaneseq
  %v1261 = vshrl.u32 %v1260, 7
  %v1262 = vsub.s32 3, %v1261
  %v1263 = vrot.slane %v998, %v1262
  %v1264 = vlaneseq
  %v1265 = vshrl.u32 %v1264, 7
  %v1266 = vsub.s32 4, %v1265
  %v1267 = vrot.slane %v998, %v1266
  %v1268 = vlaneseq
  %v1269 = vshrl.u32 %v1268, 7
  %v1270 = vsub.s32 5, %v1269
  %v1271 = vrot.slane %v998, %v1270
  %v1272 = vlaneseq
  %v1273 = vshrl.u32 %v1272, 7
  %v1274 = vsub.s32 6, %v1273
  %v1275 = vrot.slane %v998, %v1274
  %v1276 = vlaneseq
  %v1277 = vshrl.u32 %v1276, 7
  %v1278 = vsub.s32 7, %v1277
  %v1279 = vrot.slane %v998, %v1278
  %v1280 = vlaneseq
  %v1281 = vshrl.u32 %v1280, 7
  %v1282 = vsub.s32 0, %v1281
  %v1283 = vrot.slane %v999, %v1282
  %v1284 = vlaneseq
  %v1285 = vshrl.u32 %v1284, 7
  %v1286 = vsub.s32 1, %v1285
  %v1287 = vrot.slane %v999, %v1286
  %v1288 = vlaneseq
  %v1289 = vshrl.u32 %v1288, 7
  %v1290 = vsub.s32 2, %v1289
  %v1291 = vrot.slane %v999, %v1290
  %v1292 = vlaneseq
  %v1293 = vshrl.u32 %v1292, 7
  %v1294 = vsub.s32 3, %v1293
  %v1295 = vrot.slane %v999, %v1294
  %v1296 = vlaneseq
  %v1297 = vshrl.u32 %v1296, 7
  %v1298 = vsub.s32 4, %v1297
  %v1299 = vrot.slane %v999, %v1298
  %v1300 = vlaneseq
  %v1301 = vshrl.u32 %v1300, 7
  %v1302 = vsub.s32 5, %v1301
  %v1303 = vrot.slane %v999, %v1302
  %v1304 = vlaneseq
  %v1305 = vshrl.u32 %v1304, 7
  %v1306 = vsub.s32 6, %v1305
  %v1307 = vrot.slane %v999, %v1306
  %v1308 = vlaneseq
  %v1309 = vshrl.u32 %v1308, 7
  %v1310 = vsub.s32 7, %v1309
  %v1311 = vrot.slane %v999, %v1310
  %v1312 = vlaneseq
  %v1313 = vshrl.u32 %v1312, 7
  %v1314 = vsub.s32 0, %v1313
  %v1315 = vrot.slane %v1000, %v1314
  %v1316 = vlaneseq
  %v1317 = vshrl.u32 %v1316, 7
  %v1318 = vsub.s32 1, %v1317
  %v1319 = vrot.slane %v1000, %v1318
  %v1320 = vlaneseq
  %v1321 = vshrl.u32 %v1320, 7
  %v1322 = vsub.s32 2, %v1321
  %v1323 = vrot.slane %v1000, %v1322
  %v1324 = vlaneseq
  %v1325 = vshrl.u32 %v1324, 7
  %v1326 = vsub.s32 3, %v1325
  %v1327 = vrot.slane %v1000, %v1326
  %v1328 = vlaneseq
  %v1329 = vshrl.u32 %v1328, 7
  %v1330 = vsub.s32 4, %v1329
  %v1331 = vrot.slane %v1000, %v1330
  %v1332 = vlaneseq
  %v1333 = vshrl.u32 %v1332, 7
  %v1334 = vsub.s32 5, %v1333
  %v1335 = vrot.slane %v1000, %v1334
  %v1336 = vlaneseq
  %v1337 = vshrl.u32 %v1336, 7
  %v1338 = vsub.s32 6, %v1337
  %v1339 = vrot.slane %v1000, %v1338
  %v1340 = vlaneseq
  %v1341 = vshrl.u32 %v1340, 7
  %v1342 = vsub.s32 7, %v1341
  %v1343 = vrot.slane %v1000, %v1342
  %v1344 = vlaneseq
  %v1345 = vshrl.u32 %v1344, 7
  %v1346 = vsub.s32 0, %v1345
  %v1347 = vrot.slane %v1001, %v1346
  %v1348 = vlaneseq
  %v1349 = vshrl.u32 %v1348, 7
  %v1350 = vsub.s32 1, %v1349
  %v1351 = vrot.slane %v1001, %v1350
  %v1352 = vlaneseq
  %v1353 = vshrl.u32 %v1352, 7
  %v1354 = vsub.s32 2, %v1353
  %v1355 = vrot.slane %v1001, %v1354
  %v1356 = vlaneseq
  %v1357 = vshrl.u32 %v1356, 7
  %v1358 = vsub.s32 3, %v1357
  %v1359 = vrot.slane %v1001, %v1358
  %v1360 = vlaneseq
  %v1361 = vshrl.u32 %v1360, 7
  %v1362 = vsub.s32 4, %v1361
  %v1363 = vrot.slane %v1001, %v1362
  %v1364 = vlaneseq
  %v1365 = vshrl.u32 %v1364, 7
  %v1366 = vsub.s32 5, %v1365
  %v1367 = vrot.slane %v1001, %v1366
  %v1368 = vlaneseq
  %v1369 = vshrl.u32 %v1368, 7
  %v1370 = vsub.s32 6, %v1369
  %v1371 = vrot.slane %v1001, %v1370
  %v1372 = vlaneseq
  %v1373 = vshrl.u32 %v1372, 7
  %v1374 = vsub.s32 7, %v1373
  %v1375 = vrot.slane %v1001, %v1374
  %v1376 = vlaneseq
  %v1377 = vshrl.u32 %v1376, 7
  %v1378 = vsub.s32 0, %v1377
  %v1379 = vrot.slane %v1002, %v1378
  %v1380 = vlaneseq
  %v1381 = vshrl.u32 %v1380, 7
  %v1382 = vsub.s32 1, %v1381
  %v1383 = vrot.slane %v1002, %v1382
  %v1384 = vlaneseq
  %v1385 = vshrl.u32 %v1384, 7
  %v1386 = vsub.s32 2, %v1385
  %v1387 = vrot.slane %v1002, %v1386
  %v1388 = vlaneseq
  %v1389 = vshrl.u32 %v1388, 7
  %v1390 = vsub.s32 3, %v1389
  %v1391 = vrot.slane %v1002, %v1390
  %v1392 = vlaneseq
  %v1393 = vshrl.u32 %v1392, 7
  %v1394 = vsub.s32 4, %v1393
  %v1395 = vrot.slane %v1002, %v1394
  %v1396 = vlaneseq
  %v1397 = vshrl.u32 %v1396, 7
  %v1398 = vsub.s32 5, %v1397
  %v1399 = vrot.slane %v1002, %v1398
  %v1400 = vlaneseq
  %v1401 = vshrl.u32 %v1400, 7
  %v1402 = vsub.s32 6, %v1401
  %v1403 = vrot.slane %v1002, %v1402
  %v1404 = vlaneseq
  %v1405 = vshrl.u32 %v1404, 7
  %v1406 = vsub.s32 7, %v1405
  %v1407 = vrot.slane %v1002, %v1406
  %v1408 = vlaneseq
  %v1409 = vshrl.u32 %v1408, 7
  %v1410 = vsub.s32 0, %v1409
  %v1411 = vrot.slane %v1003, %v1410
  %v1412 = vlaneseq
  %v1413 = vshrl.u32 %v1412, 7
  %v1414 = vsub.s32 1, %v1413
  %v1415 = vrot.slane %v1003, %v1414
  %v1416 = vlaneseq
  %v1417 = vshrl.u32 %v1416, 7
  %v1418 = vsub.s32 2, %v1417
  %v1419 = vrot.slane %v1003, %v1418
  %v1420 = vlaneseq
  %v1421 = vshrl.u32 %v1420, 7
  %v1422 = vsub.s32 3, %v1421
  %v1423 = vrot.slane %v1003, %v1422
  %v1424 = vlaneseq
  %v1425 = vshrl.u32 %v1424, 7
  %v1426 = vsub.s32 4, %v1425
  %v1427 = vrot.slane %v1003, %v1426
  %v1428 = vlaneseq
  %v1429 = vshrl.u32 %v1428, 7
  %v1430 = vsub.s32 5, %v1429
  %v1431 = vrot.slane %v1003, %v1430
  %v1432 = vlaneseq
  %v1433 = vshrl.u32 %v1432, 7
  %v1434 = vsub.s32 6, %v1433
  %v1435 = vrot.slane %v1003, %v1434
  %v1436 = vlaneseq
  %v1437 = vshrl.u32 %v1436, 7
  %v1438 = vsub.s32 7, %v1437
  %v1439 = vrot.slane %v1003, %v1438
  %v1440 = vlaneseq
  %v1441 = vshrl.u32 %v1440, 7
  %v1442 = vsub.s32 0, %v1441
  %v1443 = vrot.slane %v1004, %v1442
  %v1444 = vlaneseq
  %v1445 = vshrl.u32 %v1444, 7
  %v1446 = vsub.s32 1, %v1445
  %v1447 = vrot.slane %v1004, %v1446
  %v1448 = vlaneseq
  %v1449 = vshrl.u32 %v1448, 7
  %v1450 = vsub.s32 2, %v1449
  %v1451 = vrot.slane %v1004, %v1450
  %v1452 = vlaneseq
  %v1453 = vshrl.u32 %v1452, 7
  %v1454 = vsub.s32 3, %v1453
  %v1455 = vrot.slane %v1004, %v1454
  %v1456 = vlaneseq
  %v1457 = vshrl.u32 %v1456, 7
  %v1458 = vsub.s32 4, %v1457
  %v1459 = vrot.slane %v1004, %v1458
  %v1460 = vlaneseq
  %v1461 = vshrl.u32 %v1460, 7
  %v1462 = vsub.s32 5, %v1461
  %v1463 = vrot.slane %v1004, %v1462
  %v1464 = vlaneseq
  %v1465 = vshrl.u32 %v1464, 7
  %v1466 = vsub.s32 6, %v1465
  %v1467 = vrot.slane %v1004, %v1466
  %v1468 = vlaneseq
  %v1469 = vshrl.u32 %v1468, 7
  %v1470 = vsub.s32 7, %v1469
  %v1471 = vrot.slane %v1004, %v1470
  %v1472 = vlaneseq
  %v1473 = vshrl.u32 %v1472, 7
  %v1474 = vsub.s32 0, %v1473
  %v1475 = vrot.slane %v1005, %v1474
  %v1476 = vlaneseq
  %v1477 = vshrl.u32 %v1476, 7
  %v1478 = vsub.s32 1, %v1477
  %v1479 = vrot.slane %v1005, %v1478
  %v1480 = vlaneseq
  %v1481 = vshrl.u32 %v1480, 7
  %v1482 = vsub.s32 2, %v1481
  %v1483 = vrot.slane %v1005, %v1482
  %v1484 = vlaneseq
  %v1485 = vshrl.u32 %v1484, 7
  %v1486 = vsub.s32 3, %v1485
  %v1487 = vrot.slane %v1005, %v1486
  %v1488 = vlaneseq
  %v1489 = vshrl.u32 %v1488, 7
  %v1490 = vsub.s32 4, %v1489
  %v1491 = vrot.slane %v1005, %v1490
  %v1492 = vlaneseq
  %v1493 = vshrl.u32 %v1492, 7
  %v1494 = vsub.s32 5, %v1493
  %v1495 = vrot.slane %v1005, %v1494
  %v1496 = vlaneseq
  %v1497 = vshrl.u32 %v1496, 7
  %v1498 = vsub.s32 6, %v1497
  %v1499 = vrot.slane %v1005, %v1498
  %v1500 = vlaneseq
  %v1501 = vshrl.u32 %v1500, 7
  %v1502 = vsub.s32 7, %v1501
  %v1503 = vrot.slane %v1005, %v1502
  %v1504 = vlaneseq
  %v1505 = vshrl.u32 %v1504, 7
  %v1506 = vsub.s32 0, %v1505
  %v1507 = vrot.slane %v1006, %v1506
  %v1508 = vlaneseq
  %v1509 = vshrl.u32 %v1508, 7
  %v1510 = vsub.s32 1, %v1509
  %v1511 = vrot.slane %v1006, %v1510
  %v1512 = vlaneseq
  %v1513 = vshrl.u32 %v1512, 7
  %v1514 = vsub.s32 2, %v1513
  %v1515 = vrot.slane %v1006, %v1514
  %v1516 = vlaneseq
  %v1517 = vshrl.u32 %v1516, 7
  %v1518 = vsub.s32 3, %v1517
  %v1519 = vrot.slane %v1006, %v1518
  %v1520 = vlaneseq
  %v1521 = vshrl.u32 %v1520, 7
  %v1522 = vsub.s32 4, %v1521
  %v1523 = vrot.slane %v1006, %v1522
  %v1524 = vlaneseq
  %v1525 = vshrl.u32 %v1524, 7
  %v1526 = vsub.s32 5, %v1525
  %v1527 = vrot.slane %v1006, %v1526
  %v1528 = vlaneseq
  %v1529 = vshrl.u32 %v1528, 7
  %v1530 = vsub.s32 6, %v1529
  %v1531 = vrot.slane %v1006, %v1530
  %v1532 = vlaneseq
  %v1533 = vshrl.u32 %v1532, 7
  %v1534 = vsub.s32 7, %v1533
  %v1535 = vrot.slane %v1006, %v1534
  %v1536 = vlaneseq
  %v1537 = vshrl.u32 %v1536, 7
  %v1538 = vsub.s32 0, %v1537
  %v1539 = vrot.slane %v1007, %v1538
  %v1540 = vlaneseq
  %v1541 = vshrl.u32 %v1540, 7
  %v1542 = vsub.s32 1, %v1541
  %v1543 = vrot.slane %v1007, %v1542
  %v1544 = vlaneseq
  %v1545 = vshrl.u32 %v1544, 7
  %v1546 = vsub.s32 2, %v1545
  %v1547 = vrot.slane %v1007, %v1546
  %v1548 = vlaneseq
  %v1549 = vshrl.u32 %v1548, 7
  %v1550 = vsub.s32 3, %v1549
  %v1551 = vrot.slane %v1007, %v1550
  %v1552 = vlaneseq
  %v1553 = vshrl.u32 %v1552, 7
  %v1554 = vsub.s32 4, %v1553
  %v1555 = vrot.slane %v1007, %v1554
  %v1556 = vlaneseq
  %v1557 = vshrl.u32 %v1556, 7
  %v1558 = vsub.s32 5, %v1557
  %v1559 = vrot.slane %v1007, %v1558
  %v1560 = vlaneseq
  %v1561 = vshrl.u32 %v1560, 7
  %v1562 = vsub.s32 6, %v1561
  %v1563 = vrot.slane %v1007, %v1562
  %v1564 = vlaneseq
  %v1565 = vshrl.u32 %v1564, 7
  %v1566 = vsub.s32 7, %v1565
  %v1567 = vrot.slane %v1007, %v1566
  %v1568 = vlaneseq
  %v1569 = vshrl.u32 %v1568, 7
  %v1570 = vsub.s32 0, %v1569
  %v1571 = vrot.slane %v1008, %v1570
  %v1572 = vlaneseq
  %v1573 = vshrl.u32 %v1572, 7
  %v1574 = vsub.s32 1, %v1573
  %v1575 = vrot.slane %v1008, %v1574
  %v1576 = vlaneseq
  %v1577 = vshrl.u32 %v1576, 7
  %v1578 = vsub.s32 2, %v1577
  %v1579 = vrot.slane %v1008, %v1578
  %v1580 = vlaneseq
  %v1581 = vshrl.u32 %v1580, 7
  %v1582 = vsub.s32 3, %v1581
  %v1583 = vrot.slane %v1008, %v1582
  %v1584 = vlaneseq
  %v1585 = vshrl.u32 %v1584, 7
  %v1586 = vsub.s32 4, %v1585
  %v1587 = vrot.slane %v1008, %v1586
  %v1588 = vlaneseq
  %v1589 = vshrl.u32 %v1588, 7
  %v1590 = vsub.s32 5, %v1589
  %v1591 = vrot.slane %v1008, %v1590
  %v1592 = vlaneseq
  %v1593 = vshrl.u32 %v1592, 7
  %v1594 = vsub.s32 6, %v1593
  %v1595 = vrot.slane %v1008, %v1594
  %v1596 = vlaneseq
  %v1597 = vshrl.u32 %v1596, 7
  %v1598 = vsub.s32 7, %v1597
  %v1599 = vrot.slane %v1008, %v1598
  %v1600 = vlaneseq
  %v1601 = vshrl.u32 %v1600, 7
  %v1602 = vsub.s32 0, %v1601
  %v1603 = vrot.slane %v1009, %v1602
  %v1604 = vlaneseq
  %v1605 = vshrl.u32 %v1604, 7
  %v1606 = vsub.s32 1, %v1605
  %v1607 = vrot.slane %v1009, %v1606
  %v1608 = vlaneseq
  %v1609 = vshrl.u32 %v1608, 7
  %v1610 = vsub.s32 2, %v1609
  %v1611 = vrot.slane %v1009, %v1610
  %v1612 = vlaneseq
  %v1613 = vshrl.u32 %v1612, 7
  %v1614 = vsub.s32 3, %v1613
  %v1615 = vrot.slane %v1009, %v1614
  %v1616 = vlaneseq
  %v1617 = vshrl.u32 %v1616, 7
  %v1618 = vsub.s32 4, %v1617
  %v1619 = vrot.slane %v1009, %v1618
  %v1620 = vlaneseq
  %v1621 = vshrl.u32 %v1620, 7
  %v1622 = vsub.s32 5, %v1621
  %v1623 = vrot.slane %v1009, %v1622
  %v1624 = vlaneseq
  %v1625 = vshrl.u32 %v1624, 7
  %v1626 = vsub.s32 6, %v1625
  %v1627 = vrot.slane %v1009, %v1626
  %v1628 = vlaneseq
  %v1629 = vshrl.u32 %v1628, 7
  %v1630 = vsub.s32 7, %v1629
  %v1631 = vrot.slane %v1009, %v1630
  %v1632 = vlaneseq
  %v1633 = vshrl.u32 %v1632, 7
  %v1634 = vsub.s32 0, %v1633
  %v1635 = vrot.slane %v1010, %v1634
  %v1636 = vlaneseq
  %v1637 = vshrl.u32 %v1636, 7
  %v1638 = vsub.s32 1, %v1637
  %v1639 = vrot.slane %v1010, %v1638
  %v1640 = vlaneseq
  %v1641 = vshrl.u32 %v1640, 7
  %v1642 = vsub.s32 2, %v1641
  %v1643 = vrot.slane %v1010, %v1642
  %v1644 = vlaneseq
  %v1645 = vshrl.u32 %v1644, 7
  %v1646 = vsub.s32 3, %v1645
  %v1647 = vrot.slane %v1010, %v1646
  %v1648 = vlaneseq
  %v1649 = vshrl.u32 %v1648, 7
  %v1650 = vsub.s32 4, %v1649
  %v1651 = vrot.slane %v1010, %v1650
  %v1652 = vlaneseq
  %v1653 = vshrl.u32 %v1652, 7
  %v1654 = vsub.s32 5, %v1653
  %v1655 = vrot.slane %v1010, %v1654
  %v1656 = vlaneseq
  %v1657 = vshrl.u32 %v1656, 7
  %v1658 = vsub.s32 6, %v1657
  %v1659 = vrot.slane %v1010, %v1658
  %v1660 = vlaneseq
  %v1661 = vshrl.u32 %v1660, 7
  %v1662 = vsub.s32 7, %v1661
  %v1663 = vrot.slane %v1010, %v1662
  %v1664 = vlaneseq
  %v1665 = vshrl.u32 %v1664, 7
  %v1666 = vsub.s32 0, %v1665
  %v1667 = vrot.slane %v1011, %v1666
  %v1668 = vlaneseq
  %v1669 = vshrl.u32 %v1668, 7
  %v1670 = vsub.s32 1, %v1669
  %v1671 = vrot.slane %v1011, %v1670
  %v1672 = vlaneseq
  %v1673 = vshrl.u32 %v1672, 7
  %v1674 = vsub.s32 2, %v1673
  %v1675 = vrot.slane %v1011, %v1674
  %v1676 = vlaneseq
  %v1677 = vshrl.u32 %v1676, 7
  %v1678 = vsub.s32 3, %v1677
  %v1679 = vrot.slane %v1011, %v1678
  %v1680 = vlaneseq
  %v1681 = vshrl.u32 %v1680, 7
  %v1682 = vsub.s32 4, %v1681
  %v1683 = vrot.slane %v1011, %v1682
  %v1684 = vlaneseq
  %v1685 = vshrl.u32 %v1684, 7
  %v1686 = vsub.s32 5, %v1685
  %v1687 = vrot.slane %v1011, %v1686
  %v1688 = vlaneseq
  %v1689 = vshrl.u32 %v1688, 7
  %v1690 = vsub.s32 6, %v1689
  %v1691 = vrot.slane %v1011, %v1690
  %v1692 = vlaneseq
  %v1693 = vshrl.u32 %v1692, 7
  %v1694 = vsub.s32 7, %v1693
  %v1695 = vrot.slane %v1011, %v1694
  %v1696 = vlaneseq
  %v1697 = vshrl.u32 %v1696, 7
  %v1698 = vsub.s32 0, %v1697
  %v1699 = vrot.slane %v1012, %v1698
  %v1700 = vlaneseq
  %v1701 = vshrl.u32 %v1700, 7
  %v1702 = vsub.s32 1, %v1701
  %v1703 = vrot.slane %v1012, %v1702
  %v1704 = vlaneseq
  %v1705 = vshrl.u32 %v1704, 7
  %v1706 = vsub.s32 2, %v1705
  %v1707 = vrot.slane %v1012, %v1706
  %v1708 = vlaneseq
  %v1709 = vshrl.u32 %v1708, 7
  %v1710 = vsub.s32 3, %v1709
  %v1711 = vrot.slane %v1012, %v1710
  %v1712 = vlaneseq
  %v1713 = vshrl.u32 %v1712, 7
  %v1714 = vsub.s32 4, %v1713
  %v1715 = vrot.slane %v1012, %v1714
  %v1716 = vlaneseq
  %v1717 = vshrl.u32 %v1716, 7
  %v1718 = vsub.s32 5, %v1717
  %v1719 = vrot.slane %v1012, %v1718
  %v1720 = vlaneseq
  %v1721 = vshrl.u32 %v1720, 7
  %v1722 = vsub.s32 6, %v1721
  %v1723 = vrot.slane %v1012, %v1722
  %v1724 = vlaneseq
  %v1725 = vshrl.u32 %v1724, 7
  %v1726 = vsub.s32 7, %v1725
  %v1727 = vrot.slane %v1012, %v1726
  %v1728 = vlaneseq
  %v1729 = vshrl.u32 %v1728, 7
  %v1730 = vsub.s32 0, %v1729
  %v1731 = vrot.slane %v1013, %v1730
  %v1732 = vlaneseq
  %v1733 = vshrl.u32 %v1732, 7
  %v1734 = vsub.s32 1, %v1733
  %v1735 = vrot.slane %v1013, %v1734
  %v1736 = vlaneseq
  %v1737 = vshrl.u32 %v1736, 7
  %v1738 = vsub.s32 2, %v1737
  %v1739 = vrot.slane %v1013, %v1738
  %v1740 = vlaneseq
  %v1741 = vshrl.u32 %v1740, 7
  %v1742 = vsub.s32 3, %v1741
  %v1743 = vrot.slane %v1013, %v1742
  %v1744 = vlaneseq
  %v1745 = vshrl.u32 %v1744, 7
  %v1746 = vsub.s32 4, %v1745
  %v1747 = vrot.slane %v1013, %v1746
  %v1748 = vlaneseq
  %v1749 = vshrl.u32 %v1748, 7
  %v1750 = vsub.s32 5, %v1749
  %v1751 = vrot.slane %v1013, %v1750
  %v1752 = vlaneseq
  %v1753 = vshrl.u32 %v1752, 7
  %v1754 = vsub.s32 6, %v1753
  %v1755 = vrot.slane %v1013, %v1754
  %v1756 = vlaneseq
  %v1757 = vshrl.u32 %v1756, 7
  %v1758 = vsub.s32 7, %v1757
  %v1759 = vrot.slane %v1013, %v1758
  %v1760 = vlaneseq
  %v1761 = vshrl.u32 %v1760, 7
  %v1762 = vsub.s32 0, %v1761
  %v1763 = vrot.slane %v1014, %v1762
  %v1764 = vlaneseq
  %v1765 = vshrl.u32 %v1764, 7
  %v1766 = vsub.s32 1, %v1765
  %v1767 = vrot.slane %v1014, %v1766
  %v1768 = vlaneseq
  %v1769 = vshrl.u32 %v1768, 7
  %v1770 = vsub.s32 2, %v1769
  %v1771 = vrot.slane %v1014, %v1770
  %v1772 = vlaneseq
  %v1773 = vshrl.u32 %v1772, 7
  %v1774 = vsub.s32 3, %v1773
  %v1775 = vrot.slane %v1014, %v1774
  %v1776 = vlaneseq
  %v1777 = vshrl.u32 %v1776, 7
  %v1778 = vsub.s32 4, %v1777
  %v1779 = vrot.slane %v1014, %v1778
  %v1780 = vlaneseq
  %v1781 = vshrl.u32 %v1780, 7
  %v1782 = vsub.s32 5, %v1781
  %v1783 = vrot.slane %v1014, %v1782
  %v1784 = vlaneseq
  %v1785 = vshrl.u32 %v1784, 7
  %v1786 = vsub.s32 6, %v1785
  %v1787 = vrot.slane %v1014, %v1786
  %v1788 = vlaneseq
  %v1789 = vshrl.u32 %v1788, 7
  %v1790 = vsub.s32 7, %v1789
  %v1791 = vrot.slane %v1014, %v1790
  %v1792 = vlaneseq
  %v1793 = vshrl.u32 %v1792, 7
  %v1794 = vsub.s32 0, %v1793
  %v1795 = vrot.slane %v1015, %v1794
  %v1796 = vlaneseq
  %v1797 = vshrl.u32 %v1796, 7
  %v1798 = vsub.s32 1, %v1797
  %v1799 = vrot.slane %v1015, %v1798
  %v1800 = vlaneseq
  %v1801 = vshrl.u32 %v1800, 7
  %v1802 = vsub.s32 2, %v1801
  %v1803 = vrot.slane %v1015, %v1802
  %v1804 = vlaneseq
  %v1805 = vshrl.u32 %v1804, 7
  %v1806 = vsub.s32 3, %v1805
  %v1807 = vrot.slane %v1015, %v1806
  %v1808 = vlaneseq
  %v1809 = vshrl.u32 %v1808, 7
  %v1810 = vsub.s32 4, %v1809
  %v1811 = vrot.slane %v1015, %v1810
  %v1812 = vlaneseq
  %v1813 = vshrl.u32 %v1812, 7
  %v1814 = vsub.s32 5, %v1813
  %v1815 = vrot.slane %v1015, %v1814
  %v1816 = vlaneseq
  %v1817 = vshrl.u32 %v1816, 7
  %v1818 = vsub.s32 6, %v1817
  %v1819 = vrot.slane %v1015, %v1818
  %v1820 = vlaneseq
  %v1821 = vshrl.u32 %v1820, 7
  %v1822 = vsub.s32 7, %v1821
  %v1823 = vrot.slane %v1015, %v1822
  %v1824 = vlaneseq
  %v1825 = vshrl.u32 %v1824, 7
  %v1826 = vsub.s32 0, %v1825
  %v1827 = vrot.slane %v1016, %v1826
  %v1828 = vlaneseq
  %v1829 = vshrl.u32 %v1828, 7
  %v1830 = vsub.s32 1, %v1829
  %v1831 = vrot.slane %v1016, %v1830
  %v1832 = vlaneseq
  %v1833 = vshrl.u32 %v1832, 7
  %v1834 = vsub.s32 2, %v1833
  %v1835 = vrot.slane %v1016, %v1834
  %v1836 = vlaneseq
  %v1837 = vshrl.u32 %v1836, 7
  %v1838 = vsub.s32 3, %v1837
  %v1839 = vrot.slane %v1016, %v1838
  %v1840 = vlaneseq
  %v1841 = vshrl.u32 %v1840, 7
  %v1842 = vsub.s32 4, %v1841
  %v1843 = vrot.slane %v1016, %v1842
  %v1844 = vlaneseq
  %v1845 = vshrl.u32 %v1844, 7
  %v1846 = vsub.s32 5, %v1845
  %v1847 = vrot.slane %v1016, %v1846
  %v1848 = vlaneseq
  %v1849 = vshrl.u32 %v1848, 7
  %v1850 = vsub.s32 6, %v1849
  %v1851 = vrot.slane %v1016, %v1850
  %v1852 = vlaneseq
  %v1853 = vshrl.u32 %v1852, 7
  %v1854 = vsub.s32 7, %v1853
  %v1855 = vrot.slane %v1016, %v1854
  %v1856 = vlaneseq
  %v1857 = vshrl.u32 %v1856, 7
  %v1858 = vsub.s32 0, %v1857
  %v1859 = vrot.slane %v1017, %v1858
  %v1860 = vlaneseq
  %v1861 = vshrl.u32 %v1860, 7
  %v1862 = vsub.s32 1, %v1861
  %v1863 = vrot.slane %v1017, %v1862
  %v1864 = vlaneseq
  %v1865 = vshrl.u32 %v1864, 7
  %v1866 = vsub.s32 2, %v1865
  %v1867 = vrot.slane %v1017, %v1866
  %v1868 = vlaneseq
  %v1869 = vshrl.u32 %v1868, 7
  %v1870 = vsub.s32 3, %v1869
  %v1871 = vrot.slane %v1017, %v1870
  %v1872 = vlaneseq
  %v1873 = vshrl.u32 %v1872, 7
  %v1874 = vsub.s32 4, %v1873
  %v1875 = vrot.slane %v1017, %v1874
  %v1876 = vlaneseq
  %v1877 = vshrl.u32 %v1876, 7
  %v1878 = vsub.s32 5, %v1877
  %v1879 = vrot.slane %v1017, %v1878
  %v1880 = vlaneseq
  %v1881 = vshrl.u32 %v1880, 7
  %v1882 = vsub.s32 6, %v1881
  %v1883 = vrot.slane %v1017, %v1882
  %v1884 = vlaneseq
  %v1885 = vshrl.u32 %v1884, 7
  %v1886 = vsub.s32 7, %v1885
  %v1887 = vrot.slane %v1017, %v1886
  %v1888 = vlaneseq
  %v1889 = vshrl.u32 %v1888, 7
  %v1890 = vsub.s32 0, %v1889
  %v1891 = vrot.slane %v1018, %v1890
  %v1892 = vlaneseq
  %v1893 = vshrl.u32 %v1892, 7
  %v1894 = vsub.s32 1, %v1893
  %v1895 = vrot.slane %v1018, %v1894
  %v1896 = vlaneseq
  %v1897 = vshrl.u32 %v1896, 7
  %v1898 = vsub.s32 2, %v1897
  %v1899 = vrot.slane %v1018, %v1898
  %v1900 = vlaneseq
  %v1901 = vshrl.u32 %v1900, 7
  %v1902 = vsub.s32 3, %v1901
  %v1903 = vrot.slane %v1018, %v1902
  %v1904 = vlaneseq
  %v1905 = vshrl.u32 %v1904, 7
  %v1906 = vsub.s32 4, %v1905
  %v1907 = vrot.slane %v1018, %v1906
  %v1908 = vlaneseq
  %v1909 = vshrl.u32 %v1908, 7
  %v1910 = vsub.s32 5, %v1909
  %v1911 = vrot.slane %v1018, %v1910
  %v1912 = vlaneseq
  %v1913 = vshrl.u32 %v1912, 7
  %v1914 = vsub.s32 6, %v1913
  %v1915 = vrot.slane %v1018, %v1914
  %v1916 = vlaneseq
  %v1917 = vshrl.u32 %v1916, 7
  %v1918 = vsub.s32 7, %v1917
  %v1919 = vrot.slane %v1018, %v1918
  %v1920 = vlaneseq
  %v1921 = vshrl.u32 %v1920, 7
  %v1922 = vsub.s32 0, %v1921
  %v1923 = vrot.slane %v1019, %v1922
  %v1924 = vlaneseq
  %v1925 = vshrl.u32 %v1924, 7
  %v1926 = vsub.s32 1, %v1925
  %v1927 = vrot.slane %v1019, %v1926
  %v1928 = vlaneseq
  %v1929 = vshrl.u32 %v1928, 7
  %v1930 = vsub.s32 2, %v1929
  %v1931 = vrot.slane %v1019, %v1930
  %v1932 = vlaneseq
  %v1933 = vshrl.u32 %v1932, 7
  %v1934 = vsub.s32 3, %v1933
  %v1935 = vrot.slane %v1019, %v1934
  %v1936 = vlaneseq
  %v1937 = vshrl.u32 %v1936, 7
  %v1938 = vsub.s32 4, %v1937
  %v1939 = vrot.slane %v1019, %v1938
  %v1940 = vlaneseq
  %v1941 = vshrl.u32 %v1940, 7
  %v1942 = vsub.s32 5, %v1941
  %v1943 = vrot.slane %v1019, %v1942
  %v1944 = vlaneseq
  %v1945 = vshrl.u32 %v1944, 7
  %v1946 = vsub.s32 6, %v1945
  %v1947 = vrot.slane %v1019, %v1946
  %v1948 = vlaneseq
  %v1949 = vshrl.u32 %v1948, 7
  %v1950 = vsub.s32 7, %v1949
  %v1951 = vrot.slane %v1019, %v1950
  %v1952 = vlaneseq
  %v1953 = vshrl.u32 %v1952, 7
  %v1954 = vsub.s32 0, %v1953
  %v1955 = vrot.slane %v1020, %v1954
  %v1956 = vlaneseq
  %v1957 = vshrl.u32 %v1956, 7
  %v1958 = vsub.s32 1, %v1957
  %v1959 = vrot.slane %v1020, %v1958
  %v1960 = vlaneseq
  %v1961 = vshrl.u32 %v1960, 7
  %v1962 = vsub.s32 2, %v1961
  %v1963 = vrot.slane %v1020, %v1962
  %v1964 = vlaneseq
  %v1965 = vshrl.u32 %v1964, 7
  %v1966 = vsub.s32 3, %v1965
  %v1967 = vrot.slane %v1020, %v1966
  %v1968 = vlaneseq
  %v1969 = vshrl.u32 %v1968, 7
  %v1970 = vsub.s32 4, %v1969
  %v1971 = vrot.slane %v1020, %v1970
  %v1972 = vlaneseq
  %v1973 = vshrl.u32 %v1972, 7
  %v1974 = vsub.s32 5, %v1973
  %v1975 = vrot.slane %v1020, %v1974
  %v1976 = vlaneseq
  %v1977 = vshrl.u32 %v1976, 7
  %v1978 = vsub.s32 6, %v1977
  %v1979 = vrot.slane %v1020, %v1978
  %v1980 = vlaneseq
  %v1981 = vshrl.u32 %v1980, 7
  %v1982 = vsub.s32 7, %v1981
  %v1983 = vrot.slane %v1020, %v1982
  %v1984 = vlaneseq
  %v1985 = vshrl.u32 %v1984, 7
  %v1986 = vsub.s32 0, %v1985
  %v1987 = vrot.slane %v1021, %v1986
  %v1988 = vlaneseq
  %v1989 = vshrl.u32 %v1988, 7
  %v1990 = vsub.s32 1, %v1989
  %v1991 = vrot.slane %v1021, %v1990
  %v1992 = vlaneseq
  %v1993 = vshrl.u32 %v1992, 7
  %v1994 = vsub.s32 2, %v1993
  %v1995 = vrot.slane %v1021, %v1994
  %v1996 = vlaneseq
  %v1997 = vshrl.u32 %v1996, 7
  %v1998 = vsub.s32 3, %v1997
  %v1999 = vrot.slane %v1021, %v1998
  %v2000 = vlaneseq
  %v2001 = vshrl.u32 %v2000, 7
  %v2002 = vsub.s32 4, %v2001
  %v2003 = vrot.slane %v1021, %v2002
  %v2004 = vlaneseq
  %v2005 = vshrl.u32 %v2004, 7
  %v2006 = vsub.s32 5, %v2005
  %v2007 = vrot.slane %v1021, %v2006
  %v2008 = vlaneseq
  %v2009 = vshrl.u32 %v2008, 7
  %v2010 = vsub.s32 6, %v2009
  %v2011 = vrot.slane %v1021, %v2010
  %v2012 = vlaneseq
  %v2013 = vshrl.u32 %v2012, 7
  %v2014 = vsub.s32 7, %v2013
  %v2015 = vrot.slane %v1021, %v2014
  %v2016 = vlaneseq
  %v2017 = vshrl.u32 %v2016, 7
  %v2018 = vsub.s32 0, %v2017
  %v2019 = vrot.slane %v1022, %v2018
  %v2020 = vlaneseq
  %v2021 = vshrl.u32 %v2020, 7
  %v2022 = vsub.s32 1, %v2021
  %v2023 = vrot.slane %v1022, %v2022
  %v2024 = vlaneseq
  %v2025 = vshrl.u32 %v2024, 7
  %v2026 = vsub.s32 2, %v2025
  %v2027 = vrot.slane %v1022, %v2026
  %v2028 = vlaneseq
  %v2029 = vshrl.u32 %v2028, 7
  %v2030 = vsub.s32 3, %v2029
  %v2031 = vrot.slane %v1022, %v2030
  %v2032 = vlaneseq
  %v2033 = vshrl.u32 %v2032, 7
  %v2034 = vsub.s32 4, %v2033
  %v2035 = vrot.slane %v1022, %v2034
  %v2036 = vlaneseq
  %v2037 = vshrl.u32 %v2036, 7
  %v2038 = vsub.s32 5, %v2037
  %v2039 = vrot.slane %v1022, %v2038
  %v2040 = vlaneseq
  %v2041 = vshrl.u32 %v2040, 7
  %v2042 = vsub.s32 6, %v2041
  %v2043 = vrot.slane %v1022, %v2042
  %v2044 = vlaneseq
  %v2045 = vshrl.u32 %v2044, 7
  %v2046 = vsub.s32 7, %v2045
  %v2047 = vrot.slane %v1022, %v2046
  %v2048 = vlaneseq
  %v2049 = vshrl.u32 %v2048, 7
  %v2050 = vsub.s32 0, %v2049
  %v2051 = vrot.slane %v1023, %v2050
  %v2052 = vlaneseq
  %v2053 = vshrl.u32 %v2052, 7
  %v2054 = vsub.s32 1, %v2053
  %v2055 = vrot.slane %v1023, %v2054
  %v2056 = vlaneseq
  %v2057 = vshrl.u32 %v2056, 7
  %v2058 = vsub.s32 2, %v2057
  %v2059 = vrot.slane %v1023, %v2058
  %v2060 = vlaneseq
  %v2061 = vshrl.u32 %v2060, 7
  %v2062 = vsub.s32 3, %v2061
  %v2063 = vrot.slane %v1023, %v2062
  %v2064 = vlaneseq
  %v2065 = vshrl.u32 %v2064, 7
  %v2066 = vsub.s32 4, %v2065
  %v2067 = vrot.slane %v1023, %v2066
  %v2068 = vlaneseq
  %v2069 = vshrl.u32 %v2068, 7
  %v2070 = vsub.s32 5, %v2069
  %v2071 = vrot.slane %v1023, %v2070
  %v2072 = vlaneseq
  %v2073 = vshrl.u32 %v2072, 7
  %v2074 = vsub.s32 6, %v2073
  %v2075 = vrot.slane %v1023, %v2074
  %v2076 = vlaneseq
  %v2077 = vshrl.u32 %v2076, 7
  %v2078 = vsub.s32 7, %v2077
  %v2079 = vrot.slane %v1023, %v2078
  %v2080 = vcombine.low %v1059, %v1063
  %v2081 = vcombine.low %v1067, %v1071
  %v2082 = vcombine.low %v1075, %v1079
  %v2083 = vcombine.low %v1083, %v1087
  %v2085 = vunpack.c.l.s4 1966171168
  %v2086 = vunpack.c.0.s8 %v2085
  %v2087 = vlaneseq
  %v2088 = vshrl.u32 %v2087, 7
  %v2089 = vsub.s32 %v2086, %v2088
  %v2090 = vrot.slane %v2080, %v2089
  %v2092 = vunpack.c.l.s4 1966171168
  %v2093 = vunpack.c.0.s8 %v2092
  %v2094 = vlaneseq
  %v2095 = vshrl.u32 %v2094, 7
  %v2096 = vsub.s32 %v2093, %v2095
  %v2097 = vrot.slane %v2081, %v2096
  %v2099 = vunpack.c.l.s4 1966171168
  %v2100 = vunpack.c.0.s8 %v2099
  %v2101 = vlaneseq
  %v2102 = vshrl.u32 %v2101, 7
  %v2103 = vsub.s32 %v2100, %v2102
  %v2104 = vrot.slane %v2082, %v2103
  %v2106 = vunpack.c.l.s4 1966171168
  %v2107 = vunpack.c.0.s8 %v2106
  %v2108 = vlaneseq
  %v2109 = vshrl.u32 %v2108, 7
  %v2110 = vsub.s32 %v2107, %v2109
  %v2111 = vrot.slane %v2083, %v2110
  %v2112 = vcombine.low %v2090, %v2097
  %v2113 = vcombine.low %v2104, %v2111
  %v2115 = vunpack.c.l.s4 1966171168
  %v2116 = vunpack.c.0.s8 %v2115
  %v2117 = vlaneseq
  %v2118 = vshrl.u32 %v2117, 7
  %v2119 = vsub.s32 %v2116, %v2118
  %v2120 = vrot.slane %v2112, %v2119
  %v2122 = vunpack.c.l.s4 1966171168
  %v2123 = vunpack.c.0.s8 %v2122
  %v2124 = vlaneseq
  %v2125 = vshrl.u32 %v2124, 7
  %v2126 = vsub.s32 %v2123, %v2125
  %v2127 = vrot.slane %v2113, %v2126
  %v2128 = vcombine.low %v2120, %v2127
  %v2129 = vcombine.low %v1091, %v1095
  %v2130 = vcombine.low %v1099, %v1103
  %v2131 = vcombine.low %v1107, %v1111
  %v2132 = vcombine.low %v1115, %v1119
  %v2134 = vunpack.c.l.s4 1966171168
  %v2135 = vunpack.c.0.s8 %v2134
  %v2136 = vlaneseq
  %v2137 = vshrl.u32 %v2136, 7
  %v2138 = vsub.s32 %v2135, %v2137
  %v2139 = vrot.slane %v2129, %v2138
  %v2141 = vunpack.c.l.s4 1966171168
  %v2142 = vunpack.c.0.s8 %v2141
  %v2143 = vlaneseq
  %v2144 = vshrl.u32 %v2143, 7
  %v2145 = vsub.s32 %v2142, %v2144
  %v2146 = vrot.slane %v2130, %v2145
  %v2148 = vunpack.c.l.s4 1966171168
  %v2149 = vunpack.c.0.s8 %v2148
  %v2150 = vlaneseq
  %v2151 = vshrl.u32 %v2150, 7
  %v2152 = vsub.s32 %v2149, %v2151
  %v2153 = vrot.slane %v2131, %v2152
  %v2155 = vunpack.c.l.s4 1966171168
  %v2156 = vunpack.c.0.s8 %v2155
  %v2157 = vlaneseq
  %v2158 = vshrl.u32 %v2157, 7
  %v2159 = vsub.s32 %v2156, %v2158
  %v2160 = vrot.slane %v2132, %v2159
  %v2161 = vcombine.low %v2139, %v2146
  %v2162 = vcombine.low %v2153, %v2160
  %v2164 = vunpack.c.l.s4 1966171168
  %v2165 = vunpack.c.0.s8 %v2164
  %v2166 = vlaneseq
  %v2167 = vshrl.u32 %v2166, 7
  %v2168 = vsub.s32 %v2165, %v2167
  %v2169 = vrot.slane %v2161, %v2168
  %v2171 = vunpack.c.l.s4 1966171168
  %v2172 = vunpack.c.0.s8 %v2171
  %v2173 = vlaneseq
  %v2174 = vshrl.u32 %v2173, 7
  %v2175 = vsub.s32 %v2172, %v2174
  %v2176 = vrot.slane %v2162, %v2175
  %v2177 = vcombine.low %v2169, %v2176
  %v2178 = vcombine.low %v1123, %v1127
  %v2179 = vcombine.low %v1131, %v1135
  %v2180 = vcombine.low %v1139, %v1143
  %v2181 = vcombine.low %v1147, %v1151
  %v2183 = vunpack.c.l.s4 1966171168
  %v2184 = vunpack.c.0.s8 %v2183
  %v2185 = vlaneseq
  %v2186 = vshrl.u32 %v2185, 7
  %v2187 = vsub.s32 %v2184, %v2186
  %v2188 = vrot.slane %v2178, %v2187
  %v2190 = vunpack.c.l.s4 1966171168
  %v2191 = vunpack.c.0.s8 %v2190
  %v2192 = vlaneseq
  %v2193 = vshrl.u32 %v2192, 7
  %v2194 = vsub.s32 %v2191, %v2193
  %v2195 = vrot.slane %v2179, %v2194
  %v2197 = vunpack.c.l.s4 1966171168
  %v2198 = vunpack.c.0.s8 %v2197
  %v2199 = vlaneseq
  %v2200 = vshrl.u32 %v2199, 7
  %v2201 = vsub.s32 %v2198, %v2200
  %v2202 = vrot.slane %v2180, %v2201
  %v2204 = vunpack.c.l.s4 1966171168
  %v2205 = vunpack.c.0.s8 %v2204
  %v2206 = vlaneseq
  %v2207 = vshrl.u32 %v2206, 7
  %v2208 = vsub.s32 %v2205, %v2207
  %v2209 = vrot.slane %v2181, %v2208
  %v2210 = vcombine.low %v2188, %v2195
  %v2211 = vcombine.low %v2202, %v2209
  %v2213 = vunpack.c.l.s4 1966171168
  %v2214 = vunpack.c.0.s8 %v2213
  %v2215 = vlaneseq
  %v2216 = vshrl.u32 %v2215, 7
  %v2217 = vsub.s32 %v2214, %v2216
  %v2218 = vrot.slane %v2210, %v2217
  %v2220 = vunpack.c.l.s4 1966171168
  %v2221 = vunpack.c.0.s8 %v2220
  %v2222 = vlaneseq
  %v2223 = vshrl.u32 %v2222, 7
  %v2224 = vsub.s32 %v2221, %v2223
  %v2225 = vrot.slane %v2211, %v2224
  %v2226 = vcombine.low %v2218, %v2225
  %v2227 = vcombine.low %v1155, %v1159
  %v2228 = vcombine.low %v1163, %v1167
  %v2229 = vcombine.low %v1171, %v1175
  %v2230 = vcombine.low %v1179, %v1183
  %v2232 = vunpack.c.l.s4 1966171168
  %v2233 = vunpack.c.0.s8 %v2232
  %v2234 = vlaneseq
  %v2235 = vshrl.u32 %v2234, 7
  %v2236 = vsub.s32 %v2233, %v2235
  %v2237 = vrot.slane %v2227, %v2236
  %v2239 = vunpack.c.l.s4 1966171168
  %v2240 = vunpack.c.0.s8 %v2239
  %v2241 = vlaneseq
  %v2242 = vshrl.u32 %v2241, 7
  %v2243 = vsub.s32 %v2240, %v2242
  %v2244 = vrot.slane %v2228, %v2243
  %v2246 = vunpack.c.l.s4 1966171168
  %v2247 = vunpack.c.0.s8 %v2246
  %v2248 = vlaneseq
  %v2249 = vshrl.u32 %v2248, 7
  %v2250 = vsub.s32 %v2247, %v2249
  %v2251 = vrot.slane %v2229, %v2250
  %v2253 = vunpack.c.l.s4 1966171168
  %v2254 = vunpack.c.0.s8 %v2253
  %v2255 = vlaneseq
  %v2256 = vshrl.u32 %v2255, 7
  %v2257 = vsub.s32 %v2254, %v2256
  %v2258 = vrot.slane %v2230, %v2257
  %v2259 = vcombine.low %v2237, %v2244
  %v2260 = vcombine.low %v2251, %v2258
  %v2262 = vunpack.c.l.s4 1966171168
  %v2263 = vunpack.c.0.s8 %v2262
  %v2264 = vlaneseq
  %v2265 = vshrl.u32 %v2264, 7
  %v2266 = vsub.s32 %v2263, %v2265
  %v2267 = vrot.slane %v2259, %v2266
  %v2269 = vunpack.c.l.s4 1966171168
  %v2270 = vunpack.c.0.s8 %v2269
  %v2271 = vlaneseq
  %v2272 = vshrl.u32 %v2271, 7
  %v2273 = vsub.s32 %v2270, %v2272
  %v2274 = vrot.slane %v2260, %v2273
  %v2275 = vcombine.low %v2267, %v2274
  %v2276 = vcombine.low %v1187, %v1191
  %v2277 = vcombine.low %v1195, %v1199
  %v2278 = vcombine.low %v1203, %v1207
  %v2279 = vcombine.low %v1211, %v1215
  %v2281 = vunpack.c.l.s4 1966171168
  %v2282 = vunpack.c.0.s8 %v2281
  %v2283 = vlaneseq
  %v2284 = vshrl.u32 %v2283, 7
  %v2285 = vsub.s32 %v2282, %v2284
  %v2286 = vrot.slane %v2276, %v2285
  %v2288 = vunpack.c.l.s4 1966171168
  %v2289 = vunpack.c.0.s8 %v2288
  %v2290 = vlaneseq
  %v2291 = vshrl.u32 %v2290, 7
  %v2292 = vsub.s32 %v2289, %v2291
  %v2293 = vrot.slane %v2277, %v2292
  %v2295 = vunpack.c.l.s4 1966171168
  %v2296 = vunpack.c.0.s8 %v2295
  %v2297 = vlaneseq
  %v2298 = vshrl.u32 %v2297, 7
  %v2299 = vsub.s32 %v2296, %v2298
  %v2300 = vrot.slane %v2278, %v2299
  %v2302 = vunpack.c.l.s4 1966171168
  %v2303 = vunpack.c.0.s8 %v2302
  %v2304 = vlaneseq
  %v2305 = vshrl.u32 %v2304, 7
  %v2306 = vsub.s32 %v2303, %v2305
  %v2307 = vrot.slane %v2279, %v2306
  %v2308 = vcombine.low %v2286, %v2293
  %v2309 = vcombine.low %v2300, %v2307
  %v2311 = vunpack.c.l.s4 1966171168
  %v2312 = vunpack.c.0.s8 %v2311
  %v2313 = vlaneseq
  %v2314 = vshrl.u32 %v2313, 7
  %v2315 = vsub.s32 %v2312, %v2314
  %v2316 = vrot.slane %v2308, %v2315
  %v2318 = vunpack.c.l.s4 1966171168
  %v2319 = vunpack.c.0.s8 %v2318
  %v2320 = vlaneseq
  %v2321 = vshrl.u32 %v2320, 7
  %v2322 = vsub.s32 %v2319, %v2321
  %v2323 = vrot.slane %v2309, %v2322
  %v2324 = vcombine.low %v2316, %v2323
  %v2325 = vcombine.low %v1219, %v1223
  %v2326 = vcombine.low %v1227, %v1231
  %v2327 = vcombine.low %v1235, %v1239
  %v2328 = vcombine.low %v1243, %v1247
  %v2330 = vunpack.c.l.s4 1966171168
  %v2331 = vunpack.c.0.s8 %v2330
  %v2332 = vlaneseq
  %v2333 = vshrl.u32 %v2332, 7
  %v2334 = vsub.s32 %v2331, %v2333
  %v2335 = vrot.slane %v2325, %v2334
  %v2337 = vunpack.c.l.s4 1966171168
  %v2338 = vunpack.c.0.s8 %v2337
  %v2339 = vlaneseq
  %v2340 = vshrl.u32 %v2339, 7
  %v2341 = vsub.s32 %v2338, %v2340
  %v2342 = vrot.slane %v2326, %v2341
  %v2344 = vunpack.c.l.s4 1966171168
  %v2345 = vunpack.c.0.s8 %v2344
  %v2346 = vlaneseq
  %v2347 = vshrl.u32 %v2346, 7
  %v2348 = vsub.s32 %v2345, %v2347
  %v2349 = vrot.slane %v2327, %v2348
  %v2351 = vunpack.c.l.s4 1966171168
  %v2352 = vunpack.c.0.s8 %v2351
  %v2353 = vlaneseq
  %v2354 = vshrl.u32 %v2353, 7
  %v2355 = vsub.s32 %v2352, %v2354
  %v2356 = vrot.slane %v2328, %v2355
  %v2357 = vcombine.low %v2335, %v2342
  %v2358 = vcombine.low %v2349, %v2356
  %v2360 = vunpack.c.l.s4 1966171168
  %v2361 = vunpack.c.0.s8 %v2360
  %v2362 = vlaneseq
  %v2363 = vshrl.u32 %v2362, 7
  %v2364 = vsub.s32 %v2361, %v2363
  %v2365 = vrot.slane %v2357, %v2364
  %v2367 = vunpack.c.l.s4 1966171168
  %v2368 = vunpack.c.0.s8 %v2367
  %v2369 = vlaneseq
  %v2370 = vshrl.u32 %v2369, 7
  %v2371 = vsub.s32 %v2368, %v2370
  %v2372 = vrot.slane %v2358, %v2371
  %v2373 = vcombine.low %v2365, %v2372
  %v2374 = vcombine.low %v1251, %v1255
  %v2375 = vcombine.low %v1259, %v1263
  %v2376 = vcombine.low %v1267, %v1271
  %v2377 = vcombine.low %v1275, %v1279
  %v2379 = vunpack.c.l.s4 1966171168
  %v2380 = vunpack.c.0.s8 %v2379
  %v2381 = vlaneseq
  %v2382 = vshrl.u32 %v2381, 7
  %v2383 = vsub.s32 %v2380, %v2382
  %v2384 = vrot.slane %v2374, %v2383
  %v2386 = vunpack.c.l.s4 1966171168
  %v2387 = vunpack.c.0.s8 %v2386
  %v2388 = vlaneseq
  %v2389 = vshrl.u32 %v2388, 7
  %v2390 = vsub.s32 %v2387, %v2389
  %v2391 = vrot.slane %v2375, %v2390
  %v2393 = vunpack.c.l.s4 1966171168
  %v2394 = vunpack.c.0.s8 %v2393
  %v2395 = vlaneseq
  %v2396 = vshrl.u32 %v2395, 7
  %v2397 = vsub.s32 %v2394, %v2396
  %v2398 = vrot.slane %v2376, %v2397
  %v2400 = vunpack.c.l.s4 1966171168
  %v2401 = vunpack.c.0.s8 %v2400
  %v2402 = vlaneseq
  %v2403 = vshrl.u32 %v2402, 7
  %v2404 = vsub.s32 %v2401, %v2403
  %v2405 = vrot.slane %v2377, %v2404
  %v2406 = vcombine.low %v2384, %v2391
  %v2407 = vcombine.low %v2398, %v2405
  %v2409 = vunpack.c.l.s4 1966171168
  %v2410 = vunpack.c.0.s8 %v2409
  %v2411 = vlaneseq
  %v2412 = vshrl.u32 %v2411, 7
  %v2413 = vsub.s32 %v2410, %v2412
  %v2414 = vrot.slane %v2406, %v2413
  %v2416 = vunpack.c.l.s4 1966171168
  %v2417 = vunpack.c.0.s8 %v2416
  %v2418 = vlaneseq
  %v2419 = vshrl.u32 %v2418, 7
  %v2420 = vsub.s32 %v2417, %v2419
  %v2421 = vrot.slane %v2407, %v2420
  %v2422 = vcombine.low %v2414, %v2421
  %v2423 = vcombine.low %v1283, %v1287
  %v2424 = vcombine.low %v1291, %v1295
  %v2425 = vcombine.low %v1299, %v1303
  %v2426 = vcombine.low %v1307, %v1311
  %v2428 = vunpack.c.l.s4 1966171168
  %v2429 = vunpack.c.0.s8 %v2428
  %v2430 = vlaneseq
  %v2431 = vshrl.u32 %v2430, 7
  %v2432 = vsub.s32 %v2429, %v2431
  %v2433 = vrot.slane %v2423, %v2432
  %v2435 = vunpack.c.l.s4 1966171168
  %v2436 = vunpack.c.0.s8 %v2435
  %v2437 = vlaneseq
  %v2438 = vshrl.u32 %v2437, 7
  %v2439 = vsub.s32 %v2436, %v2438
  %v2440 = vrot.slane %v2424, %v2439
  %v2442 = vunpack.c.l.s4 1966171168
  %v2443 = vunpack.c.0.s8 %v2442
  %v2444 = vlaneseq
  %v2445 = vshrl.u32 %v2444, 7
  %v2446 = vsub.s32 %v2443, %v2445
  %v2447 = vrot.slane %v2425, %v2446
  %v2449 = vunpack.c.l.s4 1966171168
  %v2450 = vunpack.c.0.s8 %v2449
  %v2451 = vlaneseq
  %v2452 = vshrl.u32 %v2451, 7
  %v2453 = vsub.s32 %v2450, %v2452
  %v2454 = vrot.slane %v2426, %v2453
  %v2455 = vcombine.low %v2433, %v2440
  %v2456 = vcombine.low %v2447, %v2454
  %v2458 = vunpack.c.l.s4 1966171168
  %v2459 = vunpack.c.0.s8 %v2458
  %v2460 = vlaneseq
  %v2461 = vshrl.u32 %v2460, 7
  %v2462 = vsub.s32 %v2459, %v2461
  %v2463 = vrot.slane %v2455, %v2462
  %v2465 = vunpack.c.l.s4 1966171168
  %v2466 = vunpack.c.0.s8 %v2465
  %v2467 = vlaneseq
  %v2468 = vshrl.u32 %v2467, 7
  %v2469 = vsub.s32 %v2466, %v2468
  %v2470 = vrot.slane %v2456, %v2469
  %v2471 = vcombine.low %v2463, %v2470
  %v2472 = vcombine.low %v1315, %v1319
  %v2473 = vcombine.low %v1323, %v1327
  %v2474 = vcombine.low %v1331, %v1335
  %v2475 = vcombine.low %v1339, %v1343
  %v2477 = vunpack.c.l.s4 1966171168
  %v2478 = vunpack.c.0.s8 %v2477
  %v2479 = vlaneseq
  %v2480 = vshrl.u32 %v2479, 7
  %v2481 = vsub.s32 %v2478, %v2480
  %v2482 = vrot.slane %v2472, %v2481
  %v2484 = vunpack.c.l.s4 1966171168
  %v2485 = vunpack.c.0.s8 %v2484
  %v2486 = vlaneseq
  %v2487 = vshrl.u32 %v2486, 7
  %v2488 = vsub.s32 %v2485, %v2487
  %v2489 = vrot.slane %v2473, %v2488
  %v2491 = vunpack.c.l.s4 1966171168
  %v2492 = vunpack.c.0.s8 %v2491
  %v2493 = vlaneseq
  %v2494 = vshrl.u32 %v2493, 7
  %v2495 = vsub.s32 %v2492, %v2494
  %v2496 = vrot.slane %v2474, %v2495
  %v2498 = vunpack.c.l.s4 1966171168
  %v2499 = vunpack.c.0.s8 %v2498
  %v2500 = vlaneseq
  %v2501 = vshrl.u32 %v2500, 7
  %v2502 = vsub.s32 %v2499, %v2501
  %v2503 = vrot.slane %v2475, %v2502
  %v2504 = vcombine.low %v2482, %v2489
  %v2505 = vcombine.low %v2496, %v2503
  %v2507 = vunpack.c.l.s4 1966171168
  %v2508 = vunpack.c.0.s8 %v2507
  %v2509 = vlaneseq
  %v2510 = vshrl.u32 %v2509, 7
  %v2511 = vsub.s32 %v2508, %v2510
  %v2512 = vrot.slane %v2504, %v2511
  %v2514 = vunpack.c.l.s4 1966171168
  %v2515 = vunpack.c.0.s8 %v2514
  %v2516 = vlaneseq
  %v2517 = vshrl.u32 %v2516, 7
  %v2518 = vsub.s32 %v2515, %v2517
  %v2519 = vrot.slane %v2505, %v2518
  %v2520 = vcombine.low %v2512, %v2519
  %v2521 = vcombine.low %v1347, %v1351
  %v2522 = vcombine.low %v1355, %v1359
  %v2523 = vcombine.low %v1363, %v1367
  %v2524 = vcombine.low %v1371, %v1375
  %v2526 = vunpack.c.l.s4 1966171168
  %v2527 = vunpack.c.0.s8 %v2526
  %v2528 = vlaneseq
  %v2529 = vshrl.u32 %v2528, 7
  %v2530 = vsub.s32 %v2527, %v2529
  %v2531 = vrot.slane %v2521, %v2530
  %v2533 = vunpack.c.l.s4 1966171168
  %v2534 = vunpack.c.0.s8 %v2533
  %v2535 = vlaneseq
  %v2536 = vshrl.u32 %v2535, 7
  %v2537 = vsub.s32 %v2534, %v2536
  %v2538 = vrot.slane %v2522, %v2537
  %v2540 = vunpack.c.l.s4 1966171168
  %v2541 = vunpack.c.0.s8 %v2540
  %v2542 = vlaneseq
  %v2543 = vshrl.u32 %v2542, 7
  %v2544 = vsub.s32 %v2541, %v2543
  %v2545 = vrot.slane %v2523, %v2544
  %v2547 = vunpack.c.l.s4 1966171168
  %v2548 = vunpack.c.0.s8 %v2547
  %v2549 = vlaneseq
  %v2550 = vshrl.u32 %v2549, 7
  %v2551 = vsub.s32 %v2548, %v2550
  %v2552 = vrot.slane %v2524, %v2551
  %v2553 = vcombine.low %v2531, %v2538
  %v2554 = vcombine.low %v2545, %v2552
  %v2556 = vunpack.c.l.s4 1966171168
  %v2557 = vunpack.c.0.s8 %v2556
  %v2558 = vlaneseq
  %v2559 = vshrl.u32 %v2558, 7
  %v2560 = vsub.s32 %v2557, %v2559
  %v2561 = vrot.slane %v2553, %v2560
  %v2563 = vunpack.c.l.s4 1966171168
  %v2564 = vunpack.c.0.s8 %v2563
  %v2565 = vlaneseq
  %v2566 = vshrl.u32 %v2565, 7
  %v2567 = vsub.s32 %v2564, %v2566
  %v2568 = vrot.slane %v2554, %v2567
  %v2569 = vcombine.low %v2561, %v2568
  %v2570 = vcombine.low %v1379, %v1383
  %v2571 = vcombine.low %v1387, %v1391
  %v2572 = vcombine.low %v1395, %v1399
  %v2573 = vcombine.low %v1403, %v1407
  %v2575 = vunpack.c.l.s4 1966171168
  %v2576 = vunpack.c.0.s8 %v2575
  %v2577 = vlaneseq
  %v2578 = vshrl.u32 %v2577, 7
  %v2579 = vsub.s32 %v2576, %v2578
  %v2580 = vrot.slane %v2570, %v2579
  %v2582 = vunpack.c.l.s4 1966171168
  %v2583 = vunpack.c.0.s8 %v2582
  %v2584 = vlaneseq
  %v2585 = vshrl.u32 %v2584, 7
  %v2586 = vsub.s32 %v2583, %v2585
  %v2587 = vrot.slane %v2571, %v2586
  %v2589 = vunpack.c.l.s4 1966171168
  %v2590 = vunpack.c.0.s8 %v2589
  %v2591 = vlaneseq
  %v2592 = vshrl.u32 %v2591, 7
  %v2593 = vsub.s32 %v2590, %v2592
  %v2594 = vrot.slane %v2572, %v2593
  %v2596 = vunpack.c.l.s4 1966171168
  %v2597 = vunpack.c.0.s8 %v2596
  %v2598 = vlaneseq
  %v2599 = vshrl.u32 %v2598, 7
  %v2600 = vsub.s32 %v2597, %v2599
  %v2601 = vrot.slane %v2573, %v2600
  %v2602 = vcombine.low %v2580, %v2587
  %v2603 = vcombine.low %v2594, %v2601
  %v2605 = vunpack.c.l.s4 1966171168
  %v2606 = vunpack.c.0.s8 %v2605
  %v2607 = vlaneseq
  %v2608 = vshrl.u32 %v2607, 7
  %v2609 = vsub.s32 %v2606, %v2608
  %v2610 = vrot.slane %v2602, %v2609
  %v2612 = vunpack.c.l.s4 1966171168
  %v2613 = vunpack.c.0.s8 %v2612
  %v2614 = vlaneseq
  %v2615 = vshrl.u32 %v2614, 7
  %v2616 = vsub.s32 %v2613, %v2615
  %v2617 = vrot.slane %v2603, %v2616
  %v2618 = vcombine.low %v2610, %v2617
  %v2619 = vcombine.low %v1411, %v1415
  %v2620 = vcombine.low %v1419, %v1423
  %v2621 = vcombine.low %v1427, %v1431
  %v2622 = vcombine.low %v1435, %v1439
  %v2624 = vunpack.c.l.s4 1966171168
  %v2625 = vunpack.c.0.s8 %v2624
  %v2626 = vlaneseq
  %v2627 = vshrl.u32 %v2626, 7
  %v2628 = vsub.s32 %v2625, %v2627
  %v2629 = vrot.slane %v2619, %v2628
  %v2631 = vunpack.c.l.s4 1966171168
  %v2632 = vunpack.c.0.s8 %v2631
  %v2633 = vlaneseq
  %v2634 = vshrl.u32 %v2633, 7
  %v2635 = vsub.s32 %v2632, %v2634
  %v2636 = vrot.slane %v2620, %v2635
  %v2638 = vunpack.c.l.s4 1966171168
  %v2639 = vunpack.c.0.s8 %v2638
  %v2640 = vlaneseq
  %v2641 = vshrl.u32 %v2640, 7
  %v2642 = vsub.s32 %v2639, %v2641
  %v2643 = vrot.slane %v2621, %v2642
  %v2645 = vunpack.c.l.s4 1966171168
  %v2646 = vunpack.c.0.s8 %v2645
  %v2647 = vlaneseq
  %v2648 = vshrl.u32 %v2647, 7
  %v2649 = vsub.s32 %v2646, %v2648
  %v2650 = vrot.slane %v2622, %v2649
  %v2651 = vcombine.low %v2629, %v2636
  %v2652 = vcombine.low %v2643, %v2650
  %v2654 = vunpack.c.l.s4 1966171168
  %v2655 = vunpack.c.0.s8 %v2654
  %v2656 = vlaneseq
  %v2657 = vshrl.u32 %v2656, 7
  %v2658 = vsub.s32 %v2655, %v2657
  %v2659 = vrot.slane %v2651, %v2658
  %v2661 = vunpack.c.l.s4 1966171168
  %v2662 = vunpack.c.0.s8 %v2661
  %v2663 = vlaneseq
  %v2664 = vshrl.u32 %v2663, 7
  %v2665 = vsub.s32 %v2662, %v2664
  %v2666 = vrot.slane %v2652, %v2665
  %v2667 = vcombine.low %v2659, %v2666
  %v2668 = vcombine.low %v1443, %v1447
  %v2669 = vcombine.low %v1451, %v1455
  %v2670 = vcombine.low %v1459, %v1463
  %v2671 = vcombine.low %v1467, %v1471
  %v2673 = vunpack.c.l.s4 1966171168
  %v2674 = vunpack.c.0.s8 %v2673
  %v2675 = vlaneseq
  %v2676 = vshrl.u32 %v2675, 7
  %v2677 = vsub.s32 %v2674, %v2676
  %v2678 = vrot.slane %v2668, %v2677
  %v2680 = vunpack.c.l.s4 1966171168
  %v2681 = vunpack.c.0.s8 %v2680
  %v2682 = vlaneseq
  %v2683 = vshrl.u32 %v2682, 7
  %v2684 = vsub.s32 %v2681, %v2683
  %v2685 = vrot.slane %v2669, %v2684
  %v2687 = vunpack.c.l.s4 1966171168
  %v2688 = vunpack.c.0.s8 %v2687
  %v2689 = vlaneseq
  %v2690 = vshrl.u32 %v2689, 7
  %v2691 = vsub.s32 %v2688, %v2690
  %v2692 = vrot.slane %v2670, %v2691
  %v2694 = vunpack.c.l.s4 1966171168
  %v2695 = vunpack.c.0.s8 %v2694
  %v2696 = vlaneseq
  %v2697 = vshrl.u32 %v2696, 7
  %v2698 = vsub.s32 %v2695, %v2697
  %v2699 = vrot.slane %v2671, %v2698
  %v2700 = vcombine.low %v2678, %v2685
  %v2701 = vcombine.low %v2692, %v2699
  %v2703 = vunpack.c.l.s4 1966171168
  %v2704 = vunpack.c.0.s8 %v2703
  %v2705 = vlaneseq
  %v2706 = vshrl.u32 %v2705, 7
  %v2707 = vsub.s32 %v2704, %v2706
  %v2708 = vrot.slane %v2700, %v2707
  %v2710 = vunpack.c.l.s4 1966171168
  %v2711 = vunpack.c.0.s8 %v2710
  %v2712 = vlaneseq
  %v2713 = vshrl.u32 %v2712, 7
  %v2714 = vsub.s32 %v2711, %v2713
  %v2715 = vrot.slane %v2701, %v2714
  %v2716 = vcombine.low %v2708, %v2715
  %v2717 = vcombine.low %v1475, %v1479
  %v2718 = vcombine.low %v1483, %v1487
  %v2719 = vcombine.low %v1491, %v1495
  %v2720 = vcombine.low %v1499, %v1503
  %v2722 = vunpack.c.l.s4 1966171168
  %v2723 = vunpack.c.0.s8 %v2722
  %v2724 = vlaneseq
  %v2725 = vshrl.u32 %v2724, 7
  %v2726 = vsub.s32 %v2723, %v2725
  %v2727 = vrot.slane %v2717, %v2726
  %v2729 = vunpack.c.l.s4 1966171168
  %v2730 = vunpack.c.0.s8 %v2729
  %v2731 = vlaneseq
  %v2732 = vshrl.u32 %v2731, 7
  %v2733 = vsub.s32 %v2730, %v2732
  %v2734 = vrot.slane %v2718, %v2733
  %v2736 = vunpack.c.l.s4 1966171168
  %v2737 = vunpack.c.0.s8 %v2736
  %v2738 = vlaneseq
  %v2739 = vshrl.u32 %v2738, 7
  %v2740 = vsub.s32 %v2737, %v2739
  %v2741 = vrot.slane %v2719, %v2740
  %v2743 = vunpack.c.l.s4 1966171168
  %v2744 = vunpack.c.0.s8 %v2743
  %v2745 = vlaneseq
  %v2746 = vshrl.u32 %v2745, 7
  %v2747 = vsub.s32 %v2744, %v2746
  %v2748 = vrot.slane %v2720, %v2747
  %v2749 = vcombine.low %v2727, %v2734
  %v2750 = vcombine.low %v2741, %v2748
  %v2752 = vunpack.c.l.s4 1966171168
  %v2753 = vunpack.c.0.s8 %v2752
  %v2754 = vlaneseq
  %v2755 = vshrl.u32 %v2754, 7
  %v2756 = vsub.s32 %v2753, %v2755
  %v2757 = vrot.slane %v2749, %v2756
  %v2759 = vunpack.c.l.s4 1966171168
  %v2760 = vunpack.c.0.s8 %v2759
  %v2761 = vlaneseq
  %v2762 = vshrl.u32 %v2761, 7
  %v2763 = vsub.s32 %v2760, %v2762
  %v2764 = vrot.slane %v2750, %v2763
  %v2765 = vcombine.low %v2757, %v2764
  %v2766 = vcombine.low %v1507, %v1511
  %v2767 = vcombine.low %v1515, %v1519
  %v2768 = vcombine.low %v1523, %v1527
  %v2769 = vcombine.low %v1531, %v1535
  %v2771 = vunpack.c.l.s4 1966171168
  %v2772 = vunpack.c.0.s8 %v2771
  %v2773 = vlaneseq
  %v2774 = vshrl.u32 %v2773, 7
  %v2775 = vsub.s32 %v2772, %v2774
  %v2776 = vrot.slane %v2766, %v2775
  %v2778 = vunpack.c.l.s4 1966171168
  %v2779 = vunpack.c.0.s8 %v2778
  %v2780 = vlaneseq
  %v2781 = vshrl.u32 %v2780, 7
  %v2782 = vsub.s32 %v2779, %v2781
  %v2783 = vrot.slane %v2767, %v2782
  %v2785 = vunpack.c.l.s4 1966171168
  %v2786 = vunpack.c.0.s8 %v2785
  %v2787 = vlaneseq
  %v2788 = vshrl.u32 %v2787, 7
  %v2789 = vsub.s32 %v2786, %v2788
  %v2790 = vrot.slane %v2768, %v2789
  %v2792 = vunpack.c.l.s4 1966171168
  %v2793 = vunpack.c.0.s8 %v2792
  %v2794 = vlaneseq
  %v2795 = vshrl.u32 %v2794, 7
  %v2796 = vsub.s32 %v2793, %v2795
  %v2797 = vrot.slane %v2769, %v2796
  %v2798 = vcombine.low %v2776, %v2783
  %v2799 = vcombine.low %v2790, %v2797
  %v2801 = vunpack.c.l.s4 1966171168
  %v2802 = vunpack.c.0.s8 %v2801
  %v2803 = vlaneseq
  %v2804 = vshrl.u32 %v2803, 7
  %v2805 = vsub.s32 %v2802, %v2804
  %v2806 = vrot.slane %v2798, %v2805
  %v2808 = vunpack.c.l.s4 1966171168
  %v2809 = vunpack.c.0.s8 %v2808
  %v2810 = vlaneseq
  %v2811 = vshrl.u32 %v2810, 7
  %v2812 = vsub.s32 %v2809, %v2811
  %v2813 = vrot.slane %v2799, %v2812
  %v2814 = vcombine.low %v2806, %v2813
  %v2815 = vcombine.low %v1539, %v1543
  %v2816 = vcombine.low %v1547, %v1551
  %v2817 = vcombine.low %v1555, %v1559
  %v2818 = vcombine.low %v1563, %v1567
  %v2820 = vunpack.c.l.s4 1966171168
  %v2821 = vunpack.c.0.s8 %v2820
  %v2822 = vlaneseq
  %v2823 = vshrl.u32 %v2822, 7
  %v2824 = vsub.s32 %v2821, %v2823
  %v2825 = vrot.slane %v2815, %v2824
  %v2827 = vunpack.c.l.s4 1966171168
  %v2828 = vunpack.c.0.s8 %v2827
  %v2829 = vlaneseq
  %v2830 = vshrl.u32 %v2829, 7
  %v2831 = vsub.s32 %v2828, %v2830
  %v2832 = vrot.slane %v2816, %v2831
  %v2834 = vunpack.c.l.s4 1966171168
  %v2835 = vunpack.c.0.s8 %v2834
  %v2836 = vlaneseq
  %v2837 = vshrl.u32 %v2836, 7
  %v2838 = vsub.s32 %v2835, %v2837
  %v2839 = vrot.slane %v2817, %v2838
  %v2841 = vunpack.c.l.s4 1966171168
  %v2842 = vunpack.c.0.s8 %v2841
  %v2843 = vlaneseq
  %v2844 = vshrl.u32 %v2843, 7
  %v2845 = vsub.s32 %v2842, %v2844
  %v2846 = vrot.slane %v2818, %v2845
  %v2847 = vcombine.low %v2825, %v2832
  %v2848 = vcombine.low %v2839, %v2846
  %v2850 = vunpack.c.l.s4 1966171168
  %v2851 = vunpack.c.0.s8 %v2850
  %v2852 = vlaneseq
  %v2853 = vshrl.u32 %v2852, 7
  %v2854 = vsub.s32 %v2851, %v2853
  %v2855 = vrot.slane %v2847, %v2854
  %v2857 = vunpack.c.l.s4 1966171168
  %v2858 = vunpack.c.0.s8 %v2857
  %v2859 = vlaneseq
  %v2860 = vshrl.u32 %v2859, 7
  %v2861 = vsub.s32 %v2858, %v2860
  %v2862 = vrot.slane %v2848, %v2861
  %v2863 = vcombine.low %v2855, %v2862
  %v2864 = vcombine.low %v1571, %v1575
  %v2865 = vcombine.low %v1579, %v1583
  %v2866 = vcombine.low %v1587, %v1591
  %v2867 = vcombine.low %v1595, %v1599
  %v2869 = vunpack.c.l.s4 1966171168
  %v2870 = vunpack.c.0.s8 %v2869
  %v2871 = vlaneseq
  %v2872 = vshrl.u32 %v2871, 7
  %v2873 = vsub.s32 %v2870, %v2872
  %v2874 = vrot.slane %v2864, %v2873
  %v2876 = vunpack.c.l.s4 1966171168
  %v2877 = vunpack.c.0.s8 %v2876
  %v2878 = vlaneseq
  %v2879 = vshrl.u32 %v2878, 7
  %v2880 = vsub.s32 %v2877, %v2879
  %v2881 = vrot.slane %v2865, %v2880
  %v2883 = vunpack.c.l.s4 1966171168
  %v2884 = vunpack.c.0.s8 %v2883
  %v2885 = vlaneseq
  %v2886 = vshrl.u32 %v2885, 7
  %v2887 = vsub.s32 %v2884, %v2886
  %v2888 = vrot.slane %v2866, %v2887
  %v2890 = vunpack.c.l.s4 1966171168
  %v2891 = vunpack.c.0.s8 %v2890
  %v2892 = vlaneseq
  %v2893 = vshrl.u32 %v2892, 7
  %v2894 = vsub.s32 %v2891, %v2893
  %v2895 = vrot.slane %v2867, %v2894
  %v2896 = vcombine.low %v2874, %v2881
  %v2897 = vcombine.low %v2888, %v2895
  %v2899 = vunpack.c.l.s4 1966171168
  %v2900 = vunpack.c.0.s8 %v2899
  %v2901 = vlaneseq
  %v2902 = vshrl.u32 %v2901, 7
  %v2903 = vsub.s32 %v2900, %v2902
  %v2904 = vrot.slane %v2896, %v2903
  %v2906 = vunpack.c.l.s4 1966171168
  %v2907 = vunpack.c.0.s8 %v2906
  %v2908 = vlaneseq
  %v2909 = vshrl.u32 %v2908, 7
  %v2910 = vsub.s32 %v2907, %v2909
  %v2911 = vrot.slane %v2897, %v2910
  %v2912 = vcombine.low %v2904, %v2911
  %v2913 = vcombine.low %v1603, %v1607
  %v2914 = vcombine.low %v1611, %v1615
  %v2915 = vcombine.low %v1619, %v1623
  %v2916 = vcombine.low %v1627, %v1631
  %v2918 = vunpack.c.l.s4 1966171168
  %v2919 = vunpack.c.0.s8 %v2918
  %v2920 = vlaneseq
  %v2921 = vshrl.u32 %v2920, 7
  %v2922 = vsub.s32 %v2919, %v2921
  %v2923 = vrot.slane %v2913, %v2922
  %v2925 = vunpack.c.l.s4 1966171168
  %v2926 = vunpack.c.0.s8 %v2925
  %v2927 = vlaneseq
  %v2928 = vshrl.u32 %v2927, 7
  %v2929 = vsub.s32 %v2926, %v2928
  %v2930 = vrot.slane %v2914, %v2929
  %v2932 = vunpack.c.l.s4 1966171168
  %v2933 = vunpack.c.0.s8 %v2932
  %v2934 = vlaneseq
  %v2935 = vshrl.u32 %v2934, 7
  %v2936 = vsub.s32 %v2933, %v2935
  %v2937 = vrot.slane %v2915, %v2936
  %v2939 = vunpack.c.l.s4 1966171168
  %v2940 = vunpack.c.0.s8 %v2939
  %v2941 = vlaneseq
  %v2942 = vshrl.u32 %v2941, 7
  %v2943 = vsub.s32 %v2940, %v2942
  %v2944 = vrot.slane %v2916, %v2943
  %v2945 = vcombine.low %v2923, %v2930
  %v2946 = vcombine.low %v2937, %v2944
  %v2948 = vunpack.c.l.s4 1966171168
  %v2949 = vunpack.c.0.s8 %v2948
  %v2950 = vlaneseq
  %v2951 = vshrl.u32 %v2950, 7
  %v2952 = vsub.s32 %v2949, %v2951
  %v2953 = vrot.slane %v2945, %v2952
  %v2955 = vunpack.c.l.s4 1966171168
  %v2956 = vunpack.c.0.s8 %v2955
  %v2957 = vlaneseq
  %v2958 = vshrl.u32 %v2957, 7
  %v2959 = vsub.s32 %v2956, %v2958
  %v2960 = vrot.slane %v2946, %v2959
  %v2961 = vcombine.low %v2953, %v2960
  %v2962 = vcombine.low %v1635, %v1639
  %v2963 = vcombine.low %v1643, %v1647
  %v2964 = vcombine.low %v1651, %v1655
  %v2965 = vcombine.low %v1659, %v1663
  %v2967 = vunpack.c.l.s4 1966171168
  %v2968 = vunpack.c.0.s8 %v2967
  %v2969 = vlaneseq
  %v2970 = vshrl.u32 %v2969, 7
  %v2971 = vsub.s32 %v2968, %v2970
  %v2972 = vrot.slane %v2962, %v2971
  %v2974 = vunpack.c.l.s4 1966171168
  %v2975 = vunpack.c.0.s8 %v2974
  %v2976 = vlaneseq
  %v2977 = vshrl.u32 %v2976, 7
  %v2978 = vsub.s32 %v2975, %v2977
  %v2979 = vrot.slane %v2963, %v2978
  %v2981 = vunpack.c.l.s4 1966171168
  %v2982 = vunpack.c.0.s8 %v2981
  %v2983 = vlaneseq
  %v2984 = vshrl.u32 %v2983, 7
  %v2985 = vsub.s32 %v2982, %v2984
  %v2986 = vrot.slane %v2964, %v2985
  %v2988 = vunpack.c.l.s4 1966171168
  %v2989 = vunpack.c.0.s8 %v2988
  %v2990 = vlaneseq
  %v2991 = vshrl.u32 %v2990, 7
  %v2992 = vsub.s32 %v2989, %v2991
  %v2993 = vrot.slane %v2965, %v2992
  %v2994 = vcombine.low %v2972, %v2979
  %v2995 = vcombine.low %v2986, %v2993
  %v2997 = vunpack.c.l.s4 1966171168
  %v2998 = vunpack.c.0.s8 %v2997
  %v2999 = vlaneseq
  %v3000 = vshrl.u32 %v2999, 7
  %v3001 = vsub.s32 %v2998, %v3000
  %v3002 = vrot.slane %v2994, %v3001
  %v3004 = vunpack.c.l.s4 1966171168
  %v3005 = vunpack.c.0.s8 %v3004
  %v3006 = vlaneseq
  %v3007 = vshrl.u32 %v3006, 7
  %v3008 = vsub.s32 %v3005, %v3007
  %v3009 = vrot.slane %v2995, %v3008
  %v3010 = vcombine.low %v3002, %v3009
  %v3011 = vcombine.low %v1667, %v1671
  %v3012 = vcombine.low %v1675, %v1679
  %v3013 = vcombine.low %v1683, %v1687
  %v3014 = vcombine.low %v1691, %v1695
  %v3016 = vunpack.c.l.s4 1966171168
  %v3017 = vunpack.c.0.s8 %v3016
  %v3018 = vlaneseq
  %v3019 = vshrl.u32 %v3018, 7
  %v3020 = vsub.s32 %v3017, %v3019
  %v3021 = vrot.slane %v3011, %v3020
  %v3023 = vunpack.c.l.s4 1966171168
  %v3024 = vunpack.c.0.s8 %v3023
  %v3025 = vlaneseq
  %v3026 = vshrl.u32 %v3025, 7
  %v3027 = vsub.s32 %v3024, %v3026
  %v3028 = vrot.slane %v3012, %v3027
  %v3030 = vunpack.c.l.s4 1966171168
  %v3031 = vunpack.c.0.s8 %v3030
  %v3032 = vlaneseq
  %v3033 = vshrl.u32 %v3032, 7
  %v3034 = vsub.s32 %v3031, %v3033
  %v3035 = vrot.slane %v3013, %v3034
  %v3037 = vunpack.c.l.s4 1966171168
  %v3038 = vunpack.c.0.s8 %v3037
  %v3039 = vlaneseq
  %v3040 = vshrl.u32 %v3039, 7
  %v3041 = vsub.s32 %v3038, %v3040
  %v3042 = vrot.slane %v3014, %v3041
  %v3043 = vcombine.low %v3021, %v3028
  %v3044 = vcombine.low %v3035, %v3042
  %v3046 = vunpack.c.l.s4 1966171168
  %v3047 = vunpack.c.0.s8 %v3046
  %v3048 = vlaneseq
  %v3049 = vshrl.u32 %v3048, 7
  %v3050 = vsub.s32 %v3047, %v3049
  %v3051 = vrot.slane %v3043, %v3050
  %v3053 = vunpack.c.l.s4 1966171168
  %v3054 = vunpack.c.0.s8 %v3053
  %v3055 = vlaneseq
  %v3056 = vshrl.u32 %v3055, 7
  %v3057 = vsub.s32 %v3054, %v3056
  %v3058 = vrot.slane %v3044, %v3057
  %v3059 = vcombine.low %v3051, %v3058
  %v3060 = vcombine.low %v1699, %v1703
  %v3061 = vcombine.low %v1707, %v1711
  %v3062 = vcombine.low %v1715, %v1719
  %v3063 = vcombine.low %v1723, %v1727
  %v3065 = vunpack.c.l.s4 1966171168
  %v3066 = vunpack.c.0.s8 %v3065
  %v3067 = vlaneseq
  %v3068 = vshrl.u32 %v3067, 7
  %v3069 = vsub.s32 %v3066, %v3068
  %v3070 = vrot.slane %v3060, %v3069
  %v3072 = vunpack.c.l.s4 1966171168
  %v3073 = vunpack.c.0.s8 %v3072
  %v3074 = vlaneseq
  %v3075 = vshrl.u32 %v3074, 7
  %v3076 = vsub.s32 %v3073, %v3075
  %v3077 = vrot.slane %v3061, %v3076
  %v3079 = vunpack.c.l.s4 1966171168
  %v3080 = vunpack.c.0.s8 %v3079
  %v3081 = vlaneseq
  %v3082 = vshrl.u32 %v3081, 7
  %v3083 = vsub.s32 %v3080, %v3082
  %v3084 = vrot.slane %v3062, %v3083
  %v3086 = vunpack.c.l.s4 1966171168
  %v3087 = vunpack.c.0.s8 %v3086
  %v3088 = vlaneseq
  %v3089 = vshrl.u32 %v3088, 7
  %v3090 = vsub.s32 %v3087, %v3089
  %v3091 = vrot.slane %v3063, %v3090
  %v3092 = vcombine.low %v3070, %v3077
  %v3093 = vcombine.low %v3084, %v3091
  %v3095 = vunpack.c.l.s4 1966171168
  %v3096 = vunpack.c.0.s8 %v3095
  %v3097 = vlaneseq
  %v3098 = vshrl.u32 %v3097, 7
  %v3099 = vsub.s32 %v3096, %v3098
  %v3100 = vrot.slane %v3092, %v3099
  %v3102 = vunpack.c.l.s4 1966171168
  %v3103 = vunpack.c.0.s8 %v3102
  %v3104 = vlaneseq
  %v3105 = vshrl.u32 %v3104, 7
  %v3106 = vsub.s32 %v3103, %v3105
  %v3107 = vrot.slane %v3093, %v3106
  %v3108 = vcombine.low %v3100, %v3107
  %v3109 = vcombine.low %v1731, %v1735
  %v3110 = vcombine.low %v1739, %v1743
  %v3111 = vcombine.low %v1747, %v1751
  %v3112 = vcombine.low %v1755, %v1759
  %v3114 = vunpack.c.l.s4 1966171168
  %v3115 = vunpack.c.0.s8 %v3114
  %v3116 = vlaneseq
  %v3117 = vshrl.u32 %v3116, 7
  %v3118 = vsub.s32 %v3115, %v3117
  %v3119 = vrot.slane %v3109, %v3118
  %v3121 = vunpack.c.l.s4 1966171168
  %v3122 = vunpack.c.0.s8 %v3121
  %v3123 = vlaneseq
  %v3124 = vshrl.u32 %v3123, 7
  %v3125 = vsub.s32 %v3122, %v3124
  %v3126 = vrot.slane %v3110, %v3125
  %v3128 = vunpack.c.l.s4 1966171168
  %v3129 = vunpack.c.0.s8 %v3128
  %v3130 = vlaneseq
  %v3131 = vshrl.u32 %v3130, 7
  %v3132 = vsub.s32 %v3129, %v3131
  %v3133 = vrot.slane %v3111, %v3132
  %v3135 = vunpack.c.l.s4 1966171168
  %v3136 = vunpack.c.0.s8 %v3135
  %v3137 = vlaneseq
  %v3138 = vshrl.u32 %v3137, 7
  %v3139 = vsub.s32 %v3136, %v3138
  %v3140 = vrot.slane %v3112, %v3139
  %v3141 = vcombine.low %v3119, %v3126
  %v3142 = vcombine.low %v3133, %v3140
  %v3144 = vunpack.c.l.s4 1966171168
  %v3145 = vunpack.c.0.s8 %v3144
  %v3146 = vlaneseq
  %v3147 = vshrl.u32 %v3146, 7
  %v3148 = vsub.s32 %v3145, %v3147
  %v3149 = vrot.slane %v3141, %v3148
  %v3151 = vunpack.c.l.s4 1966171168
  %v3152 = vunpack.c.0.s8 %v3151
  %v3153 = vlaneseq
  %v3154 = vshrl.u32 %v3153, 7
  %v3155 = vsub.s32 %v3152, %v3154
  %v3156 = vrot.slane %v3142, %v3155
  %v3157 = vcombine.low %v3149, %v3156
  %v3158 = vcombine.low %v1763, %v1767
  %v3159 = vcombine.low %v1771, %v1775
  %v3160 = vcombine.low %v1779, %v1783
  %v3161 = vcombine.low %v1787, %v1791
  %v3163 = vunpack.c.l.s4 1966171168
  %v3164 = vunpack.c.0.s8 %v3163
  %v3165 = vlaneseq
  %v3166 = vshrl.u32 %v3165, 7
  %v3167 = vsub.s32 %v3164, %v3166
  %v3168 = vrot.slane %v3158, %v3167
  %v3170 = vunpack.c.l.s4 1966171168
  %v3171 = vunpack.c.0.s8 %v3170
  %v3172 = vlaneseq
  %v3173 = vshrl.u32 %v3172, 7
  %v3174 = vsub.s32 %v3171, %v3173
  %v3175 = vrot.slane %v3159, %v3174
  %v3177 = vunpack.c.l.s4 1966171168
  %v3178 = vunpack.c.0.s8 %v3177
  %v3179 = vlaneseq
  %v3180 = vshrl.u32 %v3179, 7
  %v3181 = vsub.s32 %v3178, %v3180
  %v3182 = vrot.slane %v3160, %v3181
  %v3184 = vunpack.c.l.s4 1966171168
  %v3185 = vunpack.c.0.s8 %v3184
  %v3186 = vlaneseq
  %v3187 = vshrl.u32 %v3186, 7
  %v3188 = vsub.s32 %v3185, %v3187
  %v3189 = vrot.slane %v3161, %v3188
  %v3190 = vcombine.low %v3168, %v3175
  %v3191 = vcombine.low %v3182, %v3189
  %v3193 = vunpack.c.l.s4 1966171168
  %v3194 = vunpack.c.0.s8 %v3193
  %v3195 = vlaneseq
  %v3196 = vshrl.u32 %v3195, 7
  %v3197 = vsub.s32 %v3194, %v3196
  %v3198 = vrot.slane %v3190, %v3197
  %v3200 = vunpack.c.l.s4 1966171168
  %v3201 = vunpack.c.0.s8 %v3200
  %v3202 = vlaneseq
  %v3203 = vshrl.u32 %v3202, 7
  %v3204 = vsub.s32 %v3201, %v3203
  %v3205 = vrot.slane %v3191, %v3204
  %v3206 = vcombine.low %v3198, %v3205
  %v3207 = vcombine.low %v1795, %v1799
  %v3208 = vcombine.low %v1803, %v1807
  %v3209 = vcombine.low %v1811, %v1815
  %v3210 = vcombine.low %v1819, %v1823
  %v3212 = vunpack.c.l.s4 1966171168
  %v3213 = vunpack.c.0.s8 %v3212
  %v3214 = vlaneseq
  %v3215 = vshrl.u32 %v3214, 7
  %v3216 = vsub.s32 %v3213, %v3215
  %v3217 = vrot.slane %v3207, %v3216
  %v3219 = vunpack.c.l.s4 1966171168
  %v3220 = vunpack.c.0.s8 %v3219
  %v3221 = vlaneseq
  %v3222 = vshrl.u32 %v3221, 7
  %v3223 = vsub.s32 %v3220, %v3222
  %v3224 = vrot.slane %v3208, %v3223
  %v3226 = vunpack.c.l.s4 1966171168
  %v3227 = vunpack.c.0.s8 %v3226
  %v3228 = vlaneseq
  %v3229 = vshrl.u32 %v3228, 7
  %v3230 = vsub.s32 %v3227, %v3229
  %v3231 = vrot.slane %v3209, %v3230
  %v3233 = vunpack.c.l.s4 1966171168
  %v3234 = vunpack.c.0.s8 %v3233
  %v3235 = vlaneseq
  %v3236 = vshrl.u32 %v3235, 7
  %v3237 = vsub.s32 %v3234, %v3236
  %v3238 = vrot.slane %v3210, %v3237
  %v3239 = vcombine.low %v3217, %v3224
  %v3240 = vcombine.low %v3231, %v3238
  %v3242 = vunpack.c.l.s4 1966171168
  %v3243 = vunpack.c.0.s8 %v3242
  %v3244 = vlaneseq
  %v3245 = vshrl.u32 %v3244, 7
  %v3246 = vsub.s32 %v3243, %v3245
  %v3247 = vrot.slane %v3239, %v3246
  %v3249 = vunpack.c.l.s4 1966171168
  %v3250 = vunpack.c.0.s8 %v3249
  %v3251 = vlaneseq
  %v3252 = vshrl.u32 %v3251, 7
  %v3253 = vsub.s32 %v3250, %v3252
  %v3254 = vrot.slane %v3240, %v3253
  %v3255 = vcombine.low %v3247, %v3254
  %v3256 = vcombine.low %v1827, %v1831
  %v3257 = vcombine.low %v1835, %v1839
  %v3258 = vcombine.low %v1843, %v1847
  %v3259 = vcombine.low %v1851, %v1855
  %v3261 = vunpack.c.l.s4 1966171168
  %v3262 = vunpack.c.0.s8 %v3261
  %v3263 = vlaneseq
  %v3264 = vshrl.u32 %v3263, 7
  %v3265 = vsub.s32 %v3262, %v3264
  %v3266 = vrot.slane %v3256, %v3265
  %v3268 = vunpack.c.l.s4 1966171168
  %v3269 = vunpack.c.0.s8 %v3268
  %v3270 = vlaneseq
  %v3271 = vshrl.u32 %v3270, 7
  %v3272 = vsub.s32 %v3269, %v3271
  %v3273 = vrot.slane %v3257, %v3272
  %v3275 = vunpack.c.l.s4 1966171168
  %v3276 = vunpack.c.0.s8 %v3275
  %v3277 = vlaneseq
  %v3278 = vshrl.u32 %v3277, 7
  %v3279 = vsub.s32 %v3276, %v3278
  %v3280 = vrot.slane %v3258, %v3279
  %v3282 = vunpack.c.l.s4 1966171168
  %v3283 = vunpack.c.0.s8 %v3282
  %v3284 = vlaneseq
  %v3285 = vshrl.u32 %v3284, 7
  %v3286 = vsub.s32 %v3283, %v3285
  %v3287 = vrot.slane %v3259, %v3286
  %v3288 = vcombine.low %v3266, %v3273
  %v3289 = vcombine.low %v3280, %v3287
  %v3291 = vunpack.c.l.s4 1966171168
  %v3292 = vunpack.c.0.s8 %v3291
  %v3293 = vlaneseq
  %v3294 = vshrl.u32 %v3293, 7
  %v3295 = vsub.s32 %v3292, %v3294
  %v3296 = vrot.slane %v3288, %v3295
  %v3298 = vunpack.c.l.s4 1966171168
  %v3299 = vunpack.c.0.s8 %v3298
  %v3300 = vlaneseq
  %v3301 = vshrl.u32 %v3300, 7
  %v3302 = vsub.s32 %v3299, %v3301
  %v3303 = vrot.slane %v3289, %v3302
  %v3304 = vcombine.low %v3296, %v3303
  %v3305 = vcombine.low %v1859, %v1863
  %v3306 = vcombine.low %v1867, %v1871
  %v3307 = vcombine.low %v1875, %v1879
  %v3308 = vcombine.low %v1883, %v1887
  %v3310 = vunpack.c.l.s4 1966171168
  %v3311 = vunpack.c.0.s8 %v3310
  %v3312 = vlaneseq
  %v3313 = vshrl.u32 %v3312, 7
  %v3314 = vsub.s32 %v3311, %v3313
  %v3315 = vrot.slane %v3305, %v3314
  %v3317 = vunpack.c.l.s4 1966171168
  %v3318 = vunpack.c.0.s8 %v3317
  %v3319 = vlaneseq
  %v3320 = vshrl.u32 %v3319, 7
  %v3321 = vsub.s32 %v3318, %v3320
  %v3322 = vrot.slane %v3306, %v3321
  %v3324 = vunpack.c.l.s4 1966171168
  %v3325 = vunpack.c.0.s8 %v3324
  %v3326 = vlaneseq
  %v3327 = vshrl.u32 %v3326, 7
  %v3328 = vsub.s32 %v3325, %v3327
  %v3329 = vrot.slane %v3307, %v3328
  %v3331 = vunpack.c.l.s4 1966171168
  %v3332 = vunpack.c.0.s8 %v3331
  %v3333 = vlaneseq
  %v3334 = vshrl.u32 %v3333, 7
  %v3335 = vsub.s32 %v3332, %v3334
  %v3336 = vrot.slane %v3308, %v3335
  %v3337 = vcombine.low %v3315, %v3322
  %v3338 = vcombine.low %v3329, %v3336
  %v3340 = vunpack.c.l.s4 1966171168
  %v3341 = vunpack.c.0.s8 %v3340
  %v3342 = vlaneseq
  %v3343 = vshrl.u32 %v3342, 7
  %v3344 = vsub.s32 %v3341, %v3343
  %v3345 = vrot.slane %v3337, %v3344
  %v3347 = vunpack.c.l.s4 1966171168
  %v3348 = vunpack.c.0.s8 %v3347
  %v3349 = vlaneseq
  %v3350 = vshrl.u32 %v3349, 7
  %v3351 = vsub.s32 %v3348, %v3350
  %v3352 = vrot.slane %v3338, %v3351
  %v3353 = vcombine.low %v3345, %v3352
  %v3354 = vcombine.low %v1891, %v1895
  %v3355 = vcombine.low %v1899, %v1903
  %v3356 = vcombine.low %v1907, %v1911
  %v3357 = vcombine.low %v1915, %v1919
  %v3359 = vunpack.c.l.s4 1966171168
  %v3360 = vunpack.c.0.s8 %v3359
  %v3361 = vlaneseq
  %v3362 = vshrl.u32 %v3361, 7
  %v3363 = vsub.s32 %v3360, %v3362
  %v3364 = vrot.slane %v3354, %v3363
  %v3366 = vunpack.c.l.s4 1966171168
  %v3367 = vunpack.c.0.s8 %v3366
  %v3368 = vlaneseq
  %v3369 = vshrl.u32 %v3368, 7
  %v3370 = vsub.s32 %v3367, %v3369
  %v3371 = vrot.slane %v3355, %v3370
  %v3373 = vunpack.c.l.s4 1966171168
  %v3374 = vunpack.c.0.s8 %v3373
  %v3375 = vlaneseq
  %v3376 = vshrl.u32 %v3375, 7
  %v3377 = vsub.s32 %v3374, %v3376
  %v3378 = vrot.slane %v3356, %v3377
  %v3380 = vunpack.c.l.s4 1966171168
  %v3381 = vunpack.c.0.s8 %v3380
  %v3382 = vlaneseq
  %v3383 = vshrl.u32 %v3382, 7
  %v3384 = vsub.s32 %v3381, %v3383
  %v3385 = vrot.slane %v3357, %v3384
  %v3386 = vcombine.low %v3364, %v3371
  %v3387 = vcombine.low %v3378, %v3385
  %v3389 = vunpack.c.l.s4 1966171168
  %v3390 = vunpack.c.0.s8 %v3389
  %v3391 = vlaneseq
  %v3392 = vshrl.u32 %v3391, 7
  %v3393 = vsub.s32 %v3390, %v3392
  %v3394 = vrot.slane %v3386, %v3393
  %v3396 = vunpack.c.l.s4 1966171168
  %v3397 = vunpack.c.0.s8 %v3396
  %v3398 = vlaneseq
  %v3399 = vshrl.u32 %v3398, 7
  %v3400 = vsub.s32 %v3397, %v3399
  %v3401 = vrot.slane %v3387, %v3400
  %v3402 = vcombine.low %v3394, %v3401
  %v3403 = vcombine.low %v1923, %v1927
  %v3404 = vcombine.low %v1931, %v1935
  %v3405 = vcombine.low %v1939, %v1943
  %v3406 = vcombine.low %v1947, %v1951
  %v3408 = vunpack.c.l.s4 1966171168
  %v3409 = vunpack.c.0.s8 %v3408
  %v3410 = vlaneseq
  %v3411 = vshrl.u32 %v3410, 7
  %v3412 = vsub.s32 %v3409, %v3411
  %v3413 = vrot.slane %v3403, %v3412
  %v3415 = vunpack.c.l.s4 1966171168
  %v3416 = vunpack.c.0.s8 %v3415
  %v3417 = vlaneseq
  %v3418 = vshrl.u32 %v3417, 7
  %v3419 = vsub.s32 %v3416, %v3418
  %v3420 = vrot.slane %v3404, %v3419
  %v3422 = vunpack.c.l.s4 1966171168
  %v3423 = vunpack.c.0.s8 %v3422
  %v3424 = vlaneseq
  %v3425 = vshrl.u32 %v3424, 7
  %v3426 = vsub.s32 %v3423, %v3425
  %v3427 = vrot.slane %v3405, %v3426
  %v3429 = vunpack.c.l.s4 1966171168
  %v3430 = vunpack.c.0.s8 %v3429
  %v3431 = vlaneseq
  %v3432 = vshrl.u32 %v3431, 7
  %v3433 = vsub.s32 %v3430, %v3432
  %v3434 = vrot.slane %v3406, %v3433
  %v3435 = vcombine.low %v3413, %v3420
  %v3436 = vcombine.low %v3427, %v3434
  %v3438 = vunpack.c.l.s4 1966171168
  %v3439 = vunpack.c.0.s8 %v3438
  %v3440 = vlaneseq
  %v3441 = vshrl.u32 %v3440, 7
  %v3442 = vsub.s32 %v3439, %v3441
  %v3443 = vrot.slane %v3435, %v3442
  %v3445 = vunpack.c.l.s4 1966171168
  %v3446 = vunpack.c.0.s8 %v3445
  %v3447 = vlaneseq
  %v3448 = vshrl.u32 %v3447, 7
  %v3449 = vsub.s32 %v3446, %v3448
  %v3450 = vrot.slane %v3436, %v3449
  %v3451 = vcombine.low %v3443, %v3450
  %v3452 = vcombine.low %v1955, %v1959
  %v3453 = vcombine.low %v1963, %v1967
  %v3454 = vcombine.low %v1971, %v1975
  %v3455 = vcombine.low %v1979, %v1983
  %v3457 = vunpack.c.l.s4 1966171168
  %v3458 = vunpack.c.0.s8 %v3457
  %v3459 = vlaneseq
  %v3460 = vshrl.u32 %v3459, 7
  %v3461 = vsub.s32 %v3458, %v3460
  %v3462 = vrot.slane %v3452, %v3461
  %v3464 = vunpack.c.l.s4 1966171168
  %v3465 = vunpack.c.0.s8 %v3464
  %v3466 = vlaneseq
  %v3467 = vshrl.u32 %v3466, 7
  %v3468 = vsub.s32 %v3465, %v3467
  %v3469 = vrot.slane %v3453, %v3468
  %v3471 = vunpack.c.l.s4 1966171168
  %v3472 = vunpack.c.0.s8 %v3471
  %v3473 = vlaneseq
  %v3474 = vshrl.u32 %v3473, 7
  %v3475 = vsub.s32 %v3472, %v3474
  %v3476 = vrot.slane %v3454, %v3475
  %v3478 = vunpack.c.l.s4 1966171168
  %v3479 = vunpack.c.0.s8 %v3478
  %v3480 = vlaneseq
  %v3481 = vshrl.u32 %v3480, 7
  %v3482 = vsub.s32 %v3479, %v3481
  %v3483 = vrot.slane %v3455, %v3482
  %v3484 = vcombine.low %v3462, %v3469
  %v3485 = vcombine.low %v3476, %v3483
  %v3487 = vunpack.c.l.s4 1966171168
  %v3488 = vunpack.c.0.s8 %v3487
  %v3489 = vlaneseq
  %v3490 = vshrl.u32 %v3489, 7
  %v3491 = vsub.s32 %v3488, %v3490
  %v3492 = vrot.slane %v3484, %v3491
  %v3494 = vunpack.c.l.s4 1966171168
  %v3495 = vunpack.c.0.s8 %v3494
  %v3496 = vlaneseq
  %v3497 = vshrl.u32 %v3496, 7
  %v3498 = vsub.s32 %v3495, %v3497
  %v3499 = vrot.slane %v3485, %v3498
  %v3500 = vcombine.low %v3492, %v3499
  %v3501 = vcombine.low %v1987, %v1991
  %v3502 = vcombine.low %v1995, %v1999
  %v3503 = vcombine.low %v2003, %v2007
  %v3504 = vcombine.low %v2011, %v2015
  %v3506 = vunpack.c.l.s4 1966171168
  %v3507 = vunpack.c.0.s8 %v3506
  %v3508 = vlaneseq
  %v3509 = vshrl.u32 %v3508, 7
  %v3510 = vsub.s32 %v3507, %v3509
  %v3511 = vrot.slane %v3501, %v3510
  %v3513 = vunpack.c.l.s4 1966171168
  %v3514 = vunpack.c.0.s8 %v3513
  %v3515 = vlaneseq
  %v3516 = vshrl.u32 %v3515, 7
  %v3517 = vsub.s32 %v3514, %v3516
  %v3518 = vrot.slane %v3502, %v3517
  %v3520 = vunpack.c.l.s4 1966171168
  %v3521 = vunpack.c.0.s8 %v3520
  %v3522 = vlaneseq
  %v3523 = vshrl.u32 %v3522, 7
  %v3524 = vsub.s32 %v3521, %v3523
  %v3525 = vrot.slane %v3503, %v3524
  %v3527 = vunpack.c.l.s4 1966171168
  %v3528 = vunpack.c.0.s8 %v3527
  %v3529 = vlaneseq
  %v3530 = vshrl.u32 %v3529, 7
  %v3531 = vsub.s32 %v3528, %v3530
  %v3532 = vrot.slane %v3504, %v3531
  %v3533 = vcombine.low %v3511, %v3518
  %v3534 = vcombine.low %v3525, %v3532
  %v3536 = vunpack.c.l.s4 1966171168
  %v3537 = vunpack.c.0.s8 %v3536
  %v3538 = vlaneseq
  %v3539 = vshrl.u32 %v3538, 7
  %v3540 = vsub.s32 %v3537, %v3539
  %v3541 = vrot.slane %v3533, %v3540
  %v3543 = vunpack.c.l.s4 1966171168
  %v3544 = vunpack.c.0.s8 %v3543
  %v3545 = vlaneseq
  %v3546 = vshrl.u32 %v3545, 7
  %v3547 = vsub.s32 %v3544, %v3546
  %v3548 = vrot.slane %v3534, %v3547
  %v3549 = vcombine.low %v3541, %v3548
  %v3550 = vcombine.low %v2019, %v2023
  %v3551 = vcombine.low %v2027, %v2031
  %v3552 = vcombine.low %v2035, %v2039
  %v3553 = vcombine.low %v2043, %v2047
  %v3555 = vunpack.c.l.s4 1966171168
  %v3556 = vunpack.c.0.s8 %v3555
  %v3557 = vlaneseq
  %v3558 = vshrl.u32 %v3557, 7
  %v3559 = vsub.s32 %v3556, %v3558
  %v3560 = vrot.slane %v3550, %v3559
  %v3562 = vunpack.c.l.s4 1966171168
  %v3563 = vunpack.c.0.s8 %v3562
  %v3564 = vlaneseq
  %v3565 = vshrl.u32 %v3564, 7
  %v3566 = vsub.s32 %v3563, %v3565
  %v3567 = vrot.slane %v3551, %v3566
  %v3569 = vunpack.c.l.s4 1966171168
  %v3570 = vunpack.c.0.s8 %v3569
  %v3571 = vlaneseq
  %v3572 = vshrl.u32 %v3571, 7
  %v3573 = vsub.s32 %v3570, %v3572
  %v3574 = vrot.slane %v3552, %v3573
  %v3576 = vunpack.c.l.s4 1966171168
  %v3577 = vunpack.c.0.s8 %v3576
  %v3578 = vlaneseq
  %v3579 = vshrl.u32 %v3578, 7
  %v3580 = vsub.s32 %v3577, %v3579
  %v3581 = vrot.slane %v3553, %v3580
  %v3582 = vcombine.low %v3560, %v3567
  %v3583 = vcombine.low %v3574, %v3581
  %v3585 = vunpack.c.l.s4 1966171168
  %v3586 = vunpack.c.0.s8 %v3585
  %v3587 = vlaneseq
  %v3588 = vshrl.u32 %v3587, 7
  %v3589 = vsub.s32 %v3586, %v3588
  %v3590 = vrot.slane %v3582, %v3589
  %v3592 = vunpack.c.l.s4 1966171168
  %v3593 = vunpack.c.0.s8 %v3592
  %v3594 = vlaneseq
  %v3595 = vshrl.u32 %v3594, 7
  %v3596 = vsub.s32 %v3593, %v3595
  %v3597 = vrot.slane %v3583, %v3596
  %v3598 = vcombine.low %v3590, %v3597
  %v3599 = vcombine.low %v2051, %v2055
  %v3600 = vcombine.low %v2059, %v2063
  %v3601 = vcombine.low %v2067, %v2071
  %v3602 = vcombine.low %v2075, %v2079
  %v3604 = vunpack.c.l.s4 1966171168
  %v3605 = vunpack.c.0.s8 %v3604
  %v3606 = vlaneseq
  %v3607 = vshrl.u32 %v3606, 7
  %v3608 = vsub.s32 %v3605, %v3607
  %v3609 = vrot.slane %v3599, %v3608
  %v3611 = vunpack.c.l.s4 1966171168
  %v3612 = vunpack.c.0.s8 %v3611
  %v3613 = vlaneseq
  %v3614 = vshrl.u32 %v3613, 7
  %v3615 = vsub.s32 %v3612, %v3614
  %v3616 = vrot.slane %v3600, %v3615
  %v3618 = vunpack.c.l.s4 1966171168
  %v3619 = vunpack.c.0.s8 %v3618
  %v3620 = vlaneseq
  %v3621 = vshrl.u32 %v3620, 7
  %v3622 = vsub.s32 %v3619, %v3621
  %v3623 = vrot.slane %v3601, %v3622
  %v3625 = vunpack.c.l.s4 1966171168
  %v3626 = vunpack.c.0.s8 %v3625
  %v3627 = vlaneseq
  %v3628 = vshrl.u32 %v3627, 7
  %v3629 = vsub.s32 %v3626, %v3628
  %v3630 = vrot.slane %v3602, %v3629
  %v3631 = vcombine.low %v3609, %v3616
  %v3632 = vcombine.low %v3623, %v3630
  %v3634 = vunpack.c.l.s4 1966171168
  %v3635 = vunpack.c.0.s8 %v3634
  %v3636 = vlaneseq
  %v3637 = vshrl.u32 %v3636, 7
  %v3638 = vsub.s32 %v3635, %v3637
  %v3639 = vrot.slane %v3631, %v3638
  %v3641 = vunpack.c.l.s4 1966171168
  %v3642 = vunpack.c.0.s8 %v3641
  %v3643 = vlaneseq
  %v3644 = vshrl.u32 %v3643, 7
  %v3645 = vsub.s32 %v3642, %v3644
  %v3646 = vrot.slane %v3632, %v3645
  %v3647 = vcombine.low %v3639, %v3646
  %3648 = vset.pattern.permute.xlu0 0
  %3649 = vperm.xlu0 %3648, %v2128
  %v3650 = vpop.permute.xlu0 %3649
  %3651 = vset.pattern.permute.xlu0 0
  %3652 = vperm.xlu0 %3651, %v2177
  %v3653 = vpop.permute.xlu0 %3652
  %3654 = vset.pattern.permute.xlu0 0
  %3655 = vperm.xlu0 %3654, %v2226
  %v3656 = vpop.permute.xlu0 %3655
  %3657 = vset.pattern.permute.xlu0 0
  %3658 = vperm.xlu0 %3657, %v2275
  %v3659 = vpop.permute.xlu0 %3658
  %3660 = vset.pattern.permute.xlu0 0
  %3661 = vperm.xlu0 %3660, %v2324
  %v3662 = vpop.permute.xlu0 %3661
  %3663 = vset.pattern.permute.xlu0 0
  %3664 = vperm.xlu0 %3663, %v2373
  %v3665 = vpop.permute.xlu0 %3664
  %3666 = vset.pattern.permute.xlu0 0
  %3667 = vperm.xlu0 %3666, %v2422
  %v3668 = vpop.permute.xlu0 %3667
  %3669 = vset.pattern.permute.xlu0 0
  %3670 = vperm.xlu0 %3669, %v2471
  %v3671 = vpop.permute.xlu0 %3670
  %3672 = vset.pattern.permute.xlu0 0
  %3673 = vperm.xlu0 %3672, %v2520
  %v3674 = vpop.permute.xlu0 %3673
  %3675 = vset.pattern.permute.xlu0 0
  %3676 = vperm.xlu0 %3675, %v2569
  %v3677 = vpop.permute.xlu0 %3676
  %3678 = vset.pattern.permute.xlu0 0
  %3679 = vperm.xlu0 %3678, %v2618
  %v3680 = vpop.permute.xlu0 %3679
  %3681 = vset.pattern.permute.xlu0 0
  %3682 = vperm.xlu0 %3681, %v2667
  %v3683 = vpop.permute.xlu0 %3682
  %3684 = vset.pattern.permute.xlu0 0
  %3685 = vperm.xlu0 %3684, %v2716
  %v3686 = vpop.permute.xlu0 %3685
  %3687 = vset.pattern.permute.xlu0 0
  %3688 = vperm.xlu0 %3687, %v2765
  %v3689 = vpop.permute.xlu0 %3688
  %3690 = vset.pattern.permute.xlu0 0
  %3691 = vperm.xlu0 %3690, %v2814
  %v3692 = vpop.permute.xlu0 %3691
  %3693 = vset.pattern.permute.xlu0 0
  %3694 = vperm.xlu0 %3693, %v2863
  %v3695 = vpop.permute.xlu0 %3694
  %3696 = vset.pattern.permute.xlu0 0
  %3697 = vperm.xlu0 %3696, %v2912
  %v3698 = vpop.permute.xlu0 %3697
  %3699 = vset.pattern.permute.xlu0 0
  %3700 = vperm.xlu0 %3699, %v2961
  %v3701 = vpop.permute.xlu0 %3700
  %3702 = vset.pattern.permute.xlu0 0
  %3703 = vperm.xlu0 %3702, %v3010
  %v3704 = vpop.permute.xlu0 %3703
  %3705 = vset.pattern.permute.xlu0 0
  %3706 = vperm.xlu0 %3705, %v3059
  %v3707 = vpop.permute.xlu0 %3706
  %3708 = vset.pattern.permute.xlu0 0
  %3709 = vperm.xlu0 %3708, %v3108
  %v3710 = vpop.permute.xlu0 %3709
  %3711 = vset.pattern.permute.xlu0 0
  %3712 = vperm.xlu0 %3711, %v3157
  %v3713 = vpop.permute.xlu0 %3712
  %3714 = vset.pattern.permute.xlu0 0
  %3715 = vperm.xlu0 %3714, %v3206
  %v3716 = vpop.permute.xlu0 %3715
  %3717 = vset.pattern.permute.xlu0 0
  %3718 = vperm.xlu0 %3717, %v3255
  %v3719 = vpop.permute.xlu0 %3718
  %3720 = vset.pattern.permute.xlu0 0
  %3721 = vperm.xlu0 %3720, %v3304
  %v3722 = vpop.permute.xlu0 %3721
  %3723 = vset.pattern.permute.xlu0 0
  %3724 = vperm.xlu0 %3723, %v3353
  %v3725 = vpop.permute.xlu0 %3724
  %3726 = vset.pattern.permute.xlu0 0
  %3727 = vperm.xlu0 %3726, %v3402
  %v3728 = vpop.permute.xlu0 %3727
  %3729 = vset.pattern.permute.xlu0 0
  %3730 = vperm.xlu0 %3729, %v3451
  %v3731 = vpop.permute.xlu0 %3730
  %3732 = vset.pattern.permute.xlu0 0
  %3733 = vperm.xlu0 %3732, %v3500
  %v3734 = vpop.permute.xlu0 %3733
  %3735 = vset.pattern.permute.xlu0 0
  %3736 = vperm.xlu0 %3735, %v3549
  %v3737 = vpop.permute.xlu0 %3736
  %3738 = vset.pattern.permute.xlu0 0
  %3739 = vperm.xlu0 %3738, %v3598
  %v3740 = vpop.permute.xlu0 %3739
  %3741 = vset.pattern.permute.xlu0 0
  %3742 = vperm.xlu0 %3741, %v3647
  %v3743 = vpop.permute.xlu0 %3742
  %v3744 = vlaneseq
  %v3745 = vand.u32 %v3744, 127
  %v3746 = vlaneseq
  %v3747 = vshrl.u32 %v3746, 7
  %v3748 = vsub.s32 %v3745, %v3747
  %v3749 = vrot.slane %v3650, %v3748
  %v3750 = vadd.s32 %v3745, 4294967288
  %v3751 = vlaneseq
  %v3752 = vshrl.u32 %v3751, 7
  %v3753 = vsub.s32 %v3750, %v3752
  %v3754 = vrot.slane %v3653, %v3753
  %vm3755 = vcmask 130112
  %v3756 = vsel %vm3755, %v3754, %v3749
  %v3757 = vadd.s32 %v3745, 4294967280
  %v3758 = vlaneseq
  %v3759 = vshrl.u32 %v3758, 7
  %v3760 = vsub.s32 %v3757, %v3759
  %v3761 = vrot.slane %v3656, %v3760
  %vm3762 = vcmask 195712
  %v3763 = vsel %vm3762, %v3761, %v3756
  %v3764 = vadd.s32 %v3745, 4294967272
  %v3765 = vlaneseq
  %v3766 = vshrl.u32 %v3765, 7
  %v3767 = vsub.s32 %v3764, %v3766
  %v3768 = vrot.slane %v3659, %v3767
  %vm3769 = vcmask 261312
  %v3770 = vsel %vm3769, %v3768, %v3763
  %v3771 = vadd.s32 %v3745, 4294967264
  %v3772 = vlaneseq
  %v3773 = vshrl.u32 %v3772, 7
  %v3774 = vsub.s32 %v3771, %v3773
  %v3775 = vrot.slane %v3662, %v3774
  %vm3776 = vcmask 326912
  %v3777 = vsel %vm3776, %v3775, %v3770
  %v3778 = vadd.s32 %v3745, 4294967256
  %v3779 = vlaneseq
  %v3780 = vshrl.u32 %v3779, 7
  %v3781 = vsub.s32 %v3778, %v3780
  %v3782 = vrot.slane %v3665, %v3781
  %vm3783 = vcmask 392512
  %v3784 = vsel %vm3783, %v3782, %v3777
  %v3785 = vadd.s32 %v3745, 4294967248
  %v3786 = vlaneseq
  %v3787 = vshrl.u32 %v3786, 7
  %v3788 = vsub.s32 %v3785, %v3787
  %v3789 = vrot.slane %v3668, %v3788
  %vm3790 = vcmask 458112
  %v3791 = vsel %vm3790, %v3789, %v3784
  %v3792 = vadd.s32 %v3745, 4294967240
  %v3793 = vlaneseq
  %v3794 = vshrl.u32 %v3793, 7
  %v3795 = vsub.s32 %v3792, %v3794
  %v3796 = vrot.slane %v3671, %v3795
  %vm3797 = vcmask 523712
  %v3798 = vsel %vm3797, %v3796, %v3791
  %v3799 = vadd.s32 %v3745, 4294967232
  %v3800 = vlaneseq
  %v3801 = vshrl.u32 %v3800, 7
  %v3802 = vsub.s32 %v3799, %v3801
  %v3803 = vrot.slane %v3674, %v3802
  %vm3804 = vcmask 589312
  %v3805 = vsel %vm3804, %v3803, %v3798
  %v3806 = vadd.s32 %v3745, 4294967224
  %v3807 = vlaneseq
  %v3808 = vshrl.u32 %v3807, 7
  %v3809 = vsub.s32 %v3806, %v3808
  %v3810 = vrot.slane %v3677, %v3809
  %vm3811 = vcmask 654912
  %v3812 = vsel %vm3811, %v3810, %v3805
  %v3813 = vadd.s32 %v3745, 4294967216
  %v3814 = vlaneseq
  %v3815 = vshrl.u32 %v3814, 7
  %v3816 = vsub.s32 %v3813, %v3815
  %v3817 = vrot.slane %v3680, %v3816
  %vm3818 = vcmask 720512
  %v3819 = vsel %vm3818, %v3817, %v3812
  %v3820 = vadd.s32 %v3745, 4294967208
  %v3821 = vlaneseq
  %v3822 = vshrl.u32 %v3821, 7
  %v3823 = vsub.s32 %v3820, %v3822
  %v3824 = vrot.slane %v3683, %v3823
  %vm3825 = vcmask 786112
  %v3826 = vsel %vm3825, %v3824, %v3819
  %v3827 = vadd.s32 %v3745, 4294967200
  %v3828 = vlaneseq
  %v3829 = vshrl.u32 %v3828, 7
  %v3830 = vsub.s32 %v3827, %v3829
  %v3831 = vrot.slane %v3686, %v3830
  %vm3832 = vcmask 851712
  %v3833 = vsel %vm3832, %v3831, %v3826
  %v3834 = vadd.s32 %v3745, 4294967192
  %v3835 = vlaneseq
  %v3836 = vshrl.u32 %v3835, 7
  %v3837 = vsub.s32 %v3834, %v3836
  %v3838 = vrot.slane %v3689, %v3837
  %vm3839 = vcmask 917312
  %v3840 = vsel %vm3839, %v3838, %v3833
  %v3841 = vadd.s32 %v3745, 4294967184
  %v3842 = vlaneseq
  %v3843 = vshrl.u32 %v3842, 7
  %v3844 = vsub.s32 %v3841, %v3843
  %v3845 = vrot.slane %v3692, %v3844
  %vm3846 = vcmask 982912
  %v3847 = vsel %vm3846, %v3845, %v3840
  %v3848 = vadd.s32 %v3745, 4294967176
  %v3849 = vlaneseq
  %v3850 = vshrl.u32 %v3849, 7
  %v3851 = vsub.s32 %v3848, %v3850
  %v3852 = vrot.slane %v3695, %v3851
  %vm3853 = vcmask 1048512
  %v3854 = vsel %vm3853, %v3852, %v3847
  %v3855 = vlaneseq
  %v3856 = vshrl.u32 %v3855, 7
  %v3857 = vsub.s32 %v3745, %v3856
  %v3858 = vrot.slane %v3698, %v3857
  %v3859 = vlaneseq
  %v3860 = vshrl.u32 %v3859, 7
  %v3861 = vsub.s32 %v3750, %v3860
  %v3862 = vrot.slane %v3701, %v3861
  %v3863 = vsel %vm3755, %v3862, %v3858
  %v3864 = vlaneseq
  %v3865 = vshrl.u32 %v3864, 7
  %v3866 = vsub.s32 %v3757, %v3865
  %v3867 = vrot.slane %v3704, %v3866
  %v3868 = vsel %vm3762, %v3867, %v3863
  %v3869 = vlaneseq
  %v3870 = vshrl.u32 %v3869, 7
  %v3871 = vsub.s32 %v3764, %v3870
  %v3872 = vrot.slane %v3707, %v3871
  %v3873 = vsel %vm3769, %v3872, %v3868
  %v3874 = vlaneseq
  %v3875 = vshrl.u32 %v3874, 7
  %v3876 = vsub.s32 %v3771, %v3875
  %v3877 = vrot.slane %v3710, %v3876
  %v3878 = vsel %vm3776, %v3877, %v3873
  %v3879 = vlaneseq
  %v3880 = vshrl.u32 %v3879, 7
  %v3881 = vsub.s32 %v3778, %v3880
  %v3882 = vrot.slane %v3713, %v3881
  %v3883 = vsel %vm3783, %v3882, %v3878
  %v3884 = vlaneseq
  %v3885 = vshrl.u32 %v3884, 7
  %v3886 = vsub.s32 %v3785, %v3885
  %v3887 = vrot.slane %v3716, %v3886
  %v3888 = vsel %vm3790, %v3887, %v3883
  %v3889 = vlaneseq
  %v3890 = vshrl.u32 %v3889, 7
  %v3891 = vsub.s32 %v3792, %v3890
  %v3892 = vrot.slane %v3719, %v3891
  %v3893 = vsel %vm3797, %v3892, %v3888
  %v3894 = vlaneseq
  %v3895 = vshrl.u32 %v3894, 7
  %v3896 = vsub.s32 %v3799, %v3895
  %v3897 = vrot.slane %v3722, %v3896
  %v3898 = vsel %vm3804, %v3897, %v3893
  %v3899 = vlaneseq
  %v3900 = vshrl.u32 %v3899, 7
  %v3901 = vsub.s32 %v3806, %v3900
  %v3902 = vrot.slane %v3725, %v3901
  %v3903 = vsel %vm3811, %v3902, %v3898
  %v3904 = vlaneseq
  %v3905 = vshrl.u32 %v3904, 7
  %v3906 = vsub.s32 %v3813, %v3905
  %v3907 = vrot.slane %v3728, %v3906
  %v3908 = vsel %vm3818, %v3907, %v3903
  %v3909 = vlaneseq
  %v3910 = vshrl.u32 %v3909, 7
  %v3911 = vsub.s32 %v3820, %v3910
  %v3912 = vrot.slane %v3731, %v3911
  %v3913 = vsel %vm3825, %v3912, %v3908
  %v3914 = vlaneseq
  %v3915 = vshrl.u32 %v3914, 7
  %v3916 = vsub.s32 %v3827, %v3915
  %v3917 = vrot.slane %v3734, %v3916
  %v3918 = vsel %vm3832, %v3917, %v3913
  %v3919 = vlaneseq
  %v3920 = vshrl.u32 %v3919, 7
  %v3921 = vsub.s32 %v3834, %v3920
  %v3922 = vrot.slane %v3737, %v3921
  %v3923 = vsel %vm3839, %v3922, %v3918
  %v3924 = vlaneseq
  %v3925 = vshrl.u32 %v3924, 7
  %v3926 = vsub.s32 %v3841, %v3925
  %v3927 = vrot.slane %v3740, %v3926
  %v3928 = vsel %vm3846, %v3927, %v3923
  %v3929 = vlaneseq
  %v3930 = vshrl.u32 %v3929, 7
  %v3931 = vsub.s32 %v3848, %v3930
  %v3932 = vrot.slane %v3743, %v3931
  %v3933 = vsel %vm3853, %v3932, %v3928
  %v3934 = vcombine.low %v3854, %v3933
  %v3936 = vunpack.c.l.s4 1966171168
  %v3937 = vunpack.c.0.s8 %v3936
  %v3938 = vlaneseq
  %v3939 = vshrl.u32 %v3938, 7
  %v3940 = vsub.s32 %v3937, %v3939
  %v3941 = vrot.slane %v3934, %v3940
  %v3943 = vunpack.c.l.s4 1966171168
  %v3944 = vunpack.c.0.s8 %v3943
  %v3945 = vlaneseq
  %v3946 = vshrl.u32 %v3945, 7
  %v3947 = vsub.s32 %v3944, %v3946
  %v3948 = vrot.slane %v3941, %v3947
  %v3950 = vlaneseq
  %vm3951 = vcmp.ge.s32.totalorder %v3950, 0
  %vm3952 = vcmp.lt.s32.totalorder %v3950, 256
  %vm3953 = vmand %vm3951, %vm3952
  %3954 = vst.msk [vmem:[%s7] sm:$0x3] %vm3953, %v3948
  // Predicated region
  $region30: #{discriminator_forward.1} parent=0 // pred_check
    _
  $region31: #{discriminator_forward.1} parent=0 // pred_check_branch
    %3956 = sbr.rel (0) target = $region33
  $region32: #{discriminator_forward.1} parent=0 // pred_region
    _
  $region33: #{discriminator_forward.1} parent=0 // pred_fallthru
    _
  // Predicated region
  $region34: #{discriminator_forward.1} parent=0 // pred_check
    _
  $region35: #{discriminator_forward.1} parent=0 // pred_check_branch
    %3958 = sbr.rel (0) target = $region37
  $region36: #{discriminator_forward.1} parent=0 // pred_region
    _
  $region37: #{discriminator_forward.1} parent=0 // pred_fallthru
    _

</llo_original>
